<compile_context>
chip_gen: v7x
topology: tpu7x:2x2x1
jax: 0.10.0
libtpu: 0.0.40
codegen_flags: <defaults>
</compile_context>

<pallas_src>
import functools

import numpy as np

import jax
import jax.numpy as jnp
from jax import lax
from jax.experimental import pallas as pl
from jax.experimental.pallas import tpu as pltpu


# ---- cfg (deterministic, in-script) ----------------------------------------
FG_IOU_THRESH = 0.5
BG_IOU_THRESH = 0.4
BBOX_NORMALIZE_MEANS = (0.0, 0.0, 0.0, 0.0)
BBOX_NORMALIZE_STDS = (0.1, 0.1, 0.2, 0.2)
ALLOWED_BORDER = 0

TILE_A = 2048          # default anchor-axis tile (multiple of 128), sweepable
_BIG = 2 ** 30         # "+inf" sentinel for integer argmin tie-breaking


def _round_up(x, m):
    return (x + m - 1) // m * m


def _vmem_budget_bytes():
    """Generation-aware budget for the fused per-tile VMEM working set."""
    cap = 128 << 20
    try:
        info = pltpu.get_tpu_info()
        cap = int(getattr(info, "vmem_capacity_bytes", cap))
    except Exception:
        pass
    # v7x: 64 MiB physical / 32 MiB scoped default -> stay well under it.
    # v5e/v6e: 128 MiB physical -> allow ~2x larger tiles.
    return (40 << 20) if cap >= (96 << 20) else (20 << 20)


def _pick_tile_a(tile_a, g_pad):
    """Cap TA so ~(20*G_pad + 64)*4*TA bytes stays inside the VMEM budget."""
    ta = _round_up(max(int(tile_a), 256), 128)
    per_anchor_bytes = (20 * g_pad + 64) * 4
    budget = _vmem_budget_bytes()
    while ta > 256 and ta * per_anchor_bytes > budget:
        ta -= 256
    return max(_round_up(ta, 128), 128)


# ---------------------------------------------------------------------------
# pass 1: per-gt max/argmax of IoU over the *kept* anchors (partial per half)
# ---------------------------------------------------------------------------
def _gt_argmax_kernel(num_gt_ref, img_hw_ref, anchors_ref, gt_ref,
                      gtmax_ref, gtarg_ref, gtmax_s, gtarg_s):
    c = pl.program_id(1)          # anchor half (megacore split)
    a2 = pl.program_id(2)         # tile within the half (sequential reduction)
    na2 = pl.num_programs(2)
    TA = anchors_ref.shape[1]

    H = img_hw_ref[0].astype(jnp.float32)   # int(img_info[0][0])
    W = img_hw_ref[1].astype(jnp.float32)   # int(img_info[0][1])
    border = float(ALLOWED_BORDER)

    ax1 = anchors_ref[0:1, :]     # (1, TA)
    ay1 = anchors_ref[1:2, :]
    ax2 = anchors_ref[2:3, :]
    ay2 = anchors_ref[3:4, :]
    area_a = anchors_ref[4:5, :] * anchors_ref[5:6, :]          # ew * eh

    # anchors fully inside the image (allowed_border = 0)
    keep = ((ax1 >= -border) & (ay1 >= -border) &
            (ax2 < W + border) & (ay2 < H + border))            # (1, TA)

    gx1 = gt_ref[0, :, 0:1]       # (G, 1)
    gy1 = gt_ref[0, :, 1:2]
    gx2 = gt_ref[0, :, 2:3]
    gy2 = gt_ref[0, :, 3:4]
    area_g = (gx2 - gx1 + 1.0) * (gy2 - gy1 + 1.0)              # (G, 1)

    # IoU with short live ranges (inter -> iou -> masked ov), (G, TA)
    inter = (jnp.maximum(jnp.minimum(ax2, gx2) - jnp.maximum(ax1, gx1) + 1.0, 0.0) *
             jnp.maximum(jnp.minimum(ay2, gy2) - jnp.maximum(ay1, gy1) + 1.0, 0.0))
    iou = inter / (area_a + area_g - inter)
    ov_a = jnp.where(keep, iou, -1.0)

    # global anchor index of this tile
    a_tile = c * na2 + a2
    a_idx = a_tile * TA + lax.broadcasted_iota(jnp.int32, (1, TA), 1)   # (1, TA)

    tile_max = jnp.max(ov_a, axis=1, keepdims=True)             # (G, 1)
    tile_arg = jnp.min(jnp.where(ov_a == tile_max, a_idx, _BIG),
                       axis=1, keepdims=True)                   # (G, 1) i32

    @pl.when(a2 == 0)
    def _():
        gtmax_s[...] = jnp.full_like(gtmax_s, -2.0)
        gtarg_s[...] = jnp.zeros_like(gtarg_s)

    run_max = gtmax_s[...]
    run_arg = gtarg_s[...]
    better = tile_max > run_max
    same = tile_max == run_max
    gtmax_s[...] = jnp.maximum(run_max, tile_max)
    gtarg_s[...] = jnp.where(better, tile_arg,
                             jnp.where(same,
                                       jnp.minimum(run_arg, tile_arg),
                                       run_arg))

    @pl.when(a2 == na2 - 1)
    def _():
        gtmax_ref[0, 0, :, :] = gtmax_s[...]
        gtarg_ref[0, 0, :, :] = gtarg_s[...]


# ---------------------------------------------------------------------------
# pass 2: recompute IoU, per-anchor argmax, forced assignment, one-hot MXU
#         gather, encode + normalize, lane-dense (5, TA) output slab
# ---------------------------------------------------------------------------
def _target_kernel(num_gt_ref, img_hw_ref, anchors_ref, gt_ref, gtc_ref,
                   gtarg_ref, out_ref, *, fg_thresh, bg_thresh, means, stds):
    a = pl.program_id(0)
    b = pl.program_id(1)
    G = gt_ref.shape[1]
    TA = anchors_ref.shape[1]

    H = img_hw_ref[0].astype(jnp.float32)
    W = img_hw_ref[1].astype(jnp.float32)
    n_gt = num_gt_ref[b]
    border = float(ALLOWED_BORDER)

    ax1 = anchors_ref[0:1, :]     # (1, TA)
    ay1 = anchors_ref[1:2, :]
    ax2 = anchors_ref[2:3, :]
    ay2 = anchors_ref[3:4, :]
    ew = anchors_ref[4:5, :]      # precomputed widths / centers
    eh = anchors_ref[5:6, :]
    ecx = anchors_ref[6:7, :]
    ecy = anchors_ref[7:8, :]
    area_a = ew * eh

    keep = ((ax1 >= -border) & (ay1 >= -border) &
            (ax2 < W + border) & (ay2 < H + border))            # (1, TA)

    gx1 = gt_ref[0, :, 0:1]       # (G, 1)
    gy1 = gt_ref[0, :, 1:2]
    gx2 = gt_ref[0, :, 2:3]
    gy2 = gt_ref[0, :, 3:4]
    area_g = (gx2 - gx1 + 1.0) * (gy2 - gy1 + 1.0)

    # IoU (BBoxFunctions.calcIoUs, +1 pixel convention)           (G, TA)
    inter = (jnp.maximum(jnp.minimum(ax2, gx2) - jnp.maximum(ax1, gx1) + 1.0, 0.0) *
             jnp.maximum(jnp.minimum(ay2, gy2) - jnp.maximum(ay1, gy1) + 1.0, 0.0))
    iou = inter / (area_a + area_g - inter)

    g_idx = lax.broadcasted_iota(jnp.int32, (G, 1), 0)          # (G, 1)
    valid_gt = g_idx < n_gt
    ov_g = jnp.where(valid_gt, iou, -1.0)                       # (G, TA)

    # per-anchor max / argmax over valid gts (torch.max(overlaps, 1))
    max_ov = jnp.max(ov_g, axis=0, keepdims=True)               # (1, TA)
    arg_g = jnp.min(jnp.where(ov_g == max_ov, g_idx, G),
                    axis=0, keepdims=True)                      # (1, TA) i32

    # max_overlaps.index_fill_(0, gt_argmax, 2) + overwrite loop (later gt wins)
    a_idx = a * TA + lax.broadcasted_iota(jnp.int32, (1, TA), 1)   # (1, TA)
    gt_arg = gtarg_ref[0, :, :]                                 # (G, 1) i32
    is_best = (a_idx == gt_arg) & valid_gt                      # (G, TA)
    forced_g = jnp.max(jnp.where(is_best, g_idx, -1), axis=0, keepdims=True)
    has_forced = forced_g >= 0
    argmax_final = jnp.where(has_forced, forced_g, arg_g)       # (1, TA)
    max_final = jnp.where(has_forced, 2.0, max_ov)              # (1, TA)

    # gather assigned [x1, y1, x2, y2, label] via exact one-hot matmul (MXU)
    one_hot = (g_idx == argmax_final).astype(jnp.float32)       # (G, TA)
    gath = jnp.dot(gtc_ref[0, :, :], one_hot,
                   preferred_element_type=jnp.float32)          # (8, TA)
    gx1_a = gath[0:1, :]
    gy1_a = gath[1:2, :]
    gx2_a = gath[2:3, :]
    gy2_a = gath[3:4, :]
    lab_a = gath[4:5, :]

    # classification targets
    lt_fg = max_final < fg_thresh
    cls = jnp.where(lt_fg, 0.0, lab_a)
    cls = jnp.where(lt_fg & (max_final > bg_thresh), -1.0, cls)
    cls = jnp.where(keep, cls, 0.0)                             # unmap fill=0

    # regression targets: BBoxFunctions.encodeBboxes + normalization
    gw = gx2_a - gx1_a + 1.0
    gh = gy2_a - gy1_a + 1.0
    gcx = gx1_a + 0.5 * gw
    gcy = gy1_a + 0.5 * gh
    dx = ((gcx - ecx) / ew - means[0]) / stds[0]
    dy = ((gcy - ecy) / eh - means[1]) / stds[1]
    dw = (jnp.log(gw / ew) - means[2]) / stds[2]
    dh = (jnp.log(gh / eh) - means[3]) / stds[3]

    # lane-dense (5, TA) slab: rows 0-3 reg, row 4 cls
    out_ref[0, 0:1, :] = jnp.where(keep, dx, -1.0)              # unmap fill=-1
    out_ref[0, 1:2, :] = jnp.where(keep, dy, -1.0)
    out_ref[0, 2:3, :] = jnp.where(keep, dw, -1.0)
    out_ref[0, 3:4, :] = jnp.where(keep, dh, -1.0)
    out_ref[0, 4:5, :] = cls


# ---------------------------------------------------------------------------
# wrapper
# ---------------------------------------------------------------------------
def build_target_layer(anchors, gt_boxes, img_info, num_gt_boxes,
                       fg_iou_thresh=FG_IOU_THRESH,
                       bg_iou_thresh=BG_IOU_THRESH,
                       means=BBOX_NORMALIZE_MEANS,
                       stds=BBOX_NORMALIZE_STDS,
                       tile_a=TILE_A,
                       transpose_reg=True):
    A = anchors.shape[0]
    B, Gmax, _ = gt_boxes.shape
    G_pad = _round_up(Gmax, 8)
    TA = _pick_tile_a(tile_a, G_pad)

    # Split the anchor axis into 2 "parallel" halves so both v7x TensorCores
    # work on pass 1 even at batch size 1 (no effect on single-TC v5e/v6e).
    NC = 2 if _round_up(A, TA) // TA >= 2 else 1
    A_pad = _round_up(A, NC * TA)
    NA_total = A_pad // TA
    NA_inner = NA_total // NC

    # anchor slab (8, A_pad): x1, y1, x2, y2, ew, eh, ecx, ecy
    # (padding coords -1 always fail the "inside image" test and stay finite)
    anchors_p = jnp.full((A_pad, 4), -1.0, jnp.float32).at[:A, :].set(
        anchors.astype(jnp.float32))
    ax1, ay1, ax2, ay2 = (anchors_p[:, i] for i in range(4))
    ew = ax2 - ax1 + 1.0
    eh = ay2 - ay1 + 1.0
    anchors_s = jnp.stack(
        [ax1, ay1, ax2, ay2, ew, eh, ax1 + 0.5 * ew, ay1 + 0.5 * eh], axis=0)

    gt_p = jnp.zeros((B, G_pad, 5), jnp.float32).at[:, :Gmax, :].set(
        gt_boxes.astype(jnp.float32))
    # gt columns stacked for the MXU gather: rows [x1, y1, x2, y2, label, 0, 0, 0]
    gt_cols = jnp.zeros((B, 8, G_pad), jnp.float32).at[:, :5, :].set(
        jnp.transpose(gt_p, (0, 2, 1)))

    num_gt = num_gt_boxes.astype(jnp.int32)                      # (B,)
    img_hw = img_info[0, :2].astype(jnp.int32)                   # int() cast

    # ---- pass 1: per-gt argmax over kept anchors (partial per half) ----
    gt_max_part, gt_arg_part = pl.pallas_call(
        _gt_argmax_kernel,
        out_shape=(
            jax.ShapeDtypeStruct((B, NC, G_pad, 1), jnp.float32),
            jax.ShapeDtypeStruct((B, NC, G_pad, 1), jnp.int32),
        ),
        grid_spec=pltpu.PrefetchScalarGridSpec(
            num_scalar_prefetch=2,
            grid=(B, NC, NA_inner),
            in_specs=[
                pl.BlockSpec((8, TA),
                             lambda b, c, a2, n, hw: (0, c * NA_inner + a2)),
                pl.BlockSpec((1, G_pad, 5), lambda b, c, a2, n, hw: (b, 0, 0)),
            ],
            out_specs=[
                pl.BlockSpec((1, 1, G_pad, 1),
                             lambda b, c, a2, n, hw: (b, c, 0, 0)),
                pl.BlockSpec((1, 1, G_pad, 1),
                             lambda b, c, a2, n, hw: (b, c, 0, 0)),
            ],
            scratch_shapes=[
                pltpu.VMEM((G_pad, 1), jnp.float32),
                pltpu.VMEM((G_pad, 1), jnp.int32),
            ],
        ),
        compiler_params=pltpu.CompilerParams(
            dimension_semantics=("parallel", "parallel", "arbitrary")),
    )(num_gt, img_hw, anchors_s, gt_p)

    # combine the per-half partial (max, arg) reductions (tiny XLA op);
    # ties resolve to the smallest global anchor index (first occurrence).
    best = jnp.max(gt_max_part, axis=1, keepdims=True)
    gt_argmax = jnp.min(jnp.where(gt_max_part == best, gt_arg_part, _BIG),
                        axis=1)                                  # (B, G_pad, 1)

    # ---- pass 2: assignment, gather, encode, output slab ----
    target_kernel = functools.partial(
        _target_kernel,
        fg_thresh=float(fg_iou_thresh),
        bg_thresh=float(bg_iou_thresh),
        means=tuple(float(m) for m in means),
        stds=tuple(float(s) for s in stds),
    )
    out = pl.pallas_call(
        target_kernel,
        out_shape=jax.ShapeDtypeStruct((B, 5, A_pad), jnp.float32),
        grid_spec=pltpu.PrefetchScalarGridSpec(
            num_scalar_prefetch=2,
            grid=(NA_total, B),   # batch innermost -> anchor tile stays resident
            in_specs=[
                pl.BlockSpec((8, TA), lambda a, b, n, hw: (0, a)),
                pl.BlockSpec((1, G_pad, 5), lambda a, b, n, hw: (b, 0, 0)),
                pl.BlockSpec((1, 8, G_pad), lambda a, b, n, hw: (b, 0, 0)),
                pl.BlockSpec((1, G_pad, 1), lambda a, b, n, hw: (b, 0, 0)),
            ],
            out_specs=pl.BlockSpec((1, 5, TA), lambda a, b, n, hw: (b, 0, a)),
        ),
        compiler_params=pltpu.CompilerParams(
            dimension_semantics=("parallel", "parallel")),
    )(num_gt, img_hw, anchors_s, gt_p, gt_cols, gt_argmax)

    cls_targets = out[:, 4, :A]                                  # (B, A)
    reg_targets = out[:, 0:4, :A]                                # (B, 4, A)
    if transpose_reg:
        # (B, A, 4) matches the PyTorch module interface; consumers that can
        # take the lane-dense (B, 4, A) layout should pass transpose_reg=False
        # to skip this extra XLA HBM round trip.
        reg_targets = jnp.transpose(reg_targets, (0, 2, 1))
    return [cls_targets, reg_targets]


# ---------------------------------------------------------------------------
# numpy reference (direct port of the PyTorch module)
# ---------------------------------------------------------------------------
def _reference(anchors, gt_boxes, img_info, num_gt_boxes, fg, bg, means, stds):
    anchors = np.asarray(anchors, np.float32)
    gt_boxes = np.asarray(gt_boxes, np.float32)
    B, A = gt_boxes.shape[0], anchors.shape[0]
    H, W = int(img_info[0][0]), int(img_info[0][1])
    keep = ((anchors[:, 0] >= 0) & (anchors[:, 1] >= 0) &
            (anchors[:, 2] < W) & (anchors[:, 3] < H))
    keep_idx = np.nonzero(keep)[0]
    ak = anchors[keep_idx]
    cls_k = np.zeros((B, keep_idx.size), np.float32)
    reg_k = np.zeros((B, keep_idx.size, 4), np.float32)
    for b in range(B):
        n = int(num_gt_boxes[b])
        g = gt_boxes[b, :n]
        iw = np.maximum(np.minimum(ak[:, None, 2], g[None, :, 2]) -
                        np.maximum(ak[:, None, 0], g[None, :, 0]) + 1.0, 0.0)
        ih = np.maximum(np.minimum(ak[:, None, 3], g[None, :, 3]) -
                        np.maximum(ak[:, None, 1], g[None, :, 1]) + 1.0, 0.0)
        inter = iw * ih
        area_a = (ak[:, 2] - ak[:, 0] + 1.0) * (ak[:, 3] - ak[:, 1] + 1.0)
        area_g = (g[:, 2] - g[:, 0] + 1.0) * (g[:, 3] - g[:, 1] + 1.0)
        ov = inter / (area_a[:, None] + area_g[None, :] - inter)
        max_ov = ov.max(axis=1)
        argmax = ov.argmax(axis=1)
        gt_argmax = ov.argmax(axis=0)
        max_ov[gt_argmax] = 2.0
        for i in range(n):
            argmax[gt_argmax[i]] = i
        labels = g[argmax, 4].copy()
        labels[max_ov < fg] = 0.0
        labels[(max_ov < fg) & (max_ov > bg)] = -1.0
        boxes = g[argmax, :4]
        ew = ak[:, 2] - ak[:, 0] + 1.0
        eh = ak[:, 3] - ak[:, 1] + 1.0
        ecx = ak[:, 0] + 0.5 * ew
        ecy = ak[:, 1] + 0.5 * eh
        gw = boxes[:, 2] - boxes[:, 0] + 1.0
        gh = boxes[:, 3] - boxes[:, 1] + 1.0
        gcx = boxes[:, 0] + 0.5 * gw
        gcy = boxes[:, 1] + 0.5 * gh
        cls_k[b] = labels
        reg_k[b] = np.stack([(gcx - ecx) / ew, (gcy - ecy) / eh,
                             np.log(gw / ew), np.log(gh / eh)], axis=1)
    reg_k = (reg_k - np.asarray(means, np.float32)) / np.asarray(stds, np.float32)
    cls_full = np.zeros((B, A), np.float32)
    reg_full = np.full((B, A, 4), -1.0, np.float32)
    cls_full[:, keep_idx] = cls_k
    reg_full[:, keep_idx] = reg_k
    return cls_full, reg_full


if __name__ == "__main__":
    key = jax.random.PRNGKey(0)
    # A > 2*TILE_A so both the A-tiling and the 2-way pass-1 split are exercised
    B, A, Gmax = 2, 5000, 6
    img_h, img_w = 64.0, 64.0

    k1, k2, k3, k4, k5 = jax.random.split(key, 5)
    # anchors (x1, y1, x2, y2): some inside the image, some out of bounds
    ctr = jax.random.uniform(k1, (A, 2), minval=-8.0, maxval=72.0)
    wh = jax.random.uniform(k2, (A, 2), minval=6.0, maxval=24.0)
    anchors = jnp.concatenate([ctr - 0.5 * wh, ctr + 0.5 * wh], axis=1)

    # gt boxes inside the image (coords quantized to 0.5 px), labels in [1, 10]
    g_xy1 = jnp.round(jax.random.uniform(k3, (B, Gmax, 2), minval=0.0,
                                         maxval=40.0) * 2.0) / 2.0
    g_wh = jnp.round(jax.random.uniform(k4, (B, Gmax, 2), minval=5.0,
                                        maxval=20.0) * 2.0) / 2.0
    g_xy2 = jnp.minimum(g_xy1 + g_wh, img_w - 1.0)
    labels = jax.random.randint(k5, (B, Gmax, 1), 1, 11).astype(jnp.float32)
    gt_boxes = jnp.concatenate([g_xy1, g_xy2, labels], axis=-1)   # (B, Gmax, 5)

    img_info = jnp.array([[img_h, img_w, 1.0], [img_h, img_w, 1.0]], jnp.float32)
    num_gt_boxes = jnp.array([3, 5], jnp.int32)

    run = jax.jit(build_target_layer)
    cls_t, reg_t = run(anchors, gt_boxes, img_info, num_gt_boxes)
    jax.block_until_ready((cls_t, reg_t))

    assert cls_t.shape == (B, A) and reg_t.shape == (B, A, 4)
    assert bool(jnp.all(jnp.isfinite(cls_t))) and bool(jnp.all(jnp.isfinite(reg_t)))

    # check against a direct numpy port of the PyTorch module
    cls_ref, reg_ref = _reference(np.asarray(anchors), np.asarray(gt_boxes),
                                  np.asarray(img_info), np.asarray(num_gt_boxes),
                                  FG_IOU_THRESH, BG_IOU_THRESH,
                                  BBOX_NORMALIZE_MEANS, BBOX_NORMALIZE_STDS)
    np.testing.assert_array_equal(np.asarray(cls_t), cls_ref)
    np.testing.assert_allclose(np.asarray(reg_t), reg_ref, rtol=2e-3, atol=2e-3)

    print("KERNEL_OK")
</pallas_src>

<mosaic_0001>
module attributes {stable_mosaic.version = 11 : i64} {
  func.func @_gt_argmax_kernel(%arg0: i32, %arg1: i32, %arg2: i32, %arg3: memref<2xi32, #tpu.memory_space<smem>>, %arg4: memref<2xi32, #tpu.memory_space<smem>>, %arg5: memref<8x2048xf32, #tpu.memory_space<vmem>>, %arg6: memref<1x8x5xf32, #tpu.memory_space<vmem>>, %arg7: memref<1x1x8x1xf32, #tpu.memory_space<vmem>>, %arg8: memref<1x1x8x1xi32, #tpu.memory_space<vmem>>, %arg9: memref<8x1xf32, #tpu.memory_space<vmem>>, %arg10: memref<8x1xi32, #tpu.memory_space<vmem>>) attributes {dimension_semantics = [#tpu.dimension_semantics<parallel>, #tpu.dimension_semantics<parallel>, #tpu.dimension_semantics<arbitrary>], iteration_bounds = array<i64: 2, 2, 2>, scalar_prefetch = 2 : i64, scratch_operands = 2 : i64, tpu.core_type = #tpu.core_type<tc>, window_params = [{transform_indices = @transform_0, window_bounds = array<i64: 8, 2048>}, {transform_indices = @transform_1, window_bounds = array<i64: 1, 8, 5>}, {transform_indices = @transform_2, window_bounds = array<i64: 1, 1, 8, 1>}, {transform_indices = @transform_3, window_bounds = array<i64: 1, 1, 8, 1>}]} {
    %c0 = arith.constant 0 : index
    %0 = memref.load %arg4[%c0] : memref<2xi32, #tpu.memory_space<smem>>
    %1 = arith.sitofp %0 : i32 to f32
    %c1 = arith.constant 1 : index
    %2 = memref.load %arg4[%c1] : memref<2xi32, #tpu.memory_space<smem>>
    %3 = arith.sitofp %2 : i32 to f32
    %c0_0 = arith.constant 0 : index
    %c0_1 = arith.constant 0 : index
    %4 = vector.load %arg5[%c0_0, %c0_1] : memref<8x2048xf32, #tpu.memory_space<vmem>>, vector<1x2048xf32>
    %c1_2 = arith.constant 1 : index
    %c0_3 = arith.constant 0 : index
    %5 = vector.load %arg5[%c1_2, %c0_3] : memref<8x2048xf32, #tpu.memory_space<vmem>>, vector<1x2048xf32>
    %c2 = arith.constant 2 : index
    %c0_4 = arith.constant 0 : index
    %6 = vector.load %arg5[%c2, %c0_4] : memref<8x2048xf32, #tpu.memory_space<vmem>>, vector<1x2048xf32>
    %c3 = arith.constant 3 : index
    %c0_5 = arith.constant 0 : index
    %7 = vector.load %arg5[%c3, %c0_5] : memref<8x2048xf32, #tpu.memory_space<vmem>>, vector<1x2048xf32>
    %c4 = arith.constant 4 : index
    %c0_6 = arith.constant 0 : index
    %8 = vector.load %arg5[%c4, %c0_6] : memref<8x2048xf32, #tpu.memory_space<vmem>>, vector<1x2048xf32>
    %c5 = arith.constant 5 : index
    %c0_7 = arith.constant 0 : index
    %9 = vector.load %arg5[%c5, %c0_7] : memref<8x2048xf32, #tpu.memory_space<vmem>>, vector<1x2048xf32>
    %10 = arith.mulf %8, %9 : vector<1x2048xf32>
    %cst = arith.constant -0.000000e+00 : f32
    %11 = vector.broadcast %cst : f32 to vector<1x2048xf32>
    %12 = arith.cmpf oge, %4, %11 : vector<1x2048xf32>
    %cst_8 = arith.constant -0.000000e+00 : f32
    %13 = vector.broadcast %cst_8 : f32 to vector<1x2048xf32>
    %14 = arith.cmpf oge, %5, %13 : vector<1x2048xf32>
    %15 = arith.andi %12, %14 : vector<1x2048xi1>
    %cst_9 = arith.constant 0.000000e+00 : f32
    %16 = arith.addf %3, %cst_9 : f32
    %17 = vector.broadcast %16 : f32 to vector<1x2048xf32>
    %18 = arith.cmpf olt, %6, %17 : vector<1x2048xf32>
    %19 = arith.andi %15, %18 : vector<1x2048xi1>
    %cst_10 = arith.constant 0.000000e+00 : f32
    %20 = arith.addf %1, %cst_10 : f32
    %21 = vector.broadcast %20 : f32 to vector<1x2048xf32>
    %22 = arith.cmpf olt, %7, %21 : vector<1x2048xf32>
    %23 = arith.andi %19, %22 : vector<1x2048xi1>
    %c0_11 = arith.constant 0 : index
    %c0_12 = arith.constant 0 : index
    %c0_13 = arith.constant 0 : index
    %24 = vector.load %arg6[%c0_11, %c0_12, %c0_13] : memref<1x8x5xf32, #tpu.memory_space<vmem>>, vector<1x8x1xf32>
    %25 = vector.shape_cast %24 : vector<1x8x1xf32> to vector<8x1xf32>
    %c0_14 = arith.constant 0 : index
    %c0_15 = arith.constant 0 : index
    %c1_16 = arith.constant 1 : index
    %26 = vector.load %arg6[%c0_14, %c0_15, %c1_16] : memref<1x8x5xf32, #tpu.memory_space<vmem>>, vector<1x8x1xf32>
    %27 = vector.shape_cast %26 : vector<1x8x1xf32> to vector<8x1xf32>
    %c0_17 = arith.constant 0 : index
    %c0_18 = arith.constant 0 : index
    %c2_19 = arith.constant 2 : index
    %28 = vector.load %arg6[%c0_17, %c0_18, %c2_19] : memref<1x8x5xf32, #tpu.memory_space<vmem>>, vector<1x8x1xf32>
    %29 = vector.shape_cast %28 : vector<1x8x1xf32> to vector<8x1xf32>
    %c0_20 = arith.constant 0 : index
    %c0_21 = arith.constant 0 : index
    %c3_22 = arith.constant 3 : index
    %30 = vector.load %arg6[%c0_20, %c0_21, %c3_22] : memref<1x8x5xf32, #tpu.memory_space<vmem>>, vector<1x8x1xf32>
    %31 = vector.shape_cast %30 : vector<1x8x1xf32> to vector<8x1xf32>
    %32 = arith.subf %29, %25 : vector<8x1xf32>
    %cst_23 = arith.constant 1.000000e+00 : f32
    %33 = vector.broadcast %cst_23 : f32 to vector<8x1xf32>
    %34 = arith.addf %32, %33 : vector<8x1xf32>
    %35 = arith.subf %31, %27 : vector<8x1xf32>
    %cst_24 = arith.constant 1.000000e+00 : f32
    %36 = vector.broadcast %cst_24 : f32 to vector<8x1xf32>
    %37 = arith.addf %35, %36 : vector<8x1xf32>
    %38 = arith.mulf %34, %37 : vector<8x1xf32>
    %39 = vector.broadcast %6 : vector<1x2048xf32> to vector<8x2048xf32>
    %40 = vector.broadcast %29 : vector<8x1xf32> to vector<8x2048xf32>
    %41 = arith.minimumf %39, %40 : vector<8x2048xf32>
    %42 = vector.broadcast %4 : vector<1x2048xf32> to vector<8x2048xf32>
    %43 = vector.broadcast %25 : vector<8x1xf32> to vector<8x2048xf32>
    %44 = arith.maximumf %42, %43 : vector<8x2048xf32>
    %45 = arith.subf %41, %44 : vector<8x2048xf32>
    %cst_25 = arith.constant 1.000000e+00 : f32
    %46 = vector.broadcast %cst_25 : f32 to vector<8x2048xf32>
    %47 = arith.addf %45, %46 : vector<8x2048xf32>
    %cst_26 = arith.constant 0.000000e+00 : f32
    %48 = vector.broadcast %cst_26 : f32 to vector<8x2048xf32>
    %49 = arith.maximumf %47, %48 : vector<8x2048xf32>
    %50 = vector.broadcast %7 : vector<1x2048xf32> to vector<8x2048xf32>
    %51 = vector.broadcast %31 : vector<8x1xf32> to vector<8x2048xf32>
    %52 = arith.minimumf %50, %51 : vector<8x2048xf32>
    %53 = vector.broadcast %5 : vector<1x2048xf32> to vector<8x2048xf32>
    %54 = vector.broadcast %27 : vector<8x1xf32> to vector<8x2048xf32>
    %55 = arith.maximumf %53, %54 : vector<8x2048xf32>
    %56 = arith.subf %52, %55 : vector<8x2048xf32>
    %cst_27 = arith.constant 1.000000e+00 : f32
    %57 = vector.broadcast %cst_27 : f32 to vector<8x2048xf32>
    %58 = arith.addf %56, %57 : vector<8x2048xf32>
    %cst_28 = arith.constant 0.000000e+00 : f32
    %59 = vector.broadcast %cst_28 : f32 to vector<8x2048xf32>
    %60 = arith.maximumf %58, %59 : vector<8x2048xf32>
    %61 = arith.mulf %49, %60 : vector<8x2048xf32>
    %62 = vector.broadcast %10 : vector<1x2048xf32> to vector<8x2048xf32>
    %63 = vector.broadcast %38 : vector<8x1xf32> to vector<8x2048xf32>
    %64 = arith.addf %62, %63 : vector<8x2048xf32>
    %65 = arith.subf %64, %61 : vector<8x2048xf32>
    %66 = arith.divf %61, %65 : vector<8x2048xf32>
    %cst_29 = arith.constant -1.000000e+00 : f32
    %67 = vector.shape_cast %23 : vector<1x2048xi1> to vector<1x2048xi1>
    %68 = vector.broadcast %67 : vector<1x2048xi1> to vector<8x2048xi1>
    %69 = vector.broadcast %cst_29 : f32 to vector<8x2048xf32>
    %70 = arith.select %68, %66, %69 : vector<8x2048xi1>, vector<8x2048xf32>
    %c2_i32 = arith.constant 2 : i32
    %71 = arith.muli %arg1, %c2_i32 : i32
    %72 = arith.addi %71, %arg2 : i32
    %c2048_i32 = arith.constant 2048 : i32
    %73 = arith.muli %72, %c2048_i32 : i32
    %74 = tpu.iota {dimensions = array<i32: 1>} : vector<1x2048xi32>
    %75 = vector.broadcast %73 : i32 to vector<1x2048xi32>
    %76 = arith.addi %75, %74 : vector<1x2048xi32>
    %cst_30 = arith.constant dense<0xFF800000> : vector<8xf32>
    %77 = vector.multi_reduction <maximumf>, %70, %cst_30 [1] : vector<8x2048xf32> to vector<8xf32>
    %78 = vector.shape_cast %77 : vector<8xf32> to vector<8x1xf32>
    %79 = vector.broadcast %78 : vector<8x1xf32> to vector<8x2048xf32>
    %80 = arith.cmpf oeq, %70, %79 : vector<8x2048xf32>
    %c1073741824_i32 = arith.constant 1073741824 : i32
    %81 = vector.shape_cast %76 : vector<1x2048xi32> to vector<1x2048xi32>
    %82 = vector.broadcast %81 : vector<1x2048xi32> to vector<8x2048xi32>
    %83 = vector.broadcast %c1073741824_i32 : i32 to vector<8x2048xi32>
    %84 = arith.select %80, %82, %83 : vector<8x2048xi1>, vector<8x2048xi32>
    %cst_31 = arith.constant dense<2147483647> : vector<8xi32>
    %85 = vector.multi_reduction <minsi>, %84, %cst_31 [1] : vector<8x2048xi32> to vector<8xi32>
    %86 = vector.shape_cast %85 : vector<8xi32> to vector<8x1xi32>
    %c0_i32 = arith.constant 0 : i32
    %87 = arith.cmpi eq, %arg2, %c0_i32 : i32
    %88 = arith.extui %87 : i1 to i32
    %c0_i32_32 = arith.constant 0 : i32
    %89 = arith.cmpi ne, %88, %c0_i32_32 : i32
    scf.if %89 {
      %cst_42 = arith.constant -2.000000e+00 : f32
      %103 = vector.broadcast %cst_42 : f32 to vector<8x1xf32>
      %c0_43 = arith.constant 0 : index
      %c0_44 = arith.constant 0 : index
      %104 = vector.load %arg9[%c0_43, %c0_44] : memref<8x1xf32, #tpu.memory_space<vmem>>, vector<8x1xf32>
      tpu.vector_store %arg9[%c0_43, %c0_44], %103 {strides = array<i32>} : memref<8x1xf32, #tpu.memory_space<vmem>>, vector<8x1xf32>,
      %c0_i32_45 = arith.constant 0 : i32
      %105 = vector.broadcast %c0_i32_45 : i32 to vector<8x1xi32>
      %c0_46 = arith.constant 0 : index
      %c0_47 = arith.constant 0 : index
      %106 = vector.load %arg10[%c0_46, %c0_47] : memref<8x1xi32, #tpu.memory_space<vmem>>, vector<8x1xi32>
      tpu.vector_store %arg10[%c0_46, %c0_47], %105 {strides = array<i32>} : memref<8x1xi32, #tpu.memory_space<vmem>>, vector<8x1xi32>,
    } else {
    }
    %c0_33 = arith.constant 0 : index
    %c0_34 = arith.constant 0 : index
    %90 = vector.load %arg9[%c0_33, %c0_34] : memref<8x1xf32, #tpu.memory_space<vmem>>, vector<8x1xf32>
    %c0_35 = arith.constant 0 : index
    %c0_36 = arith.constant 0 : index
    %91 = vector.load %arg10[%c0_35, %c0_36] : memref<8x1xi32, #tpu.memory_space<vmem>>, vector<8x1xi32>
    %92 = arith.cmpf ogt, %78, %90 : vector<8x1xf32>
    %93 = arith.cmpf oeq, %78, %90 : vector<8x1xf32>
    %94 = arith.maximumf %90, %78 : vector<8x1xf32>
    %c0_37 = arith.constant 0 : index
    %c0_38 = arith.constant 0 : index
    %95 = vector.load %arg9[%c0_37, %c0_38] : memref<8x1xf32, #tpu.memory_space<vmem>>, vector<8x1xf32>
    tpu.vector_store %arg9[%c0_37, %c0_38], %94 {strides = array<i32>} : memref<8x1xf32, #tpu.memory_space<vmem>>, vector<8x1xf32>,
    %96 = arith.minsi %91, %86 : vector<8x1xi32>
    %97 = arith.select %93, %96, %91 : vector<8x1xi1>, vector<8x1xi32>
    %98 = arith.select %92, %86, %97 : vector<8x1xi1>, vector<8x1xi32>
    %c0_39 = arith.constant 0 : index
    %c0_40 = arith.constant 0 : index
    %99 = vector.load %arg10[%c0_39, %c0_40] : memref<8x1xi32, #tpu.memory_space<vmem>>, vector<8x1xi32>
    tpu.vector_store %arg10[%c0_39, %c0_40], %98 {strides = array<i32>} : memref<8x1xi32, #tpu.memory_space<vmem>>, vector<8x1xi32>,
    %c1_i32 = arith.constant 1 : i32
    %100 = arith.cmpi eq, %arg2, %c1_i32 : i32
    %101 = arith.extui %100 : i1 to i32
    %c0_i32_41 = arith.constant 0 : i32
    %102 = arith.cmpi ne, %101, %c0_i32_41 : i32
    scf.if %102 {
      %c0_42 = arith.constant 0 : index
      %c0_43 = arith.constant 0 : index
      %103 = vector.load %arg9[%c0_42, %c0_43] : memref<8x1xf32, #tpu.memory_space<vmem>>, vector<8x1xf32>
      %c0_44 = arith.constant 0 : index
      %c0_45 = arith.constant 0 : index
      %c0_46 = arith.constant 0 : index
      %c0_47 = arith.constant 0 : index
      %104 = vector.load %arg7[%c0_44, %c0_45, %c0_46, %c0_47] : memref<1x1x8x1xf32, #tpu.memory_space<vmem>>, vector<1x1x8x1xf32>
      %105 = vector.shape_cast %104 : vector<1x1x8x1xf32> to vector<8x1xf32>
      %106 = vector.shape_cast %103 : vector<8x1xf32> to vector<1x1x8x1xf32>
      tpu.vector_store %arg7[%c0_44, %c0_45, %c0_46, %c0_47], %106 {strides = array<i32>} : memref<1x1x8x1xf32, #tpu.memory_space<vmem>>, vector<1x1x8x1xf32>,
      %c0_48 = arith.constant 0 : index
      %c0_49 = arith.constant 0 : index
      %107 = vector.load %arg10[%c0_48, %c0_49] : memref<8x1xi32, #tpu.memory_space<vmem>>, vector<8x1xi32>
      %c0_50 = arith.constant 0 : index
      %c0_51 = arith.constant 0 : index
      %c0_52 = arith.constant 0 : index
      %c0_53 = arith.constant 0 : index
      %108 = vector.load %arg8[%c0_50, %c0_51, %c0_52, %c0_53] : memref<1x1x8x1xi32, #tpu.memory_space<vmem>>, vector<1x1x8x1xi32>
      %109 = vector.shape_cast %108 : vector<1x1x8x1xi32> to vector<8x1xi32>
      %110 = vector.shape_cast %107 : vector<8x1xi32> to vector<1x1x8x1xi32>
      tpu.vector_store %arg8[%c0_50, %c0_51, %c0_52, %c0_53], %110 {strides = array<i32>} : memref<1x1x8x1xi32, #tpu.memory_space<vmem>>, vector<1x1x8x1xi32>,
    } else {
    }
    return
  }
  func.func @transform_0(%arg0: i32, %arg1: i32, %arg2: i32, %arg3: memref<2xi32, #tpu.memory_space<smem>>, %arg4: memref<2xi32, #tpu.memory_space<smem>>) -> (i32, i32) {
    %c2_i32 = arith.constant 2 : i32
    %0 = arith.muli %arg1, %c2_i32 : i32
    %1 = arith.addi %0, %arg2 : i32
    %c0_i32 = arith.constant 0 : i32
    %c0_i32_0 = arith.constant 0 : i32
    return %c0_i32, %1 : i32, i32
  }
  func.func @transform_1(%arg0: i32, %arg1: i32, %arg2: i32, %arg3: memref<2xi32, #tpu.memory_space<smem>>, %arg4: memref<2xi32, #tpu.memory_space<smem>>) -> (i32, i32, i32) {
    %c0_i32 = arith.constant 0 : i32
    %c0_i32_0 = arith.constant 0 : i32
    %c0_i32_1 = arith.constant 0 : i32
    return %arg0, %c0_i32, %c0_i32_0 : i32, i32, i32
  }
  func.func @transform_2(%arg0: i32, %arg1: i32, %arg2: i32, %arg3: memref<2xi32, #tpu.memory_space<smem>>, %arg4: memref<2xi32, #tpu.memory_space<smem>>) -> (i32, i32, i32, i32) {
    %c0_i32 = arith.constant 0 : i32
    %c0_i32_0 = arith.constant 0 : i32
    %c0_i32_1 = arith.constant 0 : i32
    return %arg0, %arg1, %c0_i32, %c0_i32_0 : i32, i32, i32, i32
  }
  func.func @transform_3(%arg0: i32, %arg1: i32, %arg2: i32, %arg3: memref<2xi32, #tpu.memory_space<smem>>, %arg4: memref<2xi32, #tpu.memory_space<smem>>) -> (i32, i32, i32, i32) {
    %c0_i32 = arith.constant 0 : i32
    %c0_i32_0 = arith.constant 0 : i32
    %c0_i32_1 = arith.constant 0 : i32
    return %arg0, %arg1, %c0_i32, %c0_i32_0 : i32, i32, i32, i32
  }
}

module attributes {stable_mosaic.version = 11 : i64} {
  func.func @_target_kernel(%arg0: i32, %arg1: i32, %arg2: memref<2xi32, #tpu.memory_space<smem>>, %arg3: memref<2xi32, #tpu.memory_space<smem>>, %arg4: memref<8x2048xf32, #tpu.memory_space<vmem>>, %arg5: memref<1x8x5xf32, #tpu.memory_space<vmem>>, %arg6: memref<1x8x8xf32, #tpu.memory_space<vmem>>, %arg7: memref<1x8x1xi32, #tpu.memory_space<vmem>>, %arg8: memref<1x5x2048xf32, #tpu.memory_space<vmem>>) attributes {dimension_semantics = [#tpu.dimension_semantics<parallel>, #tpu.dimension_semantics<parallel>], iteration_bounds = array<i64: 4, 2>, scalar_prefetch = 2 : i64, scratch_operands = 0 : i64, tpu.core_type = #tpu.core_type<tc>, window_params = [{transform_indices = @transform_0, window_bounds = array<i64: 8, 2048>}, {transform_indices = @transform_1, window_bounds = array<i64: 1, 8, 5>}, {transform_indices = @transform_2, window_bounds = array<i64: 1, 8, 8>}, {transform_indices = @transform_3, window_bounds = array<i64: 1, 8, 1>}, {transform_indices = @transform_4, window_bounds = array<i64: 1, 5, 2048>}]} {
    %c0 = arith.constant 0 : index
    %0 = memref.load %arg3[%c0] : memref<2xi32, #tpu.memory_space<smem>>
    %1 = arith.sitofp %0 : i32 to f32
    %c1 = arith.constant 1 : index
    %2 = memref.load %arg3[%c1] : memref<2xi32, #tpu.memory_space<smem>>
    %3 = arith.sitofp %2 : i32 to f32
    %4 = arith.index_cast %arg1 : i32 to index
    %5 = memref.load %arg2[%4] : memref<2xi32, #tpu.memory_space<smem>>
    %c0_0 = arith.constant 0 : index
    %c0_1 = arith.constant 0 : index
    %6 = vector.load %arg4[%c0_0, %c0_1] : memref<8x2048xf32, #tpu.memory_space<vmem>>, vector<1x2048xf32>
    %c1_2 = arith.constant 1 : index
    %c0_3 = arith.constant 0 : index
    %7 = vector.load %arg4[%c1_2, %c0_3] : memref<8x2048xf32, #tpu.memory_space<vmem>>, vector<1x2048xf32>
    %c2 = arith.constant 2 : index
    %c0_4 = arith.constant 0 : index
    %8 = vector.load %arg4[%c2, %c0_4] : memref<8x2048xf32, #tpu.memory_space<vmem>>, vector<1x2048xf32>
    %c3 = arith.constant 3 : index
    %c0_5 = arith.constant 0 : index
    %9 = vector.load %arg4[%c3, %c0_5] : memref<8x2048xf32, #tpu.memory_space<vmem>>, vector<1x2048xf32>
    %c4 = arith.constant 4 : index
    %c0_6 = arith.constant 0 : index
    %10 = vector.load %arg4[%c4, %c0_6] : memref<8x2048xf32, #tpu.memory_space<vmem>>, vector<1x2048xf32>
    %c5 = arith.constant 5 : index
    %c0_7 = arith.constant 0 : index
    %11 = vector.load %arg4[%c5, %c0_7] : memref<8x2048xf32, #tpu.memory_space<vmem>>, vector<1x2048xf32>
    %c6 = arith.constant 6 : index
    %c0_8 = arith.constant 0 : index
    %12 = vector.load %arg4[%c6, %c0_8] : memref<8x2048xf32, #tpu.memory_space<vmem>>, vector<1x2048xf32>
    %c7 = arith.constant 7 : index
    %c0_9 = arith.constant 0 : index
    %13 = vector.load %arg4[%c7, %c0_9] : memref<8x2048xf32, #tpu.memory_space<vmem>>, vector<1x2048xf32>
    %14 = arith.mulf %10, %11 : vector<1x2048xf32>
    %cst = arith.constant -0.000000e+00 : f32
    %15 = vector.broadcast %cst : f32 to vector<1x2048xf32>
    %16 = arith.cmpf oge, %6, %15 : vector<1x2048xf32>
    %cst_10 = arith.constant -0.000000e+00 : f32
    %17 = vector.broadcast %cst_10 : f32 to vector<1x2048xf32>
    %18 = arith.cmpf oge, %7, %17 : vector<1x2048xf32>
    %19 = arith.andi %16, %18 : vector<1x2048xi1>
    %cst_11 = arith.constant 0.000000e+00 : f32
    %20 = arith.addf %3, %cst_11 : f32
    %21 = vector.broadcast %20 : f32 to vector<1x2048xf32>
    %22 = arith.cmpf olt, %8, %21 : vector<1x2048xf32>
    %23 = arith.andi %19, %22 : vector<1x2048xi1>
    %cst_12 = arith.constant 0.000000e+00 : f32
    %24 = arith.addf %1, %cst_12 : f32
    %25 = vector.broadcast %24 : f32 to vector<1x2048xf32>
    %26 = arith.cmpf olt, %9, %25 : vector<1x2048xf32>
    %27 = arith.andi %23, %26 : vector<1x2048xi1>
    %c0_13 = arith.constant 0 : index
    %c0_14 = arith.constant 0 : index
    %c0_15 = arith.constant 0 : index
    %28 = vector.load %arg5[%c0_13, %c0_14, %c0_15] : memref<1x8x5xf32, #tpu.memory_space<vmem>>, vector<1x8x1xf32>
    %29 = vector.shape_cast %28 : vector<1x8x1xf32> to vector<8x1xf32>
    %c0_16 = arith.constant 0 : index
    %c0_17 = arith.constant 0 : index
    %c1_18 = arith.constant 1 : index
    %30 = vector.load %arg5[%c0_16, %c0_17, %c1_18] : memref<1x8x5xf32, #tpu.memory_space<vmem>>, vector<1x8x1xf32>
    %31 = vector.shape_cast %30 : vector<1x8x1xf32> to vector<8x1xf32>
    %c0_19 = arith.constant 0 : index
    %c0_20 = arith.constant 0 : index
    %c2_21 = arith.constant 2 : index
    %32 = vector.load %arg5[%c0_19, %c0_20, %c2_21] : memref<1x8x5xf32, #tpu.memory_space<vmem>>, vector<1x8x1xf32>
    %33 = vector.shape_cast %32 : vector<1x8x1xf32> to vector<8x1xf32>
    %c0_22 = arith.constant 0 : index
    %c0_23 = arith.constant 0 : index
    %c3_24 = arith.constant 3 : index
    %34 = vector.load %arg5[%c0_22, %c0_23, %c3_24] : memref<1x8x5xf32, #tpu.memory_space<vmem>>, vector<1x8x1xf32>
    %35 = vector.shape_cast %34 : vector<1x8x1xf32> to vector<8x1xf32>
    %36 = arith.subf %33, %29 : vector<8x1xf32>
    %cst_25 = arith.constant 1.000000e+00 : f32
    %37 = vector.broadcast %cst_25 : f32 to vector<8x1xf32>
    %38 = arith.addf %36, %37 : vector<8x1xf32>
    %39 = arith.subf %35, %31 : vector<8x1xf32>
    %cst_26 = arith.constant 1.000000e+00 : f32
    %40 = vector.broadcast %cst_26 : f32 to vector<8x1xf32>
    %41 = arith.addf %39, %40 : vector<8x1xf32>
    %42 = arith.mulf %38, %41 : vector<8x1xf32>
    %43 = vector.broadcast %8 : vector<1x2048xf32> to vector<8x2048xf32>
    %44 = vector.broadcast %33 : vector<8x1xf32> to vector<8x2048xf32>
    %45 = arith.minimumf %43, %44 : vector<8x2048xf32>
    %46 = vector.broadcast %6 : vector<1x2048xf32> to vector<8x2048xf32>
    %47 = vector.broadcast %29 : vector<8x1xf32> to vector<8x2048xf32>
    %48 = arith.maximumf %46, %47 : vector<8x2048xf32>
    %49 = arith.subf %45, %48 : vector<8x2048xf32>
    %cst_27 = arith.constant 1.000000e+00 : f32
    %50 = vector.broadcast %cst_27 : f32 to vector<8x2048xf32>
    %51 = arith.addf %49, %50 : vector<8x2048xf32>
    %cst_28 = arith.constant 0.000000e+00 : f32
    %52 = vector.broadcast %cst_28 : f32 to vector<8x2048xf32>
    %53 = arith.maximumf %51, %52 : vector<8x2048xf32>
    %54 = vector.broadcast %9 : vector<1x2048xf32> to vector<8x2048xf32>
    %55 = vector.broadcast %35 : vector<8x1xf32> to vector<8x2048xf32>
    %56 = arith.minimumf %54, %55 : vector<8x2048xf32>
    %57 = vector.broadcast %7 : vector<1x2048xf32> to vector<8x2048xf32>
    %58 = vector.broadcast %31 : vector<8x1xf32> to vector<8x2048xf32>
    %59 = arith.maximumf %57, %58 : vector<8x2048xf32>
    %60 = arith.subf %56, %59 : vector<8x2048xf32>
    %cst_29 = arith.constant 1.000000e+00 : f32
    %61 = vector.broadcast %cst_29 : f32 to vector<8x2048xf32>
    %62 = arith.addf %60, %61 : vector<8x2048xf32>
    %cst_30 = arith.constant 0.000000e+00 : f32
    %63 = vector.broadcast %cst_30 : f32 to vector<8x2048xf32>
    %64 = arith.maximumf %62, %63 : vector<8x2048xf32>
    %65 = arith.mulf %53, %64 : vector<8x2048xf32>
    %66 = vector.broadcast %14 : vector<1x2048xf32> to vector<8x2048xf32>
    %67 = vector.broadcast %42 : vector<8x1xf32> to vector<8x2048xf32>
    %68 = arith.addf %66, %67 : vector<8x2048xf32>
    %69 = arith.subf %68, %65 : vector<8x2048xf32>
    %70 = arith.divf %65, %69 : vector<8x2048xf32>
    %71 = tpu.iota {dimensions = array<i32: 0>} : vector<8x1xi32>
    %72 = vector.broadcast %5 : i32 to vector<8x1xi32>
    %73 = arith.cmpi slt, %71, %72 : vector<8x1xi32>
    %cst_31 = arith.constant -1.000000e+00 : f32
    %74 = vector.shape_cast %73 : vector<8x1xi1> to vector<8x1xi1>
    %75 = vector.broadcast %74 : vector<8x1xi1> to vector<8x2048xi1>
    %76 = vector.broadcast %cst_31 : f32 to vector<8x2048xf32>
    %77 = arith.select %75, %70, %76 : vector<8x2048xi1>, vector<8x2048xf32>
    %cst_32 = arith.constant dense<0xFF800000> : vector<2048xf32>
    %78 = vector.multi_reduction <maximumf>, %77, %cst_32 [0] : vector<8x2048xf32> to vector<2048xf32>
    %79 = vector.shape_cast %78 : vector<2048xf32> to vector<1x2048xf32>
    %80 = vector.broadcast %79 : vector<1x2048xf32> to vector<8x2048xf32>
    %81 = arith.cmpf oeq, %77, %80 : vector<8x2048xf32>
    %c8_i32 = arith.constant 8 : i32
    %82 = vector.shape_cast %71 : vector<8x1xi32> to vector<8x1xi32>
    %83 = vector.broadcast %82 : vector<8x1xi32> to vector<8x2048xi32>
    %84 = vector.broadcast %c8_i32 : i32 to vector<8x2048xi32>
    %85 = arith.select %81, %83, %84 : vector<8x2048xi1>, vector<8x2048xi32>
    %cst_33 = arith.constant dense<2147483647> : vector<2048xi32>
    %86 = vector.multi_reduction <minsi>, %85, %cst_33 [0] : vector<8x2048xi32> to vector<2048xi32>
    %87 = vector.shape_cast %86 : vector<2048xi32> to vector<1x2048xi32>
    %c2048_i32 = arith.constant 2048 : i32
    %88 = arith.muli %arg0, %c2048_i32 : i32
    %89 = tpu.iota {dimensions = array<i32: 1>} : vector<1x2048xi32>
    %90 = vector.broadcast %88 : i32 to vector<1x2048xi32>
    %91 = arith.addi %90, %89 : vector<1x2048xi32>
    %c0_34 = arith.constant 0 : index
    %c0_35 = arith.constant 0 : index
    %c0_36 = arith.constant 0 : index
    %92 = vector.load %arg7[%c0_34, %c0_35, %c0_36] : memref<1x8x1xi32, #tpu.memory_space<vmem>>, vector<1x8x1xi32>
    %93 = vector.shape_cast %92 : vector<1x8x1xi32> to vector<8x1xi32>
    %94 = vector.broadcast %91 : vector<1x2048xi32> to vector<8x2048xi32>
    %95 = vector.broadcast %93 : vector<8x1xi32> to vector<8x2048xi32>
    %96 = arith.cmpi eq, %94, %95 : vector<8x2048xi32>
    %97 = vector.broadcast %73 : vector<8x1xi1> to vector<8x2048xi1>
    %98 = arith.andi %96, %97 : vector<8x2048xi1>
    %c-1_i32 = arith.constant -1 : i32
    %99 = vector.shape_cast %71 : vector<8x1xi32> to vector<8x1xi32>
    %100 = vector.broadcast %99 : vector<8x1xi32> to vector<8x2048xi32>
    %101 = vector.broadcast %c-1_i32 : i32 to vector<8x2048xi32>
    %102 = arith.select %98, %100, %101 : vector<8x2048xi1>, vector<8x2048xi32>
    %cst_37 = arith.constant dense<-2147483648> : vector<2048xi32>
    %103 = vector.multi_reduction <maxsi>, %102, %cst_37 [0] : vector<8x2048xi32> to vector<2048xi32>
    %104 = vector.shape_cast %103 : vector<2048xi32> to vector<1x2048xi32>
    %c0_i32 = arith.constant 0 : i32
    %105 = vector.broadcast %c0_i32 : i32 to vector<1x2048xi32>
    %106 = arith.cmpi sge, %104, %105 : vector<1x2048xi32>
    %107 = arith.select %106, %104, %87 : vector<1x2048xi1>, vector<1x2048xi32>
    %cst_38 = arith.constant 2.000000e+00 : f32
    %108 = vector.broadcast %cst_38 : f32 to vector<1x2048xf32>
    %109 = arith.select %106, %108, %79 : vector<1x2048xi1>, vector<1x2048xf32>
    %110 = vector.broadcast %71 : vector<8x1xi32> to vector<8x2048xi32>
    %111 = vector.broadcast %107 : vector<1x2048xi32> to vector<8x2048xi32>
    %112 = arith.cmpi eq, %110, %111 : vector<8x2048xi32>
    %113 = arith.extui %112 : vector<8x2048xi1> to vector<8x2048xi32>
    %114 = arith.sitofp %113 : vector<8x2048xi32> to vector<8x2048xf32>
    %c0_39 = arith.constant 0 : index
    %c0_40 = arith.constant 0 : index
    %c0_41 = arith.constant 0 : index
    %115 = vector.load %arg6[%c0_39, %c0_40, %c0_41] : memref<1x8x8xf32, #tpu.memory_space<vmem>>, vector<1x8x8xf32>
    %116 = vector.shape_cast %115 : vector<1x8x8xf32> to vector<8x8xf32>
    %cst_42 = arith.constant dense<0.000000e+00> : vector<8x2048xf32>
    %117 = tpu.matmul %116, %114, %cst_42 {dimension_numbers = #tpu.dot_dimension_numbers<[1], [0], [0], [1], [0, 0, 1, 1], [], []>} : vector<8x8xf32>, vector<8x2048xf32>, vector<8x2048xf32> -> vector<8x2048xf32>
    %118 = vector.extract_strided_slice %117 {offsets = [0, 0], sizes = [1, 2048], strides = [1, 1]} : vector<8x2048xf32> to vector<1x2048xf32>
    %119 = vector.extract_strided_slice %117 {offsets = [1, 0], sizes = [1, 2048], strides = [1, 1]} : vector<8x2048xf32> to vector<1x2048xf32>
    %120 = vector.extract_strided_slice %117 {offsets = [2, 0], sizes = [1, 2048], strides = [1, 1]} : vector<8x2048xf32> to vector<1x2048xf32>
    %121 = vector.extract_strided_slice %117 {offsets = [3, 0], sizes = [1, 2048], strides = [1, 1]} : vector<8x2048xf32> to vector<1x2048xf32>
    %122 = vector.extract_strided_slice %117 {offsets = [4, 0], sizes = [1, 2048], strides = [1, 1]} : vector<8x2048xf32> to vector<1x2048xf32>
    %cst_43 = arith.constant 5.000000e-01 : f32
    %123 = vector.broadcast %cst_43 : f32 to vector<1x2048xf32>
    %124 = arith.cmpf olt, %109, %123 : vector<1x2048xf32>
    %cst_44 = arith.constant 0.000000e+00 : f32
    %125 = vector.broadcast %cst_44 : f32 to vector<1x2048xf32>
    %126 = arith.select %124, %125, %122 : vector<1x2048xi1>, vector<1x2048xf32>
    %cst_45 = arith.constant 4.000000e-01 : f32
    %127 = vector.broadcast %cst_45 : f32 to vector<1x2048xf32>
    %128 = arith.cmpf ogt, %109, %127 : vector<1x2048xf32>
    %129 = arith.andi %124, %128 : vector<1x2048xi1>
    %cst_46 = arith.constant -1.000000e+00 : f32
    %130 = vector.broadcast %cst_46 : f32 to vector<1x2048xf32>
    %131 = arith.select %129, %130, %126 : vector<1x2048xi1>, vector<1x2048xf32>
    %cst_47 = arith.constant 0.000000e+00 : f32
    %132 = vector.broadcast %cst_47 : f32 to vector<1x2048xf32>
    %133 = arith.select %27, %131, %132 : vector<1x2048xi1>, vector<1x2048xf32>
    %134 = arith.subf %120, %118 : vector<1x2048xf32>
    %cst_48 = arith.constant 1.000000e+00 : f32
    %135 = vector.broadcast %cst_48 : f32 to vector<1x2048xf32>
    %136 = arith.addf %134, %135 : vector<1x2048xf32>
    %137 = arith.subf %121, %119 : vector<1x2048xf32>
    %cst_49 = arith.constant 1.000000e+00 : f32
    %138 = vector.broadcast %cst_49 : f32 to vector<1x2048xf32>
    %139 = arith.addf %137, %138 : vector<1x2048xf32>
    %cst_50 = arith.constant 5.000000e-01 : f32
    %140 = vector.broadcast %cst_50 : f32 to vector<1x2048xf32>
    %141 = arith.mulf %140, %136 : vector<1x2048xf32>
    %142 = arith.addf %118, %141 : vector<1x2048xf32>
    %cst_51 = arith.constant 5.000000e-01 : f32
    %143 = vector.broadcast %cst_51 : f32 to vector<1x2048xf32>
    %144 = arith.mulf %143, %139 : vector<1x2048xf32>
    %145 = arith.addf %119, %144 : vector<1x2048xf32>
    %146 = arith.subf %142, %12 : vector<1x2048xf32>
    %147 = arith.divf %146, %10 : vector<1x2048xf32>
    %cst_52 = arith.constant 0.000000e+00 : f32
    %148 = vector.broadcast %cst_52 : f32 to vector<1x2048xf32>
    %149 = arith.subf %147, %148 : vector<1x2048xf32>
    %cst_53 = arith.constant 1.000000e-01 : f32
    %150 = vector.broadcast %cst_53 : f32 to vector<1x2048xf32>
    %151 = arith.divf %149, %150 : vector<1x2048xf32>
    %152 = arith.subf %145, %13 : vector<1x2048xf32>
    %153 = arith.divf %152, %11 : vector<1x2048xf32>
    %cst_54 = arith.constant 0.000000e+00 : f32
    %154 = vector.broadcast %cst_54 : f32 to vector<1x2048xf32>
    %155 = arith.subf %153, %154 : vector<1x2048xf32>
    %cst_55 = arith.constant 1.000000e-01 : f32
    %156 = vector.broadcast %cst_55 : f32 to vector<1x2048xf32>
    %157 = arith.divf %155, %156 : vector<1x2048xf32>
    %158 = arith.divf %136, %10 : vector<1x2048xf32>
    %159 = math.log %158 : vector<1x2048xf32>
    %cst_56 = arith.constant 0.000000e+00 : f32
    %160 = vector.broadcast %cst_56 : f32 to vector<1x2048xf32>
    %161 = arith.subf %159, %160 : vector<1x2048xf32>
    %cst_57 = arith.constant 2.000000e-01 : f32
    %162 = vector.broadcast %cst_57 : f32 to vector<1x2048xf32>
    %163 = arith.divf %161, %162 : vector<1x2048xf32>
    %164 = arith.divf %139, %11 : vector<1x2048xf32>
    %165 = math.log %164 : vector<1x2048xf32>
    %cst_58 = arith.constant 0.000000e+00 : f32
    %166 = vector.broadcast %cst_58 : f32 to vector<1x2048xf32>
    %167 = arith.subf %165, %166 : vector<1x2048xf32>
    %cst_59 = arith.constant 2.000000e-01 : f32
    %168 = vector.broadcast %cst_59 : f32 to vector<1x2048xf32>
    %169 = arith.divf %167, %168 : vector<1x2048xf32>
    %cst_60 = arith.constant -1.000000e+00 : f32
    %170 = vector.broadcast %cst_60 : f32 to vector<1x2048xf32>
    %171 = arith.select %27, %151, %170 : vector<1x2048xi1>, vector<1x2048xf32>
    %c0_61 = arith.constant 0 : index
    %c0_62 = arith.constant 0 : index
    %c0_63 = arith.constant 0 : index
    %172 = vector.load %arg8[%c0_61, %c0_62, %c0_63] : memref<1x5x2048xf32, #tpu.memory_space<vmem>>, vector<1x1x2048xf32>
    %173 = vector.shape_cast %172 : vector<1x1x2048xf32> to vector<1x2048xf32>
    %174 = vector.shape_cast %171 : vector<1x2048xf32> to vector<1x1x2048xf32>
    tpu.vector_store %arg8[%c0_61, %c0_62, %c0_63], %174 {strides = array<i32>} : memref<1x5x2048xf32, #tpu.memory_space<vmem>>, vector<1x1x2048xf32>,
    %cst_64 = arith.constant -1.000000e+00 : f32
    %175 = vector.broadcast %cst_64 : f32 to vector<1x2048xf32>
    %176 = arith.select %27, %157, %175 : vector<1x2048xi1>, vector<1x2048xf32>
    %c0_65 = arith.constant 0 : index
    %c1_66 = arith.constant 1 : index
    %c0_67 = arith.constant 0 : index
    %177 = vector.load %arg8[%c0_65, %c1_66, %c0_67] : memref<1x5x2048xf32, #tpu.memory_space<vmem>>, vector<1x1x2048xf32>
    %178 = vector.shape_cast %177 : vector<1x1x2048xf32> to vector<1x2048xf32>
    %179 = vector.shape_cast %176 : vector<1x2048xf32> to vector<1x1x2048xf32>
    tpu.vector_store %arg8[%c0_65, %c1_66, %c0_67], %179 {strides = array<i32>} : memref<1x5x2048xf32, #tpu.memory_space<vmem>>, vector<1x1x2048xf32>,
    %cst_68 = arith.constant -1.000000e+00 : f32
    %180 = vector.broadcast %cst_68 : f32 to vector<1x2048xf32>
    %181 = arith.select %27, %163, %180 : vector<1x2048xi1>, vector<1x2048xf32>
    %c0_69 = arith.constant 0 : index
    %c2_70 = arith.constant 2 : index
    %c0_71 = arith.constant 0 : index
    %182 = vector.load %arg8[%c0_69, %c2_70, %c0_71] : memref<1x5x2048xf32, #tpu.memory_space<vmem>>, vector<1x1x2048xf32>
    %183 = vector.shape_cast %182 : vector<1x1x2048xf32> to vector<1x2048xf32>
    %184 = vector.shape_cast %181 : vector<1x2048xf32> to vector<1x1x2048xf32>
    tpu.vector_store %arg8[%c0_69, %c2_70, %c0_71], %184 {strides = array<i32>} : memref<1x5x2048xf32, #tpu.memory_space<vmem>>, vector<1x1x2048xf32>,
    %cst_72 = arith.constant -1.000000e+00 : f32
    %185 = vector.broadcast %cst_72 : f32 to vector<1x2048xf32>
    %186 = arith.select %27, %169, %185 : vector<1x2048xi1>, vector<1x2048xf32>
    %c0_73 = arith.constant 0 : index
    %c3_74 = arith.constant 3 : index
    %c0_75 = arith.constant 0 : index
    %187 = vector.load %arg8[%c0_73, %c3_74, %c0_75] : memref<1x5x2048xf32, #tpu.memory_space<vmem>>, vector<1x1x2048xf32>
    %188 = vector.shape_cast %187 : vector<1x1x2048xf32> to vector<1x2048xf32>
    %189 = vector.shape_cast %186 : vector<1x2048xf32> to vector<1x1x2048xf32>
    tpu.vector_store %arg8[%c0_73, %c3_74, %c0_75], %189 {strides = array<i32>} : memref<1x5x2048xf32, #tpu.memory_space<vmem>>, vector<1x1x2048xf32>,
    %c0_76 = arith.constant 0 : index
    %c4_77 = arith.constant 4 : index
    %c0_78 = arith.constant 0 : index
    %190 = vector.load %arg8[%c0_76, %c4_77, %c0_78] : memref<1x5x2048xf32, #tpu.memory_space<vmem>>, vector<1x1x2048xf32>
    %191 = vector.shape_cast %190 : vector<1x1x2048xf32> to vector<1x2048xf32>
    %192 = vector.shape_cast %133 : vector<1x2048xf32> to vector<1x1x2048xf32>
    tpu.vector_store %arg8[%c0_76, %c4_77, %c0_78], %192 {strides = array<i32>} : memref<1x5x2048xf32, #tpu.memory_space<vmem>>, vector<1x1x2048xf32>,
    return
  }
  func.func @transform_0(%arg0: i32, %arg1: i32, %arg2: memref<2xi32, #tpu.memory_space<smem>>, %arg3: memref<2xi32, #tpu.memory_space<smem>>) -> (i32, i32) {
    %c0_i32 = arith.constant 0 : i32
    %c0_i32_0 = arith.constant 0 : i32
    return %c0_i32, %arg0 : i32, i32
  }
  func.func @transform_1(%arg0: i32, %arg1: i32, %arg2: memref<2xi32, #tpu.memory_space<smem>>, %arg3: memref<2xi32, #tpu.memory_space<smem>>) -> (i32, i32, i32) {
    %c0_i32 = arith.constant 0 : i32
    %c0_i32_0 = arith.constant 0 : i32
    %c0_i32_1 = arith.constant 0 : i32
    return %arg1, %c0_i32, %c0_i32_0 : i32, i32, i32
  }
  func.func @transform_2(%arg0: i32, %arg1: i32, %arg2: memref<2xi32, #tpu.memory_space<smem>>, %arg3: memref<2xi32, #tpu.memory_space<smem>>) -> (i32, i32, i32) {
    %c0_i32 = arith.constant 0 : i32
    %c0_i32_0 = arith.constant 0 : i32
    %c0_i32_1 = arith.constant 0 : i32
    return %arg1, %c0_i32, %c0_i32_0 : i32, i32, i32
  }
  func.func @transform_3(%arg0: i32, %arg1: i32, %arg2: memref<2xi32, #tpu.memory_space<smem>>, %arg3: memref<2xi32, #tpu.memory_space<smem>>) -> (i32, i32, i32) {
    %c0_i32 = arith.constant 0 : i32
    %c0_i32_0 = arith.constant 0 : i32
    %c0_i32_1 = arith.constant 0 : i32
    return %arg1, %c0_i32, %c0_i32_0 : i32, i32, i32
  }
  func.func @transform_4(%arg0: i32, %arg1: i32, %arg2: memref<2xi32, #tpu.memory_space<smem>>, %arg3: memref<2xi32, #tpu.memory_space<smem>>) -> (i32, i32, i32) {
    %c0_i32 = arith.constant 0 : i32
    %c0_i32_0 = arith.constant 0 : i32
    return %arg1, %c0_i32, %arg0 : i32, i32, i32
  }
}

</mosaic_0001>

<llo_original>
// kernel: build_target_layer.2
$region0: #{build_target_layer.2}
  #allocation0 [shape = 'u32[]', space=smem, size = 0x4, offset = 0x4, fixed_abs, tag = 'smem constant byte address 0x4 - core index']
  #allocation1 [shape = 'u32[144,128]{1,0:T(1,128)}', space=vmem, size = 0x12000, scoped, tag = 'internal scratch']
  #allocation2 [shape = 'f32[8,1]{1,0:T(8,128)}', space=vmem, size = 0x1000, scoped, tag = 'scratch operand']
  #allocation3 [shape = 's32[8,1]{1,0:T(8,128)}', space=vmem, size = 0x1000, scoped, tag = 'scratch operand']
  #allocation4 [shape = 's32[1]{0}', space=sflag, size = 0x4, scoped, tag = 'scoped memory for build_target_layer.2']
  #allocation5 [shape = 'u8[512]{0}', space=smem, size = 0x200, scoped, tag = 'prefetched SMEM operand 0']
  #allocation6 [shape = 'u8[512]{0}', space=smem, size = 0x200, scoped, tag = 'prefetched SMEM operand 1']
  %s0 = inlined_call_operand.vmem [shape: s32[2], index: 0, kind: input, shape index: {}]
  %s1 = inlined_call_operand.vmem [shape: s32[2], index: 1, kind: input, shape index: {}]
  %s2 = inlined_call_operand.vmem [shape: f32[8,8192], index: 2, kind: input, shape index: {}]
  %s3 = inlined_call_operand.vmem [shape: f32[2,8,5], index: 3, kind: input, shape index: {}]
  %s4 = inlined_call_operand.vmem [shape: f32[2,2,8,1], index: 4, kind: output, shape index: {0}]
  %s5 = inlined_call_operand.vmem [shape: s32[2,2,8,1], index: 5, kind: output, shape index: {1}]
  %6 = xla_tuple %s4, %s5
  %s7 = sld [smem:[#allocation0]]
  $region57: #{build_target_layer.2} parent=0
    _
  %s9 = ssub.s32 1, %s7
  %s10 = scalar_select 0, %s9, %s7
  %s11 = sshll.u32 %s0, 4
  %s12 = int_to_ptr.vmem [resolvable:$true] %s11
  %14 = dma.vmem_to_smem %s12, 16, [#allocation5], [#allocation4]
  %s15 = sshll.u32 %s1, 4
  %s16 = int_to_ptr.vmem [resolvable:$true] %s15
  %18 = dma.vmem_to_smem %s16, 16, [#allocation6], [#allocation4]
  %19 = dma.done [#allocation4], 32
  %20 = sfence
  loop: start=0, step=1, limit=10
  $region2: #{build_target_layer.2} parent=0 // loop_pre_header
    _
  $region3: #{build_target_layer.2} parent=0 // loop_header
    %s22 = sphi 0, %s26
    %p23 = scmp.ge.s32.totalorder %s22, 10
    %s29 = sphi 0, %s48
    %s30 = sphi 0, %s44
    %s31 = sphi 0, %s40
    %s32 = sphi 0, %s29
    %s33 = sphi 0, %s30
    %s34 = sphi 0, %s31
    %s35 = sphi 0, %s32
    %s36 = sphi 0, %s33
    %s37 = sphi 0, %s34
    %s55 = sphi 0, %s57
    %s58 = sphi 0, %s55
    %s59 = sphi 0, %s58
    %s75 = sphi 0, %s59
    %s81 = sphi 0, %s83
    %s84 = sphi 0, %s81
    %s85 = sphi 0, %s84
    %s101 = sphi 0, %s85
    %s109 = sphi 0, %s111
    %s112 = sphi 0, %s109
    %s113 = sphi 0, %s112
    %s129 = sphi 0, %s113
    %s137 = sphi 0, %s139
    %s140 = sphi 0, %s137
    %s141 = sphi 0, %s140
    %s157 = sphi 0, %s141
  $region4: #{build_target_layer.2} parent=0 // loop_header_branch
    %25 = sbr.rel (%p23) target = $region8
  $region5: #{build_target_layer.2} parent=0 // loop_body
    %s27 = ssub.s32 %s22, 1
    %s28 = ssub.s32 %s22, 2
    %s38 = sadd.s32 1, %s31
    %p39 = scmp.ge.s32.totalorder %s38, 2
    %s40 = scalar_select %p39, 0, %s38
    %s41 = sadd.s32 1, %s30
    %s42 = scalar_select %p39, %s41, %s30
    %p43 = scmp.ge.s32.totalorder %s42, 2
    %s44 = scalar_select %p43, 0, %s42
    %s45 = sadd.s32 1, %s29
    %s46 = scalar_select %p43, %s45, %s29
    %p47 = scmp.ge.s32.totalorder %s46, 2
    %s48 = scalar_select %p47, 0, %s46
    %s49 = smul.u32 %s30, 2
    %s50 = sadd.s32 %s49, %s31
    %s51 = smul.u32 %s44, 2
    %s52 = sadd.s32 %s51, %s40
    %s53 = ssub.s32 %s50, %s52
    %p54 = scmp.eq.s32.totalorder %s53, 0
    %s56 = sadd.s32 %s55, 1
    %s57 = scalar_select %p54, %s55, %s56
    %p60 = pneg %p54
    %p61 = scmp.eq.s32.totalorder %s22, 7
    %p62 = por %p60, %p61
    %p63 = scmp.ne.s32.totalorder %s55, %s58
    %p64 = scmp.eq.s32.totalorder %s22, 0
    %p65 = por %p63, %p64
    %p66 = scmp.ne.s32.totalorder %s55, %s58
    %p67 = scmp.eq.s32.totalorder %s27, 7
    %p68 = por %p66, %p67
    %p69 = scmp.ne.s32.totalorder %s58, %s59
    %p70 = scmp.eq.s32.totalorder %s27, 0
    %p71 = por %p69, %p70
    %p72 = scmp.ne.s32.totalorder %s58, %s59
    %p73 = scmp.eq.s32.totalorder %s28, 7
    %p74 = por %p72, %p73
    %p76 = scmp.ne.s32.totalorder %s59, %s75
    %p77 = scmp.eq.s32.totalorder %s28, 0
    %p78 = por %p76, %p77
    %s79 = ssub.s32 %s29, %s48
    %p80 = scmp.eq.s32.totalorder %s79, 0
    %s82 = sadd.s32 %s81, 1
    %s83 = scalar_select %p80, %s81, %s82
    %p86 = pneg %p80
    %p87 = scmp.eq.s32.totalorder %s22, 7
    %p88 = por %p86, %p87
    %p89 = scmp.ne.s32.totalorder %s81, %s84
    %p90 = scmp.eq.s32.totalorder %s22, 0
    %p91 = por %p89, %p90
    %p92 = scmp.ne.s32.totalorder %s81, %s84
    %p93 = scmp.eq.s32.totalorder %s27, 7
    %p94 = por %p92, %p93
    %p95 = scmp.ne.s32.totalorder %s84, %s85
    %p96 = scmp.eq.s32.totalorder %s27, 0
    %p97 = por %p95, %p96
    %p98 = scmp.ne.s32.totalorder %s84, %s85
    %p99 = scmp.eq.s32.totalorder %s28, 7
    %p100 = por %p98, %p99
    %p102 = scmp.ne.s32.totalorder %s85, %s101
    %p103 = scmp.eq.s32.totalorder %s28, 0
    %p104 = por %p102, %p103
    %s105 = ssub.s32 %s29, %s48
    %s106 = ssub.s32 %s30, %s44
    %s107 = sor.u32 %s105, %s106
    %p108 = scmp.eq.s32.totalorder %s107, 0
    %s110 = sadd.s32 %s109, 1
    %s111 = scalar_select %p108, %s109, %s110
    %p114 = pneg %p108
    %p115 = scmp.eq.s32.totalorder %s22, 7
    %p116 = por %p114, %p115
    %p117 = scmp.ne.s32.totalorder %s109, %s112
    %p118 = scmp.eq.s32.totalorder %s22, 0
    %p119 = por %p117, %p118
    %p120 = scmp.ne.s32.totalorder %s109, %s112
    %p121 = scmp.eq.s32.totalorder %s27, 7
    %p122 = por %p120, %p121
    %p123 = scmp.ne.s32.totalorder %s112, %s113
    %p124 = scmp.eq.s32.totalorder %s27, 0
    %p125 = por %p123, %p124
    %p126 = scmp.ne.s32.totalorder %s112, %s113
    %p127 = scmp.eq.s32.totalorder %s28, 7
    %p128 = por %p126, %p127
    %p130 = scmp.ne.s32.totalorder %s113, %s129
    %p131 = scmp.eq.s32.totalorder %s28, 0
    %p132 = por %p130, %p131
    %s133 = ssub.s32 %s29, %s48
    %s134 = ssub.s32 %s30, %s44
    %s135 = sor.u32 %s133, %s134
    %p136 = scmp.eq.s32.totalorder %s135, 0
    %s138 = sadd.s32 %s137, 1
    %s139 = scalar_select %p136, %s137, %s138
    %p142 = pneg %p136
    %p143 = scmp.eq.s32.totalorder %s22, 7
    %p144 = por %p142, %p143
    %p145 = scmp.ne.s32.totalorder %s137, %s140
    %p146 = scmp.eq.s32.totalorder %s22, 0
    %p147 = por %p145, %p146
    %p148 = scmp.ne.s32.totalorder %s137, %s140
    %p149 = scmp.eq.s32.totalorder %s27, 7
    %p150 = por %p148, %p149
    %p151 = scmp.ne.s32.totalorder %s140, %s141
    %p152 = scmp.eq.s32.totalorder %s27, 0
    %p153 = por %p151, %p152
    %p154 = scmp.ne.s32.totalorder %s140, %s141
    %p155 = scmp.eq.s32.totalorder %s28, 7
    %p156 = por %p154, %p155
    %p158 = scmp.ne.s32.totalorder %s141, %s157
    %p159 = scmp.eq.s32.totalorder %s28, 0
    %p160 = por %p158, %p159
    %p161 = scmp.le.s32.totalorder 1, %s22
    %p162 = scmp.lt.s32.totalorder %s22, 9
    %p163 = pnand %p161, %p162
    %p164 = pneg %p163
    // Predicated region
    $region9: #{build_target_layer.2} parent=5 // pred_check
      _
    $region10: #{build_target_layer.2} parent=5 // pred_check_branch
      %166 = sbr.rel (%p163) target = $region12
    $region11: #{build_target_layer.2} parent=5 // pred_region
      %s167 = ssub.s32 %s22, 1
    $region12: #{build_target_layer.2} parent=5 // pred_fallthru
      _
    %p168 = scmp.lt.s32.totalorder %s22, 8
    // Predicated region
    $region13: #{build_target_layer.2} parent=5 // pred_check
      %p169 = pneg %p168
    $region14: #{build_target_layer.2} parent=5 // pred_check_branch
      %171 = sbr.rel (%p169) target = $region16
    $region15: #{build_target_layer.2} parent=5 // pred_region
      // Predicated region
      $region17: #{build_target_layer.2} parent=15 // pred_check
        %p172 = pneg %p65
      $region18: #{build_target_layer.2} parent=15 // pred_check_branch
        %174 = sbr.rel (%p172) target = $region20
      $region19: #{build_target_layer.2} parent=15 // pred_region
        %s175 = smul.u32 %s30, 2
        %s176 = sadd.s32 %s175, %s31
        %s177 = smul.u32 16, %s176
        %p178 = scmp.lt.s32.totalorder %s177, 63
        %s179 = scalar_select %p178, %s177, 63
        %s180 = smul.addr %s179, 8
        %s181 = scalar_lea.vmem %s2, %s180
        %s182 = smul.u32 %s30, 2
        %s183 = sadd.s32 %s182, %s31
        %s184 = smul.u32 16, %s183
      $region20: #{build_target_layer.2} parent=15 // pred_fallthru
        _
      // Predicated region
      $region21: #{build_target_layer.2} parent=15 // pred_check
        %p185 = pneg %p91
      $region22: #{build_target_layer.2} parent=15 // pred_check_branch
        %187 = sbr.rel (%p185) target = $region24
      $region23: #{build_target_layer.2} parent=15 // pred_region
        %p188 = scmp.lt.s32.totalorder %s29, 1
        %s189 = scalar_select %p188, %s29, 1
        %s190 = smul.addr %s189, 8
        %s191 = scalar_lea.vmem %s3, %s190
      $region24: #{build_target_layer.2} parent=15 // pred_fallthru
        _
    $region16: #{build_target_layer.2} parent=5 // pred_fallthru
      _
    %p192 = scmp.le.s32.totalorder 1, %s22
    %p193 = scmp.lt.s32.totalorder %s22, 9
    %p194 = pnand %p192, %p193
    %p195 = pneg %p194
    // Predicated region
    $region25: #{build_target_layer.2} parent=5 // pred_check
      _
    $region26: #{build_target_layer.2} parent=5 // pred_check_branch
      %197 = sbr.rel (%p194) target = $region28
    $region27: #{build_target_layer.2} parent=5 // pred_region
      %s198 = ssub.s32 %s22, 1
      %s199 = smul.u32 %s33, 2
      %s200 = sadd.s32 %s199, %s34
      %s201 = smul.u32 16, %s200
      %p202 = scmp.lt.s32.totalorder %s201, 63
      %s203 = scalar_select %p202, %s201, 63
      %s204 = smul.addr %s203, 8
      %s205 = scalar_lea.vmem %s2, %s204
      %p206 = pneg %p71
      %p207 = pneg %p68
      %p208 = scmp.lt.s32.totalorder %s32, 1
      %s209 = scalar_select %p208, %s32, 1
      %s210 = smul.addr %s209, 8
      %s211 = scalar_lea.vmem %s3, %s210
      %p212 = pneg %p97
      %p213 = pneg %p94
      %p214 = pneg %p125
      %p215 = pneg %p122
      %p216 = scmp.lt.s32.totalorder %s32, 1
      %s217 = scalar_select %p216, %s32, 1
      %p218 = scmp.lt.s32.totalorder %s33, 1
      %s219 = scalar_select %p218, %s33, 1
      %s220 = smul.addr %s217, 2
      %s221 = sadd.s32 %s219, %s220
      %s222 = smul.addr %s221, 8
      %s223 = scalar_lea.vmem %s4, %s222
      %p224 = pneg %p153
      %p225 = pneg %p150
      %p226 = scmp.lt.s32.totalorder %s32, 1
      %s227 = scalar_select %p226, %s32, 1
      %p228 = scmp.lt.s32.totalorder %s33, 1
      %s229 = scalar_select %p228, %s33, 1
      %s230 = smul.addr %s227, 2
      %s231 = sadd.s32 %s229, %s230
      %s232 = smul.addr %s231, 8
      %s233 = scalar_lea.vmem %s5, %s232
      %s234 = smul.u32 %s33, 2
      %s235 = sadd.s32 %s234, %s34
      %s236 = smul.u32 16, %s235
      %p237 = scmp.lt.s32.totalorder %s236, 63
      %s238 = scalar_select %p237, %s236, 63
      %s239 = smul.addr %s238, 8
      %s240 = scalar_lea.vmem %s2, %s239
      %s241 = smul.u32 %s33, 2
      %s242 = sadd.s32 %s241, %s34
      %s243 = smul.u32 16, %s242
      %p244 = scmp.lt.s32.totalorder %s32, 1
      %s245 = scalar_select %p244, %s32, 1
      %s246 = smul.addr %s245, 8
      %s247 = scalar_lea.vmem %s3, %s246
      %p248 = scmp.lt.s32.totalorder %s32, 1
      %s249 = scalar_select %p248, %s32, 1
      %p250 = scmp.lt.s32.totalorder %s33, 1
      %s251 = scalar_select %p250, %s33, 1
      %s252 = smul.addr %s249, 2
      %s253 = sadd.s32 %s251, %s252
      %s254 = smul.addr %s253, 8
      %s255 = scalar_lea.vmem %s4, %s254
      %p256 = scmp.lt.s32.totalorder %s32, 1
      %s257 = scalar_select %p256, %s32, 1
      %p258 = scmp.lt.s32.totalorder %s33, 1
      %s259 = scalar_select %p258, %s33, 1
      %s260 = smul.addr %s257, 2
      %s261 = sadd.s32 %s259, %s260
      %s262 = smul.addr %s261, 8
      %s263 = scalar_lea.vmem %s5, %s262
      %s264 = sld [smem:[#allocation6]]
      %s265 = scvt.s32.f32 %s264
      %s266 = sld [smem:[#allocation6 + $0x1]]
      %s267 = scvt.s32.f32 %s266
      %v268 = vld [vmem:[%s240] ss:$8 sm:$0xf]
      %v269 = vld [vmem:[%s240] ss:$8 sm:$0xf0]
      %v270 = vor.u32 %v268, %v269
      %s271 = scalar_lea.vmem %s240, 64
      %v272 = vld [vmem:[%s271] ss:$8 sm:$0xf]
      %v273 = vld [vmem:[%s271] ss:$8 sm:$0xf0]
      %v274 = vor.u32 %v272, %v273
      %s275 = scalar_lea.vmem %s240, 1
      %v276 = vld [vmem:[%s275] ss:$8 sm:$0xf]
      %v277 = vld [vmem:[%s275] ss:$8 sm:$0xf0]
      %v278 = vor.u32 %v276, %v277
      %s279 = scalar_lea.vmem %s240, 65
      %v280 = vld [vmem:[%s279] ss:$8 sm:$0xf]
      %v281 = vld [vmem:[%s279] ss:$8 sm:$0xf0]
      %v282 = vor.u32 %v280, %v281
      %s283 = scalar_lea.vmem %s240, 2
      %v284 = vld [vmem:[%s283] ss:$8 sm:$0xf]
      %v285 = vld [vmem:[%s283] ss:$8 sm:$0xf0]
      %v286 = vor.u32 %v284, %v285
      %s287 = scalar_lea.vmem %s240, 66
      %v288 = vld [vmem:[%s287] ss:$8 sm:$0xf]
      %v289 = vld [vmem:[%s287] ss:$8 sm:$0xf0]
      %v290 = vor.u32 %v288, %v289
      %s291 = scalar_lea.vmem %s240, 3
      %v292 = vld [vmem:[%s291] ss:$8 sm:$0xf]
      %v293 = vld [vmem:[%s291] ss:$8 sm:$0xf0]
      %v294 = vor.u32 %v292, %v293
      %s295 = scalar_lea.vmem %s240, 67
      %v296 = vld [vmem:[%s295] ss:$8 sm:$0xf]
      %v297 = vld [vmem:[%s295] ss:$8 sm:$0xf0]
      %v298 = vor.u32 %v296, %v297
      %s299 = scalar_lea.vmem %s240, 4
      %v300 = vld [vmem:[%s299] ss:$8 sm:$0xf]
      %v301 = vld [vmem:[%s299] ss:$8 sm:$0xf0]
      %v302 = vor.u32 %v300, %v301
      %s303 = scalar_lea.vmem %s240, 68
      %v304 = vld [vmem:[%s303] ss:$8 sm:$0xf]
      %v305 = vld [vmem:[%s303] ss:$8 sm:$0xf0]
      %v306 = vor.u32 %v304, %v305
      %s307 = scalar_lea.vmem %s240, 5
      %v308 = vld [vmem:[%s307] ss:$8 sm:$0xf]
      %v309 = vld [vmem:[%s307] ss:$8 sm:$0xf0]
      %v310 = vor.u32 %v308, %v309
      %s311 = scalar_lea.vmem %s240, 69
      %v312 = vld [vmem:[%s311] ss:$8 sm:$0xf]
      %v313 = vld [vmem:[%s311] ss:$8 sm:$0xf0]
      %v314 = vor.u32 %v312, %v313
      %v315 = vmul.f32 %v302, %v310
      %v316 = vmul.f32 %v306, %v314
      %vm317 = vcmp.ge.f32.partialorder %v270, -0.0
      %vm318 = vcmp.ge.f32.partialorder %v274, -0.0
      %vm319 = vcmp.ge.f32.partialorder %v278, -0.0
      %vm320 = vcmp.ge.f32.partialorder %v282, -0.0
      %vm321 = vmand %vm317, %vm319
      %vm322 = vmand %vm318, %vm320
      %s323 = sadd.f32 %s267, 0.0
      %v324 = vstv %s323
      %vm325 = vcmp.lt.f32.partialorder %v286, %v324
      %vm326 = vcmp.lt.f32.partialorder %v290, %v324
      %vm327 = vmand %vm321, %vm325
      %vm328 = vmand %vm322, %vm326
      %s329 = sadd.f32 %s265, 0.0
      %v330 = vstv %s329
      %vm331 = vcmp.lt.f32.partialorder %v294, %v330
      %vm332 = vcmp.lt.f32.partialorder %v298, %v330
      %vm333 = vmand %vm327, %vm331
      %vm334 = vmand %vm328, %vm332
      %v335 = vld [vmem:[%s247] sm:$0xff]
      %337 = vrot.lane.b32.xlu0 %v335, 2
      %v338 = vpop.permute.xlu0 %337
      %v340 = vsub.f32 %v335, %v338
      %v341 = vadd.f32 %v340, 1.0
      %343 = vrot.lane.b32.xlu0 %v341, 127
      %v344 = vpop.permute.xlu0 %343
      %v346 = vmul.f32 %v341, %v344
      %v349 = vlaneseq
      %v350 = vshrl.u32 %v349, 7
      %v351 = vsub.s32 0, %v350
      %v352 = vrot.slane %v286, %v351
      %v353 = vlaneseq
      %v354 = vshrl.u32 %v353, 7
      %v355 = vsub.s32 1, %v354
      %v356 = vrot.slane %v286, %v355
      %v357 = vlaneseq
      %v358 = vshrl.u32 %v357, 7
      %v359 = vsub.s32 2, %v358
      %v360 = vrot.slane %v286, %v359
      %v361 = vlaneseq
      %v362 = vshrl.u32 %v361, 7
      %v363 = vsub.s32 3, %v362
      %v364 = vrot.slane %v286, %v363
      %v365 = vlaneseq
      %v366 = vshrl.u32 %v365, 7
      %v367 = vsub.s32 4, %v366
      %v368 = vrot.slane %v286, %v367
      %v369 = vlaneseq
      %v370 = vshrl.u32 %v369, 7
      %v371 = vsub.s32 5, %v370
      %v372 = vrot.slane %v286, %v371
      %v373 = vlaneseq
      %v374 = vshrl.u32 %v373, 7
      %v375 = vsub.s32 6, %v374
      %v376 = vrot.slane %v286, %v375
      %v377 = vlaneseq
      %v378 = vshrl.u32 %v377, 7
      %v379 = vsub.s32 7, %v378
      %v380 = vrot.slane %v286, %v379
      %v381 = vlaneseq
      %v382 = vshrl.u32 %v381, 7
      %v383 = vsub.s32 0, %v382
      %v384 = vrot.slane %v290, %v383
      %v385 = vlaneseq
      %v386 = vshrl.u32 %v385, 7
      %v387 = vsub.s32 1, %v386
      %v388 = vrot.slane %v290, %v387
      %v389 = vlaneseq
      %v390 = vshrl.u32 %v389, 7
      %v391 = vsub.s32 2, %v390
      %v392 = vrot.slane %v290, %v391
      %v393 = vlaneseq
      %v394 = vshrl.u32 %v393, 7
      %v395 = vsub.s32 3, %v394
      %v396 = vrot.slane %v290, %v395
      %v397 = vlaneseq
      %v398 = vshrl.u32 %v397, 7
      %v399 = vsub.s32 4, %v398
      %v400 = vrot.slane %v290, %v399
      %v401 = vlaneseq
      %v402 = vshrl.u32 %v401, 7
      %v403 = vsub.s32 5, %v402
      %v404 = vrot.slane %v290, %v403
      %v405 = vlaneseq
      %v406 = vshrl.u32 %v405, 7
      %v407 = vsub.s32 6, %v406
      %v408 = vrot.slane %v290, %v407
      %v409 = vlaneseq
      %v410 = vshrl.u32 %v409, 7
      %v411 = vsub.s32 7, %v410
      %v412 = vrot.slane %v290, %v411
      %429 = vset.pattern.permute.xlu0 2
      %430 = vperm.xlu0 %429, %v335
      %v431 = vpop.permute.xlu0 %430
      %v433 = vmin.f32 %v352, %v431
      %v434 = vmin.f32 %v356, %v431
      %v435 = vmin.f32 %v360, %v431
      %v436 = vmin.f32 %v364, %v431
      %v437 = vmin.f32 %v368, %v431
      %v438 = vmin.f32 %v372, %v431
      %v439 = vmin.f32 %v376, %v431
      %v440 = vmin.f32 %v380, %v431
      %v441 = vmin.f32 %v384, %v431
      %v442 = vmin.f32 %v388, %v431
      %v443 = vmin.f32 %v392, %v431
      %v444 = vmin.f32 %v396, %v431
      %v445 = vmin.f32 %v400, %v431
      %v446 = vmin.f32 %v404, %v431
      %v447 = vmin.f32 %v408, %v431
      %v448 = vmin.f32 %v412, %v431
      %v451 = vlaneseq
      %v452 = vshrl.u32 %v451, 7
      %v453 = vsub.s32 0, %v452
      %v454 = vrot.slane %v270, %v453
      %v455 = vlaneseq
      %v456 = vshrl.u32 %v455, 7
      %v457 = vsub.s32 1, %v456
      %v458 = vrot.slane %v270, %v457
      %v459 = vlaneseq
      %v460 = vshrl.u32 %v459, 7
      %v461 = vsub.s32 2, %v460
      %v462 = vrot.slane %v270, %v461
      %v463 = vlaneseq
      %v464 = vshrl.u32 %v463, 7
      %v465 = vsub.s32 3, %v464
      %v466 = vrot.slane %v270, %v465
      %v467 = vlaneseq
      %v468 = vshrl.u32 %v467, 7
      %v469 = vsub.s32 4, %v468
      %v470 = vrot.slane %v270, %v469
      %v471 = vlaneseq
      %v472 = vshrl.u32 %v471, 7
      %v473 = vsub.s32 5, %v472
      %v474 = vrot.slane %v270, %v473
      %v475 = vlaneseq
      %v476 = vshrl.u32 %v475, 7
      %v477 = vsub.s32 6, %v476
      %v478 = vrot.slane %v270, %v477
      %v479 = vlaneseq
      %v480 = vshrl.u32 %v479, 7
      %v481 = vsub.s32 7, %v480
      %v482 = vrot.slane %v270, %v481
      %v483 = vlaneseq
      %v484 = vshrl.u32 %v483, 7
      %v485 = vsub.s32 0, %v484
      %v486 = vrot.slane %v274, %v485
      %v487 = vlaneseq
      %v488 = vshrl.u32 %v487, 7
      %v489 = vsub.s32 1, %v488
      %v490 = vrot.slane %v274, %v489
      %v491 = vlaneseq
      %v492 = vshrl.u32 %v491, 7
      %v493 = vsub.s32 2, %v492
      %v494 = vrot.slane %v274, %v493
      %v495 = vlaneseq
      %v496 = vshrl.u32 %v495, 7
      %v497 = vsub.s32 3, %v496
      %v498 = vrot.slane %v274, %v497
      %v499 = vlaneseq
      %v500 = vshrl.u32 %v499, 7
      %v501 = vsub.s32 4, %v500
      %v502 = vrot.slane %v274, %v501
      %v503 = vlaneseq
      %v504 = vshrl.u32 %v503, 7
      %v505 = vsub.s32 5, %v504
      %v506 = vrot.slane %v274, %v505
      %v507 = vlaneseq
      %v508 = vshrl.u32 %v507, 7
      %v509 = vsub.s32 6, %v508
      %v510 = vrot.slane %v274, %v509
      %v511 = vlaneseq
      %v512 = vshrl.u32 %v511, 7
      %v513 = vsub.s32 7, %v512
      %v514 = vrot.slane %v274, %v513
      %531 = vset.pattern.permute.xlu0 0
      %532 = vperm.xlu0 %531, %v335
      %v533 = vpop.permute.xlu0 %532
      %v535 = vmax.f32 %v454, %v533
      %v536 = vmax.f32 %v458, %v533
      %v537 = vmax.f32 %v462, %v533
      %v538 = vmax.f32 %v466, %v533
      %v539 = vmax.f32 %v470, %v533
      %v540 = vmax.f32 %v474, %v533
      %v541 = vmax.f32 %v478, %v533
      %v542 = vmax.f32 %v482, %v533
      %v543 = vmax.f32 %v486, %v533
      %v544 = vmax.f32 %v490, %v533
      %v545 = vmax.f32 %v494, %v533
      %v546 = vmax.f32 %v498, %v533
      %v547 = vmax.f32 %v502, %v533
      %v548 = vmax.f32 %v506, %v533
      %v549 = vmax.f32 %v510, %v533
      %v550 = vmax.f32 %v514, %v533
      %v551 = vsub.f32 %v433, %v535
      %v552 = vsub.f32 %v434, %v536
      %v553 = vsub.f32 %v435, %v537
      %v554 = vsub.f32 %v436, %v538
      %v555 = vsub.f32 %v437, %v539
      %v556 = vsub.f32 %v438, %v540
      %v557 = vsub.f32 %v439, %v541
      %v558 = vsub.f32 %v440, %v542
      %v559 = vsub.f32 %v441, %v543
      %v560 = vsub.f32 %v442, %v544
      %v561 = vsub.f32 %v443, %v545
      %v562 = vsub.f32 %v444, %v546
      %v563 = vsub.f32 %v445, %v547
      %v564 = vsub.f32 %v446, %v548
      %v565 = vsub.f32 %v447, %v549
      %v566 = vsub.f32 %v448, %v550
      %v567 = vadd.f32 %v551, 1.0
      %v568 = vadd.f32 %v552, 1.0
      %v569 = vadd.f32 %v553, 1.0
      %v570 = vadd.f32 %v554, 1.0
      %v571 = vadd.f32 %v555, 1.0
      %v572 = vadd.f32 %v556, 1.0
      %v573 = vadd.f32 %v557, 1.0
      %v574 = vadd.f32 %v558, 1.0
      %v575 = vadd.f32 %v559, 1.0
      %v576 = vadd.f32 %v560, 1.0
      %v577 = vadd.f32 %v561, 1.0
      %v578 = vadd.f32 %v562, 1.0
      %v579 = vadd.f32 %v563, 1.0
      %v580 = vadd.f32 %v564, 1.0
      %v581 = vadd.f32 %v565, 1.0
      %v582 = vadd.f32 %v566, 1.0
      %v583 = vmax.f32 %v567, 0.0
      %v584 = vmax.f32 %v568, 0.0
      %v585 = vmax.f32 %v569, 0.0
      %v586 = vmax.f32 %v570, 0.0
      %v587 = vmax.f32 %v571, 0.0
      %v588 = vmax.f32 %v572, 0.0
      %v589 = vmax.f32 %v573, 0.0
      %v590 = vmax.f32 %v574, 0.0
      %v591 = vmax.f32 %v575, 0.0
      %v592 = vmax.f32 %v576, 0.0
      %v593 = vmax.f32 %v577, 0.0
      %v594 = vmax.f32 %v578, 0.0
      %v595 = vmax.f32 %v579, 0.0
      %v596 = vmax.f32 %v580, 0.0
      %v597 = vmax.f32 %v581, 0.0
      %v598 = vmax.f32 %v582, 0.0
      %v601 = vlaneseq
      %v602 = vshrl.u32 %v601, 7
      %v603 = vsub.s32 0, %v602
      %v604 = vrot.slane %v294, %v603
      %v605 = vlaneseq
      %v606 = vshrl.u32 %v605, 7
      %v607 = vsub.s32 1, %v606
      %v608 = vrot.slane %v294, %v607
      %v609 = vlaneseq
      %v610 = vshrl.u32 %v609, 7
      %v611 = vsub.s32 2, %v610
      %v612 = vrot.slane %v294, %v611
      %v613 = vlaneseq
      %v614 = vshrl.u32 %v613, 7
      %v615 = vsub.s32 3, %v614
      %v616 = vrot.slane %v294, %v615
      %v617 = vlaneseq
      %v618 = vshrl.u32 %v617, 7
      %v619 = vsub.s32 4, %v618
      %v620 = vrot.slane %v294, %v619
      %v621 = vlaneseq
      %v622 = vshrl.u32 %v621, 7
      %v623 = vsub.s32 5, %v622
      %v624 = vrot.slane %v294, %v623
      %v625 = vlaneseq
      %v626 = vshrl.u32 %v625, 7
      %v627 = vsub.s32 6, %v626
      %v628 = vrot.slane %v294, %v627
      %v629 = vlaneseq
      %v630 = vshrl.u32 %v629, 7
      %v631 = vsub.s32 7, %v630
      %v632 = vrot.slane %v294, %v631
      %v633 = vlaneseq
      %v634 = vshrl.u32 %v633, 7
      %v635 = vsub.s32 0, %v634
      %v636 = vrot.slane %v298, %v635
      %v637 = vlaneseq
      %v638 = vshrl.u32 %v637, 7
      %v639 = vsub.s32 1, %v638
      %v640 = vrot.slane %v298, %v639
      %v641 = vlaneseq
      %v642 = vshrl.u32 %v641, 7
      %v643 = vsub.s32 2, %v642
      %v644 = vrot.slane %v298, %v643
      %v645 = vlaneseq
      %v646 = vshrl.u32 %v645, 7
      %v647 = vsub.s32 3, %v646
      %v648 = vrot.slane %v298, %v647
      %v649 = vlaneseq
      %v650 = vshrl.u32 %v649, 7
      %v651 = vsub.s32 4, %v650
      %v652 = vrot.slane %v298, %v651
      %v653 = vlaneseq
      %v654 = vshrl.u32 %v653, 7
      %v655 = vsub.s32 5, %v654
      %v656 = vrot.slane %v298, %v655
      %v657 = vlaneseq
      %v658 = vshrl.u32 %v657, 7
      %v659 = vsub.s32 6, %v658
      %v660 = vrot.slane %v298, %v659
      %v661 = vlaneseq
      %v662 = vshrl.u32 %v661, 7
      %v663 = vsub.s32 7, %v662
      %v664 = vrot.slane %v298, %v663
      %681 = vset.pattern.permute.xlu0 3
      %682 = vperm.xlu0 %681, %v335
      %v683 = vpop.permute.xlu0 %682
      %v685 = vmin.f32 %v604, %v683
      %v686 = vmin.f32 %v608, %v683
      %v687 = vmin.f32 %v612, %v683
      %v688 = vmin.f32 %v616, %v683
      %v689 = vmin.f32 %v620, %v683
      %v690 = vmin.f32 %v624, %v683
      %v691 = vmin.f32 %v628, %v683
      %v692 = vmin.f32 %v632, %v683
      %v693 = vmin.f32 %v636, %v683
      %v694 = vmin.f32 %v640, %v683
      %v695 = vmin.f32 %v644, %v683
      %v696 = vmin.f32 %v648, %v683
      %v697 = vmin.f32 %v652, %v683
      %v698 = vmin.f32 %v656, %v683
      %v699 = vmin.f32 %v660, %v683
      %v700 = vmin.f32 %v664, %v683
      %v703 = vlaneseq
      %v704 = vshrl.u32 %v703, 7
      %v705 = vsub.s32 0, %v704
      %v706 = vrot.slane %v278, %v705
      %v707 = vlaneseq
      %v708 = vshrl.u32 %v707, 7
      %v709 = vsub.s32 1, %v708
      %v710 = vrot.slane %v278, %v709
      %v711 = vlaneseq
      %v712 = vshrl.u32 %v711, 7
      %v713 = vsub.s32 2, %v712
      %v714 = vrot.slane %v278, %v713
      %v715 = vlaneseq
      %v716 = vshrl.u32 %v715, 7
      %v717 = vsub.s32 3, %v716
      %v718 = vrot.slane %v278, %v717
      %v719 = vlaneseq
      %v720 = vshrl.u32 %v719, 7
      %v721 = vsub.s32 4, %v720
      %v722 = vrot.slane %v278, %v721
      %v723 = vlaneseq
      %v724 = vshrl.u32 %v723, 7
      %v725 = vsub.s32 5, %v724
      %v726 = vrot.slane %v278, %v725
      %v727 = vlaneseq
      %v728 = vshrl.u32 %v727, 7
      %v729 = vsub.s32 6, %v728
      %v730 = vrot.slane %v278, %v729
      %v731 = vlaneseq
      %v732 = vshrl.u32 %v731, 7
      %v733 = vsub.s32 7, %v732
      %v734 = vrot.slane %v278, %v733
      %v735 = vlaneseq
      %v736 = vshrl.u32 %v735, 7
      %v737 = vsub.s32 0, %v736
      %v738 = vrot.slane %v282, %v737
      %v739 = vlaneseq
      %v740 = vshrl.u32 %v739, 7
      %v741 = vsub.s32 1, %v740
      %v742 = vrot.slane %v282, %v741
      %v743 = vlaneseq
      %v744 = vshrl.u32 %v743, 7
      %v745 = vsub.s32 2, %v744
      %v746 = vrot.slane %v282, %v745
      %v747 = vlaneseq
      %v748 = vshrl.u32 %v747, 7
      %v749 = vsub.s32 3, %v748
      %v750 = vrot.slane %v282, %v749
      %v751 = vlaneseq
      %v752 = vshrl.u32 %v751, 7
      %v753 = vsub.s32 4, %v752
      %v754 = vrot.slane %v282, %v753
      %v755 = vlaneseq
      %v756 = vshrl.u32 %v755, 7
      %v757 = vsub.s32 5, %v756
      %v758 = vrot.slane %v282, %v757
      %v759 = vlaneseq
      %v760 = vshrl.u32 %v759, 7
      %v761 = vsub.s32 6, %v760
      %v762 = vrot.slane %v282, %v761
      %v763 = vlaneseq
      %v764 = vshrl.u32 %v763, 7
      %v765 = vsub.s32 7, %v764
      %v766 = vrot.slane %v282, %v765
      %783 = vset.pattern.permute.xlu0 1
      %784 = vperm.xlu0 %783, %v335
      %v785 = vpop.permute.xlu0 %784
      %v787 = vmax.f32 %v706, %v785
      %v788 = vmax.f32 %v710, %v785
      %v789 = vmax.f32 %v714, %v785
      %v790 = vmax.f32 %v718, %v785
      %v791 = vmax.f32 %v722, %v785
      %v792 = vmax.f32 %v726, %v785
      %v793 = vmax.f32 %v730, %v785
      %v794 = vmax.f32 %v734, %v785
      %v795 = vmax.f32 %v738, %v785
      %v796 = vmax.f32 %v742, %v785
      %v797 = vmax.f32 %v746, %v785
      %v798 = vmax.f32 %v750, %v785
      %v799 = vmax.f32 %v754, %v785
      %v800 = vmax.f32 %v758, %v785
      %v801 = vmax.f32 %v762, %v785
      %v802 = vmax.f32 %v766, %v785
      %v803 = vsub.f32 %v685, %v787
      %v804 = vsub.f32 %v686, %v788
      %v805 = vsub.f32 %v687, %v789
      %v806 = vsub.f32 %v688, %v790
      %v807 = vsub.f32 %v689, %v791
      %v808 = vsub.f32 %v690, %v792
      %v809 = vsub.f32 %v691, %v793
      %v810 = vsub.f32 %v692, %v794
      %v811 = vsub.f32 %v693, %v795
      %v812 = vsub.f32 %v694, %v796
      %v813 = vsub.f32 %v695, %v797
      %v814 = vsub.f32 %v696, %v798
      %v815 = vsub.f32 %v697, %v799
      %v816 = vsub.f32 %v698, %v800
      %v817 = vsub.f32 %v699, %v801
      %v818 = vsub.f32 %v700, %v802
      %v819 = vadd.f32 %v803, 1.0
      %v820 = vadd.f32 %v804, 1.0
      %v821 = vadd.f32 %v805, 1.0
      %v822 = vadd.f32 %v806, 1.0
      %v823 = vadd.f32 %v807, 1.0
      %v824 = vadd.f32 %v808, 1.0
      %v825 = vadd.f32 %v809, 1.0
      %v826 = vadd.f32 %v810, 1.0
      %v827 = vadd.f32 %v811, 1.0
      %v828 = vadd.f32 %v812, 1.0
      %v829 = vadd.f32 %v813, 1.0
      %v830 = vadd.f32 %v814, 1.0
      %v831 = vadd.f32 %v815, 1.0
      %v832 = vadd.f32 %v816, 1.0
      %v833 = vadd.f32 %v817, 1.0
      %v834 = vadd.f32 %v818, 1.0
      %v835 = vmax.f32 %v819, 0.0
      %v836 = vmax.f32 %v820, 0.0
      %v837 = vmax.f32 %v821, 0.0
      %v838 = vmax.f32 %v822, 0.0
      %v839 = vmax.f32 %v823, 0.0
      %v840 = vmax.f32 %v824, 0.0
      %v841 = vmax.f32 %v825, 0.0
      %v842 = vmax.f32 %v826, 0.0
      %v843 = vmax.f32 %v827, 0.0
      %v844 = vmax.f32 %v828, 0.0
      %v845 = vmax.f32 %v829, 0.0
      %v846 = vmax.f32 %v830, 0.0
      %v847 = vmax.f32 %v831, 0.0
      %v848 = vmax.f32 %v832, 0.0
      %v849 = vmax.f32 %v833, 0.0
      %v850 = vmax.f32 %v834, 0.0
      %v851 = vmul.f32 %v583, %v835
      %v852 = vmul.f32 %v584, %v836
      %v853 = vmul.f32 %v585, %v837
      %v854 = vmul.f32 %v586, %v838
      %v855 = vmul.f32 %v587, %v839
      %v856 = vmul.f32 %v588, %v840
      %v857 = vmul.f32 %v589, %v841
      %v858 = vmul.f32 %v590, %v842
      %v859 = vmul.f32 %v591, %v843
      %v860 = vmul.f32 %v592, %v844
      %v861 = vmul.f32 %v593, %v845
      %v862 = vmul.f32 %v594, %v846
      %v863 = vmul.f32 %v595, %v847
      %v864 = vmul.f32 %v596, %v848
      %v865 = vmul.f32 %v597, %v849
      %v866 = vmul.f32 %v598, %v850
      %v869 = vlaneseq
      %v870 = vshrl.u32 %v869, 7
      %v871 = vsub.s32 0, %v870
      %v872 = vrot.slane %v315, %v871
      %v873 = vlaneseq
      %v874 = vshrl.u32 %v873, 7
      %v875 = vsub.s32 1, %v874
      %v876 = vrot.slane %v315, %v875
      %v877 = vlaneseq
      %v878 = vshrl.u32 %v877, 7
      %v879 = vsub.s32 2, %v878
      %v880 = vrot.slane %v315, %v879
      %v881 = vlaneseq
      %v882 = vshrl.u32 %v881, 7
      %v883 = vsub.s32 3, %v882
      %v884 = vrot.slane %v315, %v883
      %v885 = vlaneseq
      %v886 = vshrl.u32 %v885, 7
      %v887 = vsub.s32 4, %v886
      %v888 = vrot.slane %v315, %v887
      %v889 = vlaneseq
      %v890 = vshrl.u32 %v889, 7
      %v891 = vsub.s32 5, %v890
      %v892 = vrot.slane %v315, %v891
      %v893 = vlaneseq
      %v894 = vshrl.u32 %v893, 7
      %v895 = vsub.s32 6, %v894
      %v896 = vrot.slane %v315, %v895
      %v897 = vlaneseq
      %v898 = vshrl.u32 %v897, 7
      %v899 = vsub.s32 7, %v898
      %v900 = vrot.slane %v315, %v899
      %v901 = vlaneseq
      %v902 = vshrl.u32 %v901, 7
      %v903 = vsub.s32 0, %v902
      %v904 = vrot.slane %v316, %v903
      %v905 = vlaneseq
      %v906 = vshrl.u32 %v905, 7
      %v907 = vsub.s32 1, %v906
      %v908 = vrot.slane %v316, %v907
      %v909 = vlaneseq
      %v910 = vshrl.u32 %v909, 7
      %v911 = vsub.s32 2, %v910
      %v912 = vrot.slane %v316, %v911
      %v913 = vlaneseq
      %v914 = vshrl.u32 %v913, 7
      %v915 = vsub.s32 3, %v914
      %v916 = vrot.slane %v316, %v915
      %v917 = vlaneseq
      %v918 = vshrl.u32 %v917, 7
      %v919 = vsub.s32 4, %v918
      %v920 = vrot.slane %v316, %v919
      %v921 = vlaneseq
      %v922 = vshrl.u32 %v921, 7
      %v923 = vsub.s32 5, %v922
      %v924 = vrot.slane %v316, %v923
      %v925 = vlaneseq
      %v926 = vshrl.u32 %v925, 7
      %v927 = vsub.s32 6, %v926
      %v928 = vrot.slane %v316, %v927
      %v929 = vlaneseq
      %v930 = vshrl.u32 %v929, 7
      %v931 = vsub.s32 7, %v930
      %v932 = vrot.slane %v316, %v931
      %950 = vset.pattern.permute.xlu0 2
      %951 = vperm.xlu0 %950, %v346
      %v952 = vpop.permute.xlu0 %951
      %v954 = vadd.f32 %v872, %v952
      %v955 = vadd.f32 %v876, %v952
      %v956 = vadd.f32 %v880, %v952
      %v957 = vadd.f32 %v884, %v952
      %v958 = vadd.f32 %v888, %v952
      %v959 = vadd.f32 %v892, %v952
      %v960 = vadd.f32 %v896, %v952
      %v961 = vadd.f32 %v900, %v952
      %v962 = vadd.f32 %v904, %v952
      %v963 = vadd.f32 %v908, %v952
      %v964 = vadd.f32 %v912, %v952
      %v965 = vadd.f32 %v916, %v952
      %v966 = vadd.f32 %v920, %v952
      %v967 = vadd.f32 %v924, %v952
      %v968 = vadd.f32 %v928, %v952
      %v969 = vadd.f32 %v932, %v952
      %v970 = vsub.f32 %v954, %v851
      %v971 = vsub.f32 %v955, %v852
      %v972 = vsub.f32 %v956, %v853
      %v973 = vsub.f32 %v957, %v854
      %v974 = vsub.f32 %v958, %v855
      %v975 = vsub.f32 %v959, %v856
      %v976 = vsub.f32 %v960, %v857
      %v977 = vsub.f32 %v961, %v858
      %v978 = vsub.f32 %v962, %v859
      %v979 = vsub.f32 %v963, %v860
      %v980 = vsub.f32 %v964, %v861
      %v981 = vsub.f32 %v965, %v862
      %v982 = vsub.f32 %v966, %v863
      %v983 = vsub.f32 %v967, %v864
      %v984 = vsub.f32 %v968, %v865
      %v985 = vsub.f32 %v969, %v866
      %v986 = vrcp.pop %v970
      %v987 = vmul.f32 %v851, %v986
      %v988 = vrcp.pop %v971
      %v989 = vmul.f32 %v852, %v988
      %v990 = vrcp.pop %v972
      %v991 = vmul.f32 %v853, %v990
      %v992 = vrcp.pop %v973
      %v993 = vmul.f32 %v854, %v992
      %v994 = vrcp.pop %v974
      %v995 = vmul.f32 %v855, %v994
      %v996 = vrcp.pop %v975
      %v997 = vmul.f32 %v856, %v996
      %v998 = vrcp.pop %v976
      %v999 = vmul.f32 %v857, %v998
      %v1000 = vrcp.pop %v977
      %v1001 = vmul.f32 %v858, %v1000
      %v1002 = vrcp.pop %v978
      %v1003 = vmul.f32 %v859, %v1002
      %v1004 = vrcp.pop %v979
      %v1005 = vmul.f32 %v860, %v1004
      %v1006 = vrcp.pop %v980
      %v1007 = vmul.f32 %v861, %v1006
      %v1008 = vrcp.pop %v981
      %v1009 = vmul.f32 %v862, %v1008
      %v1010 = vrcp.pop %v982
      %v1011 = vmul.f32 %v863, %v1010
      %v1012 = vrcp.pop %v983
      %v1013 = vmul.f32 %v864, %v1012
      %v1014 = vrcp.pop %v984
      %v1015 = vmul.f32 %v865, %v1014
      %v1016 = vrcp.pop %v985
      %v1017 = vmul.f32 %v866, %v1016
      %v1018 = vsel %vm333, 1, 0
      %v1019 = vsel %vm334, 1, 0
      %v1020 = vlaneseq
      %v1021 = vshrl.u32 %v1020, 7
      %v1022 = vsub.s32 0, %v1021
      %v1023 = vrot.slane %v1018, %v1022
      %v1024 = vlaneseq
      %v1025 = vshrl.u32 %v1024, 7
      %v1026 = vsub.s32 1, %v1025
      %v1027 = vrot.slane %v1018, %v1026
      %v1028 = vlaneseq
      %v1029 = vshrl.u32 %v1028, 7
      %v1030 = vsub.s32 2, %v1029
      %v1031 = vrot.slane %v1018, %v1030
      %v1032 = vlaneseq
      %v1033 = vshrl.u32 %v1032, 7
      %v1034 = vsub.s32 3, %v1033
      %v1035 = vrot.slane %v1018, %v1034
      %v1036 = vlaneseq
      %v1037 = vshrl.u32 %v1036, 7
      %v1038 = vsub.s32 4, %v1037
      %v1039 = vrot.slane %v1018, %v1038
      %v1040 = vlaneseq
      %v1041 = vshrl.u32 %v1040, 7
      %v1042 = vsub.s32 5, %v1041
      %v1043 = vrot.slane %v1018, %v1042
      %v1044 = vlaneseq
      %v1045 = vshrl.u32 %v1044, 7
      %v1046 = vsub.s32 6, %v1045
      %v1047 = vrot.slane %v1018, %v1046
      %v1048 = vlaneseq
      %v1049 = vshrl.u32 %v1048, 7
      %v1050 = vsub.s32 7, %v1049
      %v1051 = vrot.slane %v1018, %v1050
      %v1052 = vlaneseq
      %v1053 = vshrl.u32 %v1052, 7
      %v1054 = vsub.s32 0, %v1053
      %v1055 = vrot.slane %v1019, %v1054
      %v1056 = vlaneseq
      %v1057 = vshrl.u32 %v1056, 7
      %v1058 = vsub.s32 1, %v1057
      %v1059 = vrot.slane %v1019, %v1058
      %v1060 = vlaneseq
      %v1061 = vshrl.u32 %v1060, 7
      %v1062 = vsub.s32 2, %v1061
      %v1063 = vrot.slane %v1019, %v1062
      %v1064 = vlaneseq
      %v1065 = vshrl.u32 %v1064, 7
      %v1066 = vsub.s32 3, %v1065
      %v1067 = vrot.slane %v1019, %v1066
      %v1068 = vlaneseq
      %v1069 = vshrl.u32 %v1068, 7
      %v1070 = vsub.s32 4, %v1069
      %v1071 = vrot.slane %v1019, %v1070
      %v1072 = vlaneseq
      %v1073 = vshrl.u32 %v1072, 7
      %v1074 = vsub.s32 5, %v1073
      %v1075 = vrot.slane %v1019, %v1074
      %v1076 = vlaneseq
      %v1077 = vshrl.u32 %v1076, 7
      %v1078 = vsub.s32 6, %v1077
      %v1079 = vrot.slane %v1019, %v1078
      %v1080 = vlaneseq
      %v1081 = vshrl.u32 %v1080, 7
      %v1082 = vsub.s32 7, %v1081
      %v1083 = vrot.slane %v1019, %v1082
      %vm1084 = vcmp.eq.s32.totalorder %v1023, 1
      %vm1085 = vcmp.eq.s32.totalorder %v1027, 1
      %vm1086 = vcmp.eq.s32.totalorder %v1031, 1
      %vm1087 = vcmp.eq.s32.totalorder %v1035, 1
      %vm1088 = vcmp.eq.s32.totalorder %v1039, 1
      %vm1089 = vcmp.eq.s32.totalorder %v1043, 1
      %vm1090 = vcmp.eq.s32.totalorder %v1047, 1
      %vm1091 = vcmp.eq.s32.totalorder %v1051, 1
      %vm1092 = vcmp.eq.s32.totalorder %v1055, 1
      %vm1093 = vcmp.eq.s32.totalorder %v1059, 1
      %vm1094 = vcmp.eq.s32.totalorder %v1063, 1
      %vm1095 = vcmp.eq.s32.totalorder %v1067, 1
      %vm1096 = vcmp.eq.s32.totalorder %v1071, 1
      %vm1097 = vcmp.eq.s32.totalorder %v1075, 1
      %vm1098 = vcmp.eq.s32.totalorder %v1079, 1
      %vm1099 = vcmp.eq.s32.totalorder %v1083, 1
      %v1100 = vsel %vm1084, %v987, -1.0
      %v1101 = vsel %vm1085, %v989, -1.0
      %v1102 = vsel %vm1086, %v991, -1.0
      %v1103 = vsel %vm1087, %v993, -1.0
      %v1104 = vsel %vm1088, %v995, -1.0
      %v1105 = vsel %vm1089, %v997, -1.0
      %v1106 = vsel %vm1090, %v999, -1.0
      %v1107 = vsel %vm1091, %v1001, -1.0
      %v1108 = vsel %vm1092, %v1003, -1.0
      %v1109 = vsel %vm1093, %v1005, -1.0
      %v1110 = vsel %vm1094, %v1007, -1.0
      %v1111 = vsel %vm1095, %v1009, -1.0
      %v1112 = vsel %vm1096, %v1011, -1.0
      %v1113 = vsel %vm1097, %v1013, -1.0
      %v1114 = vsel %vm1098, %v1015, -1.0
      %v1115 = vsel %vm1099, %v1017, -1.0
      %s1116 = smul.u32 %s33, 2
      %s1117 = sadd.s32 %s1116, %s34
      %s1118 = smul.u32 %s1117, 2048
      %v1119 = vlaneseq
      %v1120 = vand.u32 %v1119, 127
      %v1121 = vadd.s32 %v1120, 128
      %v1122 = vadd.s32 %v1120, 256
      %v1123 = vadd.s32 %v1120, 384
      %v1124 = vadd.s32 %v1120, 512
      %v1125 = vadd.s32 %v1120, 640
      %v1126 = vadd.s32 %v1120, 768
      %v1127 = vadd.s32 %v1120, 896
      %v1128 = vadd.s32 %v1120, 1024
      %v1129 = vadd.s32 %v1120, 1152
      %v1130 = vadd.s32 %v1120, 1280
      %v1131 = vadd.s32 %v1120, 1408
      %v1132 = vadd.s32 %v1120, 1536
      %v1133 = vadd.s32 %v1120, 1664
      %v1134 = vadd.s32 %v1120, 1792
      %v1135 = vadd.s32 %v1120, 1920
      %v1136 = vstv %s1118
      %v1137 = vadd.s32 %v1136, %v1120
      %v1138 = vadd.s32 %v1136, %v1121
      %v1139 = vadd.s32 %v1136, %v1122
      %v1140 = vadd.s32 %v1136, %v1123
      %v1141 = vadd.s32 %v1136, %v1124
      %v1142 = vadd.s32 %v1136, %v1125
      %v1143 = vadd.s32 %v1136, %v1126
      %v1144 = vadd.s32 %v1136, %v1127
      %v1145 = vadd.s32 %v1136, %v1128
      %v1146 = vadd.s32 %v1136, %v1129
      %v1147 = vadd.s32 %v1136, %v1130
      %v1148 = vadd.s32 %v1136, %v1131
      %v1149 = vadd.s32 %v1136, %v1132
      %v1150 = vadd.s32 %v1136, %v1133
      %v1151 = vadd.s32 %v1136, %v1134
      %v1152 = vadd.s32 %v1136, %v1135
      %v1153 = vmax.f32 %v1100, %v1104
      %v1154 = vmax.f32 %v1101, %v1105
      %v1155 = vmax.f32 %v1102, %v1106
      %v1156 = vmax.f32 %v1103, %v1107
      %v1157 = vmax.f32 %v1153, %v1108
      %v1158 = vmax.f32 %v1154, %v1109
      %v1159 = vmax.f32 %v1155, %v1110
      %v1160 = vmax.f32 %v1156, %v1111
      %v1161 = vmax.f32 %v1157, %v1112
      %v1162 = vmax.f32 %v1158, %v1113
      %v1163 = vmax.f32 %v1159, %v1114
      %v1164 = vmax.f32 %v1160, %v1115
      %v1165 = vmax.f32 %v1161, %v1162
      %v1166 = vmax.f32 %v1163, %v1164
      %v1167 = vmax.f32 %v1165, %v1166
      %1168 = vmax.xlane.f32.xlu0 %v1167
      %v1169 = vpop.xlane.xlu0 %1168
      %vm1170 = vcmp.eq.f32.partialorder %v1100, %v1169
      %vm1171 = vcmp.eq.f32.partialorder %v1101, %v1169
      %vm1172 = vcmp.eq.f32.partialorder %v1102, %v1169
      %vm1173 = vcmp.eq.f32.partialorder %v1103, %v1169
      %vm1174 = vcmp.eq.f32.partialorder %v1104, %v1169
      %vm1175 = vcmp.eq.f32.partialorder %v1105, %v1169
      %vm1176 = vcmp.eq.f32.partialorder %v1106, %v1169
      %vm1177 = vcmp.eq.f32.partialorder %v1107, %v1169
      %vm1178 = vcmp.eq.f32.partialorder %v1108, %v1169
      %vm1179 = vcmp.eq.f32.partialorder %v1109, %v1169
      %vm1180 = vcmp.eq.f32.partialorder %v1110, %v1169
      %vm1181 = vcmp.eq.f32.partialorder %v1111, %v1169
      %vm1182 = vcmp.eq.f32.partialorder %v1112, %v1169
      %vm1183 = vcmp.eq.f32.partialorder %v1113, %v1169
      %vm1184 = vcmp.eq.f32.partialorder %v1114, %v1169
      %vm1185 = vcmp.eq.f32.partialorder %v1115, %v1169
      %v1186 = vsel %vm1170, %v1137, 1073741824
      %v1187 = vsel %vm1171, %v1138, 1073741824
      %v1188 = vsel %vm1172, %v1139, 1073741824
      %v1189 = vsel %vm1173, %v1140, 1073741824
      %v1190 = vsel %vm1174, %v1141, 1073741824
      %v1191 = vsel %vm1175, %v1142, 1073741824
      %v1192 = vsel %vm1176, %v1143, 1073741824
      %v1193 = vsel %vm1177, %v1144, 1073741824
      %v1194 = vsel %vm1178, %v1145, 1073741824
      %v1195 = vsel %vm1179, %v1146, 1073741824
      %v1196 = vsel %vm1180, %v1147, 1073741824
      %v1197 = vsel %vm1181, %v1148, 1073741824
      %v1198 = vsel %vm1182, %v1149, 1073741824
      %v1199 = vsel %vm1183, %v1150, 1073741824
      %v1200 = vsel %vm1184, %v1151, 1073741824
      %v1201 = vsel %vm1185, %v1152, 1073741824
      %vm1202 = vcmp.lt.s32.totalorder %v1186, %v1190
      %v1203 = vsel %vm1202, %v1186, %v1190
      %vm1204 = vcmp.lt.s32.totalorder %v1187, %v1191
      %v1205 = vsel %vm1204, %v1187, %v1191
      %vm1206 = vcmp.lt.s32.totalorder %v1188, %v1192
      %v1207 = vsel %vm1206, %v1188, %v1192
      %vm1208 = vcmp.lt.s32.totalorder %v1189, %v1193
      %v1209 = vsel %vm1208, %v1189, %v1193
      %vm1210 = vcmp.lt.s32.totalorder %v1203, %v1194
      %v1211 = vsel %vm1210, %v1203, %v1194
      %vm1212 = vcmp.lt.s32.totalorder %v1205, %v1195
      %v1213 = vsel %vm1212, %v1205, %v1195
      %vm1214 = vcmp.lt.s32.totalorder %v1207, %v1196
      %v1215 = vsel %vm1214, %v1207, %v1196
      %vm1216 = vcmp.lt.s32.totalorder %v1209, %v1197
      %v1217 = vsel %vm1216, %v1209, %v1197
      %vm1218 = vcmp.lt.s32.totalorder %v1211, %v1198
      %v1219 = vsel %vm1218, %v1211, %v1198
      %vm1220 = vcmp.lt.s32.totalorder %v1213, %v1199
      %v1221 = vsel %vm1220, %v1213, %v1199
      %vm1222 = vcmp.lt.s32.totalorder %v1215, %v1200
      %v1223 = vsel %vm1222, %v1215, %v1200
      %vm1224 = vcmp.lt.s32.totalorder %v1217, %v1201
      %v1225 = vsel %vm1224, %v1217, %v1201
      %vm1226 = vcmp.lt.s32.totalorder %v1219, %v1221
      %v1227 = vsel %vm1226, %v1219, %v1221
      %vm1228 = vcmp.lt.s32.totalorder %v1223, %v1225
      %v1229 = vsel %vm1228, %v1223, %v1225
      %vm1230 = vcmp.lt.s32.totalorder %v1227, %v1229
      %v1231 = vsel %vm1230, %v1227, %v1229
      %v1232 = vand.u32 %v1231, 65535
      %v1233 = vshra.s32 %v1231, 16
      %v1234 = vcvt.s32.f32 %v1232
      %v1235 = vcvt.s32.f32 %v1233
      %1236 = vmin.xlane.f32.xlu0 %v1235
      %v1237 = vpop.xlane.xlu0 %1236
      %vm1238 = vcmp.eq.f32.partialorder %v1235, %v1237
      %v1239 = vsel %vm1238, %v1234, inf
      %1240 = vmin.xlane.f32.xlu0 %v1239
      %v1241 = vpop.xlane.xlu0 %1240
      %v1242 = vcvt.f32.s32 %v1241
      %v1243 = vcvt.f32.s32 %v1237
      %v1244 = vshll.u32 %v1243, 16
      %v1245 = vadd.s32 %v1244, %v1242
      %p1246 = scmp.eq.s32.totalorder %s34, 0
      // Predicated region
      $region29: #{build_target_layer.2} parent=27 // pred_check
        %p1247 = pneg %p1246
      $region30: #{build_target_layer.2} parent=27 // pred_check_branch
        %1249 = sbr.rel (%p1247) target = $region32
      $region31: #{build_target_layer.2} parent=27 // pred_region
        %vm1250 = vcmask 7168
        %1251 = vst.msk [vmem:[#allocation2] sm:$0xff] %vm1250, -2.0
        %1252 = vst.msk [vmem:[#allocation3] sm:$0xff] %vm1250, 0
      $region32: #{build_target_layer.2} parent=27 // pred_fallthru
        _
      %v1253 = vld [vmem:[#allocation2] sm:$0xff]
      %v1254 = vld [vmem:[#allocation3] sm:$0xff]
      %vm1255 = vcmp.gt.f32.partialorder %v1169, %v1253
      %vm1256 = vcmp.eq.f32.partialorder %v1169, %v1253
      %v1257 = vmax.f32 %v1253, %v1169
      %vm1258 = vcmask 7168
      %1259 = vst.msk [vmem:[#allocation2] sm:$0xff] %vm1258, %v1257
      %vm1260 = vcmp.lt.s32.totalorder %v1254, %v1245
      %v1261 = vsel %vm1260, %v1254, %v1245
      %v1262 = vsel %vm1256, %v1261, %v1254
      %v1263 = vsel %vm1255, %v1245, %v1262
      %1264 = vst.msk [vmem:[#allocation3] sm:$0xff] %vm1258, %v1263
      %p1265 = scmp.eq.s32.totalorder %s34, 1
      // Predicated region
      $region33: #{build_target_layer.2} parent=27 // pred_check
        %p1266 = pneg %p1265
      $region34: #{build_target_layer.2} parent=27 // pred_check_branch
        %1268 = sbr.rel (%p1266) target = $region36
      $region35: #{build_target_layer.2} parent=27 // pred_region
        %v1269 = vld [vmem:[#allocation2] sm:$0xff]
        %1270 = vst.msk [vmem:[%s255] sm:$0xff] %vm1258, %v1269
        %v1271 = vld [vmem:[#allocation3] sm:$0xff]
        %1272 = vst.msk [vmem:[%s263] sm:$0xff] %vm1258, %v1271
      $region36: #{build_target_layer.2} parent=27 // pred_fallthru
        _
      %p1273 = scmp.lt.s32.totalorder %s32, 1
      %s1274 = scalar_select %p1273, %s32, 1
      %p1275 = scmp.lt.s32.totalorder %s33, 1
      %s1276 = scalar_select %p1275, %s33, 1
      %s1277 = smul.addr %s1274, 2
      %s1278 = sadd.s32 %s1276, %s1277
      %s1279 = smul.addr %s1278, 8
      %s1280 = scalar_lea.vmem %s4, %s1279
      %p1281 = scmp.lt.s32.totalorder %s32, 1
      %s1282 = scalar_select %p1281, %s32, 1
      %p1283 = scmp.lt.s32.totalorder %s33, 1
      %s1284 = scalar_select %p1283, %s33, 1
      %s1285 = smul.addr %s1282, 2
      %s1286 = sadd.s32 %s1284, %s1285
      %s1287 = smul.addr %s1286, 8
      %s1288 = scalar_lea.vmem %s5, %s1287
      // Predicated region
      $region37: #{build_target_layer.2} parent=27 // pred_check
        %p1289 = pneg %p122
      $region38: #{build_target_layer.2} parent=27 // pred_check_branch
        %1291 = sbr.rel (%p1289) target = $region40
      $region39: #{build_target_layer.2} parent=27 // pred_region
        _
      $region40: #{build_target_layer.2} parent=27 // pred_fallthru
        _
      // Predicated region
      $region41: #{build_target_layer.2} parent=27 // pred_check
        %p1292 = pneg %p150
      $region42: #{build_target_layer.2} parent=27 // pred_check_branch
        %1294 = sbr.rel (%p1292) target = $region44
      $region43: #{build_target_layer.2} parent=27 // pred_region
        _
      $region44: #{build_target_layer.2} parent=27 // pred_fallthru
        _
    $region28: #{build_target_layer.2} parent=5 // pred_fallthru
      _
    %p1295 = scmp.le.s32.totalorder 2, %s22
    // Predicated region
    $region45: #{build_target_layer.2} parent=5 // pred_check
      %p1296 = pneg %p1295
    $region46: #{build_target_layer.2} parent=5 // pred_check_branch
      %1298 = sbr.rel (%p1296) target = $region48
    $region47: #{build_target_layer.2} parent=5 // pred_region
      %s1299 = ssub.s32 %s22, 2
      // Predicated region
      $region49: #{build_target_layer.2} parent=47 // pred_check
        %p1300 = pneg %p128
      $region50: #{build_target_layer.2} parent=47 // pred_check_branch
        %1302 = sbr.rel (%p1300) target = $region52
      $region51: #{build_target_layer.2} parent=47 // pred_region
        %p1303 = scmp.lt.s32.totalorder %s35, 1
        %s1304 = scalar_select %p1303, %s35, 1
        %p1305 = scmp.lt.s32.totalorder %s36, 1
        %s1306 = scalar_select %p1305, %s36, 1
        %s1307 = smul.addr %s1304, 2
        %s1308 = sadd.s32 %s1306, %s1307
        %s1309 = smul.addr %s1308, 8
        %s1310 = scalar_lea.vmem %s4, %s1309
      $region52: #{build_target_layer.2} parent=47 // pred_fallthru
        _
      // Predicated region
      $region53: #{build_target_layer.2} parent=47 // pred_check
        %p1311 = pneg %p156
      $region54: #{build_target_layer.2} parent=47 // pred_check_branch
        %1313 = sbr.rel (%p1311) target = $region56
      $region55: #{build_target_layer.2} parent=47 // pred_region
        %p1314 = scmp.lt.s32.totalorder %s35, 1
        %s1315 = scalar_select %p1314, %s35, 1
        %p1316 = scmp.lt.s32.totalorder %s36, 1
        %s1317 = scalar_select %p1316, %s36, 1
        %s1318 = smul.addr %s1315, 2
        %s1319 = sadd.s32 %s1317, %s1318
        %s1320 = smul.addr %s1319, 8
        %s1321 = scalar_lea.vmem %s5, %s1320
      $region56: #{build_target_layer.2} parent=47 // pred_fallthru
        _
    $region48: #{build_target_layer.2} parent=5 // pred_fallthru
      _
  $region6: #{build_target_layer.2} parent=0 // loop_footer
    %s26 = sadd.s32 1, %s22
  $region7: #{build_target_layer.2} parent=0 // loop_footer_branch
    %21 = sbr.rel target = $region3
  $region8: #{build_target_layer.2} parent=0 // loop_exit
    _

// kernel: build_target_layer.3
$region0: #{build_target_layer.3}
  #allocation0 [shape = 'u32[]', space=smem, size = 0x4, offset = 0x4, fixed_abs, tag = 'smem constant byte address 0x4 - core index']
  #allocation1 [shape = 'u32[144,128]{1,0:T(1,128)}', space=vmem, size = 0x12000, scoped, tag = 'internal scratch']
  #allocation2 [shape = 's32[1]{0}', space=sflag, size = 0x4, scoped, tag = 'scoped memory for build_target_layer.3']
  #allocation3 [shape = 'u8[512]{0}', space=smem, size = 0x200, scoped, tag = 'prefetched SMEM operand 0']
  #allocation4 [shape = 'u8[512]{0}', space=smem, size = 0x200, scoped, tag = 'prefetched SMEM operand 1']
  %s0 = inlined_call_operand.vmem [shape: s32[2], index: 0, kind: input, shape index: {}]
  %s1 = inlined_call_operand.vmem [shape: s32[2], index: 1, kind: input, shape index: {}]
  %s2 = inlined_call_operand.vmem [shape: f32[8,8192], index: 2, kind: input, shape index: {}]
  %s3 = inlined_call_operand.vmem [shape: f32[2,8,5], index: 3, kind: input, shape index: {}]
  %s4 = inlined_call_operand.vmem [shape: f32[2,8,8], index: 4, kind: input, shape index: {}]
  %s5 = inlined_call_operand.vmem [shape: s32[2,8,1], index: 5, kind: input, shape index: {}]
  %s6 = inlined_call_operand.vmem [shape: f32[2,5,8192], index: 6, kind: output, shape index: {}]
  %s7 = sld [smem:[#allocation0]]
  $region49: #{build_target_layer.3} parent=0
    _
  %s9 = ssub.s32 1, %s7
  %s10 = scalar_select 0, %s9, %s7
  %s11 = sshll.u32 %s0, 4
  %s12 = int_to_ptr.vmem [resolvable:$true] %s11
  %14 = dma.vmem_to_smem %s12, 16, [#allocation3], [#allocation2]
  %s15 = sshll.u32 %s1, 4
  %s16 = int_to_ptr.vmem [resolvable:$true] %s15
  %18 = dma.vmem_to_smem %s16, 16, [#allocation4], [#allocation2]
  %19 = dma.done [#allocation2], 32
  %20 = sfence
  loop: start=0, step=1, limit=10
  $region2: #{build_target_layer.3} parent=0 // loop_pre_header
    _
  $region3: #{build_target_layer.3} parent=0 // loop_header
    %s22 = sphi 0, %s26
    %p23 = scmp.ge.s32.totalorder %s22, 10
    %s29 = sphi 0, %s41
    %s30 = sphi 0, %s37
    %s31 = sphi 0, %s29
    %s32 = sphi 0, %s30
    %s33 = sphi 0, %s31
    %s34 = sphi 0, %s32
    %s44 = sphi 0, %s46
    %s47 = sphi 0, %s44
    %s48 = sphi 0, %s47
    %s64 = sphi 0, %s48
    %s70 = sphi 0, %s72
    %s73 = sphi 0, %s70
    %s74 = sphi 0, %s73
    %s90 = sphi 0, %s74
    %s96 = sphi 0, %s98
    %s99 = sphi 0, %s96
    %s100 = sphi 0, %s99
    %s116 = sphi 0, %s100
    %s122 = sphi 0, %s124
    %s125 = sphi 0, %s122
    %s126 = sphi 0, %s125
    %s142 = sphi 0, %s126
    %s150 = sphi 0, %s152
    %s153 = sphi 0, %s150
    %s154 = sphi 0, %s153
    %s170 = sphi 0, %s154
  $region4: #{build_target_layer.3} parent=0 // loop_header_branch
    %25 = sbr.rel (%p23) target = $region8
  $region5: #{build_target_layer.3} parent=0 // loop_body
    %s27 = ssub.s32 %s22, 1
    %s28 = ssub.s32 %s22, 2
    %s35 = sadd.s32 1, %s30
    %p36 = scmp.ge.s32.totalorder %s35, 2
    %s37 = scalar_select %p36, 0, %s35
    %s38 = sadd.s32 1, %s29
    %s39 = scalar_select %p36, %s38, %s29
    %p40 = scmp.ge.s32.totalorder %s39, 4
    %s41 = scalar_select %p40, 0, %s39
    %s42 = ssub.s32 %s29, %s41
    %p43 = scmp.eq.s32.totalorder %s42, 0
    %s45 = sadd.s32 %s44, 1
    %s46 = scalar_select %p43, %s44, %s45
    %p49 = pneg %p43
    %p50 = scmp.eq.s32.totalorder %s22, 7
    %p51 = por %p49, %p50
    %p52 = scmp.ne.s32.totalorder %s44, %s47
    %p53 = scmp.eq.s32.totalorder %s22, 0
    %p54 = por %p52, %p53
    %p55 = scmp.ne.s32.totalorder %s44, %s47
    %p56 = scmp.eq.s32.totalorder %s27, 7
    %p57 = por %p55, %p56
    %p58 = scmp.ne.s32.totalorder %s47, %s48
    %p59 = scmp.eq.s32.totalorder %s27, 0
    %p60 = por %p58, %p59
    %p61 = scmp.ne.s32.totalorder %s47, %s48
    %p62 = scmp.eq.s32.totalorder %s28, 7
    %p63 = por %p61, %p62
    %p65 = scmp.ne.s32.totalorder %s48, %s64
    %p66 = scmp.eq.s32.totalorder %s28, 0
    %p67 = por %p65, %p66
    %s68 = ssub.s32 %s30, %s37
    %p69 = scmp.eq.s32.totalorder %s68, 0
    %s71 = sadd.s32 %s70, 1
    %s72 = scalar_select %p69, %s70, %s71
    %p75 = pneg %p69
    %p76 = scmp.eq.s32.totalorder %s22, 7
    %p77 = por %p75, %p76
    %p78 = scmp.ne.s32.totalorder %s70, %s73
    %p79 = scmp.eq.s32.totalorder %s22, 0
    %p80 = por %p78, %p79
    %p81 = scmp.ne.s32.totalorder %s70, %s73
    %p82 = scmp.eq.s32.totalorder %s27, 7
    %p83 = por %p81, %p82
    %p84 = scmp.ne.s32.totalorder %s73, %s74
    %p85 = scmp.eq.s32.totalorder %s27, 0
    %p86 = por %p84, %p85
    %p87 = scmp.ne.s32.totalorder %s73, %s74
    %p88 = scmp.eq.s32.totalorder %s28, 7
    %p89 = por %p87, %p88
    %p91 = scmp.ne.s32.totalorder %s74, %s90
    %p92 = scmp.eq.s32.totalorder %s28, 0
    %p93 = por %p91, %p92
    %s94 = ssub.s32 %s30, %s37
    %p95 = scmp.eq.s32.totalorder %s94, 0
    %s97 = sadd.s32 %s96, 1
    %s98 = scalar_select %p95, %s96, %s97
    %p101 = pneg %p95
    %p102 = scmp.eq.s32.totalorder %s22, 7
    %p103 = por %p101, %p102
    %p104 = scmp.ne.s32.totalorder %s96, %s99
    %p105 = scmp.eq.s32.totalorder %s22, 0
    %p106 = por %p104, %p105
    %p107 = scmp.ne.s32.totalorder %s96, %s99
    %p108 = scmp.eq.s32.totalorder %s27, 7
    %p109 = por %p107, %p108
    %p110 = scmp.ne.s32.totalorder %s99, %s100
    %p111 = scmp.eq.s32.totalorder %s27, 0
    %p112 = por %p110, %p111
    %p113 = scmp.ne.s32.totalorder %s99, %s100
    %p114 = scmp.eq.s32.totalorder %s28, 7
    %p115 = por %p113, %p114
    %p117 = scmp.ne.s32.totalorder %s100, %s116
    %p118 = scmp.eq.s32.totalorder %s28, 0
    %p119 = por %p117, %p118
    %s120 = ssub.s32 %s30, %s37
    %p121 = scmp.eq.s32.totalorder %s120, 0
    %s123 = sadd.s32 %s122, 1
    %s124 = scalar_select %p121, %s122, %s123
    %p127 = pneg %p121
    %p128 = scmp.eq.s32.totalorder %s22, 7
    %p129 = por %p127, %p128
    %p130 = scmp.ne.s32.totalorder %s122, %s125
    %p131 = scmp.eq.s32.totalorder %s22, 0
    %p132 = por %p130, %p131
    %p133 = scmp.ne.s32.totalorder %s122, %s125
    %p134 = scmp.eq.s32.totalorder %s27, 7
    %p135 = por %p133, %p134
    %p136 = scmp.ne.s32.totalorder %s125, %s126
    %p137 = scmp.eq.s32.totalorder %s27, 0
    %p138 = por %p136, %p137
    %p139 = scmp.ne.s32.totalorder %s125, %s126
    %p140 = scmp.eq.s32.totalorder %s28, 7
    %p141 = por %p139, %p140
    %p143 = scmp.ne.s32.totalorder %s126, %s142
    %p144 = scmp.eq.s32.totalorder %s28, 0
    %p145 = por %p143, %p144
    %s146 = ssub.s32 %s30, %s37
    %s147 = ssub.s32 %s29, %s41
    %s148 = sor.u32 %s146, %s147
    %p149 = scmp.eq.s32.totalorder %s148, 0
    %s151 = sadd.s32 %s150, 1
    %s152 = scalar_select %p149, %s150, %s151
    %p155 = pneg %p149
    %p156 = scmp.eq.s32.totalorder %s22, 7
    %p157 = por %p155, %p156
    %p158 = scmp.ne.s32.totalorder %s150, %s153
    %p159 = scmp.eq.s32.totalorder %s22, 0
    %p160 = por %p158, %p159
    %p161 = scmp.ne.s32.totalorder %s150, %s153
    %p162 = scmp.eq.s32.totalorder %s27, 7
    %p163 = por %p161, %p162
    %p164 = scmp.ne.s32.totalorder %s153, %s154
    %p165 = scmp.eq.s32.totalorder %s27, 0
    %p166 = por %p164, %p165
    %p167 = scmp.ne.s32.totalorder %s153, %s154
    %p168 = scmp.eq.s32.totalorder %s28, 7
    %p169 = por %p167, %p168
    %p171 = scmp.ne.s32.totalorder %s154, %s170
    %p172 = scmp.eq.s32.totalorder %s28, 0
    %p173 = por %p171, %p172
    %p174 = scmp.le.s32.totalorder 1, %s22
    %p175 = scmp.lt.s32.totalorder %s22, 9
    %p176 = pnand %p174, %p175
    %p177 = pneg %p176
    // Predicated region
    $region9: #{build_target_layer.3} parent=5 // pred_check
      _
    $region10: #{build_target_layer.3} parent=5 // pred_check_branch
      %179 = sbr.rel (%p176) target = $region12
    $region11: #{build_target_layer.3} parent=5 // pred_region
      %s180 = ssub.s32 %s22, 1
    $region12: #{build_target_layer.3} parent=5 // pred_fallthru
      _
    %p181 = scmp.lt.s32.totalorder %s22, 8
    // Predicated region
    $region13: #{build_target_layer.3} parent=5 // pred_check
      %p182 = pneg %p181
    $region14: #{build_target_layer.3} parent=5 // pred_check_branch
      %184 = sbr.rel (%p182) target = $region16
    $region15: #{build_target_layer.3} parent=5 // pred_region
      // Predicated region
      $region17: #{build_target_layer.3} parent=15 // pred_check
        %p185 = pneg %p54
      $region18: #{build_target_layer.3} parent=15 // pred_check_branch
        %187 = sbr.rel (%p185) target = $region20
      $region19: #{build_target_layer.3} parent=15 // pred_region
        %s188 = smul.u32 16, %s29
        %p189 = scmp.lt.s32.totalorder %s188, 63
        %s190 = scalar_select %p189, %s188, 63
        %s191 = smul.addr %s190, 8
        %s192 = scalar_lea.vmem %s2, %s191
        %s193 = smul.u32 16, %s29
      $region20: #{build_target_layer.3} parent=15 // pred_fallthru
        _
      // Predicated region
      $region21: #{build_target_layer.3} parent=15 // pred_check
        %p194 = pneg %p80
      $region22: #{build_target_layer.3} parent=15 // pred_check_branch
        %196 = sbr.rel (%p194) target = $region24
      $region23: #{build_target_layer.3} parent=15 // pred_region
        %p197 = scmp.lt.s32.totalorder %s30, 1
        %s198 = scalar_select %p197, %s30, 1
        %s199 = smul.addr %s198, 8
        %s200 = scalar_lea.vmem %s3, %s199
      $region24: #{build_target_layer.3} parent=15 // pred_fallthru
        _
      // Predicated region
      $region25: #{build_target_layer.3} parent=15 // pred_check
        %p201 = pneg %p106
      $region26: #{build_target_layer.3} parent=15 // pred_check_branch
        %203 = sbr.rel (%p201) target = $region28
      $region27: #{build_target_layer.3} parent=15 // pred_region
        %p204 = scmp.lt.s32.totalorder %s30, 1
        %s205 = scalar_select %p204, %s30, 1
        %s206 = smul.addr %s205, 8
        %s207 = scalar_lea.vmem %s4, %s206
      $region28: #{build_target_layer.3} parent=15 // pred_fallthru
        _
      // Predicated region
      $region29: #{build_target_layer.3} parent=15 // pred_check
        %p208 = pneg %p132
      $region30: #{build_target_layer.3} parent=15 // pred_check_branch
        %210 = sbr.rel (%p208) target = $region32
      $region31: #{build_target_layer.3} parent=15 // pred_region
        %p211 = scmp.lt.s32.totalorder %s30, 1
        %s212 = scalar_select %p211, %s30, 1
        %s213 = smul.addr %s212, 8
        %s214 = scalar_lea.vmem %s5, %s213
      $region32: #{build_target_layer.3} parent=15 // pred_fallthru
        _
    $region16: #{build_target_layer.3} parent=5 // pred_fallthru
      _
    %p215 = scmp.le.s32.totalorder 1, %s22
    %p216 = scmp.lt.s32.totalorder %s22, 9
    %p217 = pnand %p215, %p216
    %p218 = pneg %p217
    // Predicated region
    $region33: #{build_target_layer.3} parent=5 // pred_check
      _
    $region34: #{build_target_layer.3} parent=5 // pred_check_branch
      %220 = sbr.rel (%p217) target = $region36
    $region35: #{build_target_layer.3} parent=5 // pred_region
      %s221 = ssub.s32 %s22, 1
      %s222 = smul.u32 16, %s31
      %p223 = scmp.lt.s32.totalorder %s222, 63
      %s224 = scalar_select %p223, %s222, 63
      %s225 = smul.addr %s224, 8
      %s226 = scalar_lea.vmem %s2, %s225
      %p227 = pneg %p60
      %p228 = pneg %p57
      %p229 = scmp.lt.s32.totalorder %s32, 1
      %s230 = scalar_select %p229, %s32, 1
      %s231 = smul.addr %s230, 8
      %s232 = scalar_lea.vmem %s3, %s231
      %p233 = pneg %p86
      %p234 = pneg %p83
      %p235 = scmp.lt.s32.totalorder %s32, 1
      %s236 = scalar_select %p235, %s32, 1
      %s237 = smul.addr %s236, 8
      %s238 = scalar_lea.vmem %s4, %s237
      %p239 = pneg %p112
      %p240 = pneg %p109
      %p241 = scmp.lt.s32.totalorder %s32, 1
      %s242 = scalar_select %p241, %s32, 1
      %s243 = smul.addr %s242, 8
      %s244 = scalar_lea.vmem %s5, %s243
      %p245 = pneg %p138
      %p246 = pneg %p135
      %p247 = pneg %p166
      %p248 = pneg %p163
      %s249 = smul.u32 16, %s31
      %p250 = scmp.lt.s32.totalorder %s32, 1
      %s251 = scalar_select %p250, %s32, 1
      %p252 = scmp.lt.s32.totalorder %s249, 63
      %s253 = scalar_select %p252, %s249, 63
      %s254 = smul.addr %s251, 64
      %s255 = sadd.s32 %s253, %s254
      %s256 = smul.addr %s255, 8
      %s257 = scalar_lea.vmem %s6, %s256
      %s258 = smul.u32 16, %s31
      %p259 = scmp.lt.s32.totalorder %s258, 63
      %s260 = scalar_select %p259, %s258, 63
      %s261 = smul.addr %s260, 8
      %s262 = scalar_lea.vmem %s2, %s261
      %s263 = smul.u32 16, %s31
      %p264 = scmp.lt.s32.totalorder %s32, 1
      %s265 = scalar_select %p264, %s32, 1
      %s266 = smul.addr %s265, 8
      %s267 = scalar_lea.vmem %s3, %s266
      %p268 = scmp.lt.s32.totalorder %s32, 1
      %s269 = scalar_select %p268, %s32, 1
      %s270 = smul.addr %s269, 8
      %s271 = scalar_lea.vmem %s4, %s270
      %p272 = scmp.lt.s32.totalorder %s32, 1
      %s273 = scalar_select %p272, %s32, 1
      %s274 = smul.addr %s273, 8
      %s275 = scalar_lea.vmem %s5, %s274
      %s276 = smul.u32 16, %s31
      %p277 = scmp.lt.s32.totalorder %s32, 1
      %s278 = scalar_select %p277, %s32, 1
      %p279 = scmp.lt.s32.totalorder %s276, 63
      %s280 = scalar_select %p279, %s276, 63
      %s281 = smul.addr %s278, 64
      %s282 = sadd.s32 %s280, %s281
      %s283 = smul.addr %s282, 8
      %s284 = scalar_lea.vmem %s6, %s283
      %s285 = smul.u32 16, %s31
      %s286 = sld [smem:[#allocation4]]
      %s287 = scvt.s32.f32 %s286
      %s288 = sld [smem:[#allocation4 + $0x1]]
      %s289 = scvt.s32.f32 %s288
      %s290 = sld [smem:[#allocation3 + %s32]]
      %v291 = vld [vmem:[%s262] ss:$8 sm:$0xf]
      %v292 = vld [vmem:[%s262] ss:$8 sm:$0xf0]
      %v293 = vor.u32 %v291, %v292
      %s294 = scalar_lea.vmem %s262, 64
      %v295 = vld [vmem:[%s294] ss:$8 sm:$0xf]
      %v296 = vld [vmem:[%s294] ss:$8 sm:$0xf0]
      %v297 = vor.u32 %v295, %v296
      %s298 = scalar_lea.vmem %s262, 1
      %v299 = vld [vmem:[%s298] ss:$8 sm:$0xf]
      %v300 = vld [vmem:[%s298] ss:$8 sm:$0xf0]
      %v301 = vor.u32 %v299, %v300
      %s302 = scalar_lea.vmem %s262, 65
      %v303 = vld [vmem:[%s302] ss:$8 sm:$0xf]
      %v304 = vld [vmem:[%s302] ss:$8 sm:$0xf0]
      %v305 = vor.u32 %v303, %v304
      %s306 = scalar_lea.vmem %s262, 2
      %v307 = vld [vmem:[%s306] ss:$8 sm:$0xf]
      %v308 = vld [vmem:[%s306] ss:$8 sm:$0xf0]
      %v309 = vor.u32 %v307, %v308
      %s310 = scalar_lea.vmem %s262, 66
      %v311 = vld [vmem:[%s310] ss:$8 sm:$0xf]
      %v312 = vld [vmem:[%s310] ss:$8 sm:$0xf0]
      %v313 = vor.u32 %v311, %v312
      %s314 = scalar_lea.vmem %s262, 3
      %v315 = vld [vmem:[%s314] ss:$8 sm:$0xf]
      %v316 = vld [vmem:[%s314] ss:$8 sm:$0xf0]
      %v317 = vor.u32 %v315, %v316
      %s318 = scalar_lea.vmem %s262, 67
      %v319 = vld [vmem:[%s318] ss:$8 sm:$0xf]
      %v320 = vld [vmem:[%s318] ss:$8 sm:$0xf0]
      %v321 = vor.u32 %v319, %v320
      %s322 = scalar_lea.vmem %s262, 4
      %v323 = vld [vmem:[%s322] ss:$8 sm:$0xf]
      %v324 = vld [vmem:[%s322] ss:$8 sm:$0xf0]
      %v325 = vor.u32 %v323, %v324
      %s326 = scalar_lea.vmem %s262, 68
      %v327 = vld [vmem:[%s326] ss:$8 sm:$0xf]
      %v328 = vld [vmem:[%s326] ss:$8 sm:$0xf0]
      %v329 = vor.u32 %v327, %v328
      %s330 = scalar_lea.vmem %s262, 5
      %v331 = vld [vmem:[%s330] ss:$8 sm:$0xf]
      %v332 = vld [vmem:[%s330] ss:$8 sm:$0xf0]
      %v333 = vor.u32 %v331, %v332
      %s334 = scalar_lea.vmem %s262, 69
      %v335 = vld [vmem:[%s334] ss:$8 sm:$0xf]
      %v336 = vld [vmem:[%s334] ss:$8 sm:$0xf0]
      %v337 = vor.u32 %v335, %v336
      %s338 = scalar_lea.vmem %s262, 6
      %v339 = vld [vmem:[%s338] ss:$8 sm:$0xf]
      %v340 = vld [vmem:[%s338] ss:$8 sm:$0xf0]
      %v341 = vor.u32 %v339, %v340
      %s342 = scalar_lea.vmem %s262, 70
      %v343 = vld [vmem:[%s342] ss:$8 sm:$0xf]
      %v344 = vld [vmem:[%s342] ss:$8 sm:$0xf0]
      %v345 = vor.u32 %v343, %v344
      %s346 = scalar_lea.vmem %s262, 7
      %v347 = vld [vmem:[%s346] ss:$8 sm:$0xf]
      %v348 = vld [vmem:[%s346] ss:$8 sm:$0xf0]
      %v349 = vor.u32 %v347, %v348
      %s350 = scalar_lea.vmem %s262, 71
      %v351 = vld [vmem:[%s350] ss:$8 sm:$0xf]
      %v352 = vld [vmem:[%s350] ss:$8 sm:$0xf0]
      %v353 = vor.u32 %v351, %v352
      %v354 = vmul.f32 %v325, %v333
      %v355 = vmul.f32 %v329, %v337
      %vm356 = vcmp.ge.f32.partialorder %v293, -0.0
      %vm357 = vcmp.ge.f32.partialorder %v297, -0.0
      %vm358 = vcmp.ge.f32.partialorder %v301, -0.0
      %vm359 = vcmp.ge.f32.partialorder %v305, -0.0
      %vm360 = vmand %vm356, %vm358
      %vm361 = vmand %vm357, %vm359
      %s362 = sadd.f32 %s289, 0.0
      %v363 = vstv %s362
      %vm364 = vcmp.lt.f32.partialorder %v309, %v363
      %vm365 = vcmp.lt.f32.partialorder %v313, %v363
      %vm366 = vmand %vm360, %vm364
      %vm367 = vmand %vm361, %vm365
      %s368 = sadd.f32 %s287, 0.0
      %v369 = vstv %s368
      %vm370 = vcmp.lt.f32.partialorder %v317, %v369
      %vm371 = vcmp.lt.f32.partialorder %v321, %v369
      %vm372 = vmand %vm366, %vm370
      %vm373 = vmand %vm367, %vm371
      %v374 = vld [vmem:[%s267] sm:$0xff]
      %376 = vrot.lane.b32.xlu0 %v374, 2
      %v377 = vpop.permute.xlu0 %376
      %v379 = vsub.f32 %v374, %v377
      %v380 = vadd.f32 %v379, 1.0
      %382 = vrot.lane.b32.xlu0 %v380, 127
      %v383 = vpop.permute.xlu0 %382
      %v385 = vmul.f32 %v380, %v383
      %v388 = vlaneseq
      %v389 = vshrl.u32 %v388, 7
      %v390 = vsub.s32 0, %v389
      %v391 = vrot.slane %v309, %v390
      %v392 = vlaneseq
      %v393 = vshrl.u32 %v392, 7
      %v394 = vsub.s32 1, %v393
      %v395 = vrot.slane %v309, %v394
      %v396 = vlaneseq
      %v397 = vshrl.u32 %v396, 7
      %v398 = vsub.s32 2, %v397
      %v399 = vrot.slane %v309, %v398
      %v400 = vlaneseq
      %v401 = vshrl.u32 %v400, 7
      %v402 = vsub.s32 3, %v401
      %v403 = vrot.slane %v309, %v402
      %v404 = vlaneseq
      %v405 = vshrl.u32 %v404, 7
      %v406 = vsub.s32 4, %v405
      %v407 = vrot.slane %v309, %v406
      %v408 = vlaneseq
      %v409 = vshrl.u32 %v408, 7
      %v410 = vsub.s32 5, %v409
      %v411 = vrot.slane %v309, %v410
      %v412 = vlaneseq
      %v413 = vshrl.u32 %v412, 7
      %v414 = vsub.s32 6, %v413
      %v415 = vrot.slane %v309, %v414
      %v416 = vlaneseq
      %v417 = vshrl.u32 %v416, 7
      %v418 = vsub.s32 7, %v417
      %v419 = vrot.slane %v309, %v418
      %v420 = vlaneseq
      %v421 = vshrl.u32 %v420, 7
      %v422 = vsub.s32 0, %v421
      %v423 = vrot.slane %v313, %v422
      %v424 = vlaneseq
      %v425 = vshrl.u32 %v424, 7
      %v426 = vsub.s32 1, %v425
      %v427 = vrot.slane %v313, %v426
      %v428 = vlaneseq
      %v429 = vshrl.u32 %v428, 7
      %v430 = vsub.s32 2, %v429
      %v431 = vrot.slane %v313, %v430
      %v432 = vlaneseq
      %v433 = vshrl.u32 %v432, 7
      %v434 = vsub.s32 3, %v433
      %v435 = vrot.slane %v313, %v434
      %v436 = vlaneseq
      %v437 = vshrl.u32 %v436, 7
      %v438 = vsub.s32 4, %v437
      %v439 = vrot.slane %v313, %v438
      %v440 = vlaneseq
      %v441 = vshrl.u32 %v440, 7
      %v442 = vsub.s32 5, %v441
      %v443 = vrot.slane %v313, %v442
      %v444 = vlaneseq
      %v445 = vshrl.u32 %v444, 7
      %v446 = vsub.s32 6, %v445
      %v447 = vrot.slane %v313, %v446
      %v448 = vlaneseq
      %v449 = vshrl.u32 %v448, 7
      %v450 = vsub.s32 7, %v449
      %v451 = vrot.slane %v313, %v450
      %468 = vset.pattern.permute.xlu0 2
      %469 = vperm.xlu0 %468, %v374
      %v470 = vpop.permute.xlu0 %469
      %v472 = vmin.f32 %v391, %v470
      %v473 = vmin.f32 %v395, %v470
      %v474 = vmin.f32 %v399, %v470
      %v475 = vmin.f32 %v403, %v470
      %v476 = vmin.f32 %v407, %v470
      %v477 = vmin.f32 %v411, %v470
      %v478 = vmin.f32 %v415, %v470
      %v479 = vmin.f32 %v419, %v470
      %v480 = vmin.f32 %v423, %v470
      %v481 = vmin.f32 %v427, %v470
      %v482 = vmin.f32 %v431, %v470
      %v483 = vmin.f32 %v435, %v470
      %v484 = vmin.f32 %v439, %v470
      %v485 = vmin.f32 %v443, %v470
      %v486 = vmin.f32 %v447, %v470
      %v487 = vmin.f32 %v451, %v470
      %v490 = vlaneseq
      %v491 = vshrl.u32 %v490, 7
      %v492 = vsub.s32 0, %v491
      %v493 = vrot.slane %v293, %v492
      %v494 = vlaneseq
      %v495 = vshrl.u32 %v494, 7
      %v496 = vsub.s32 1, %v495
      %v497 = vrot.slane %v293, %v496
      %v498 = vlaneseq
      %v499 = vshrl.u32 %v498, 7
      %v500 = vsub.s32 2, %v499
      %v501 = vrot.slane %v293, %v500
      %v502 = vlaneseq
      %v503 = vshrl.u32 %v502, 7
      %v504 = vsub.s32 3, %v503
      %v505 = vrot.slane %v293, %v504
      %v506 = vlaneseq
      %v507 = vshrl.u32 %v506, 7
      %v508 = vsub.s32 4, %v507
      %v509 = vrot.slane %v293, %v508
      %v510 = vlaneseq
      %v511 = vshrl.u32 %v510, 7
      %v512 = vsub.s32 5, %v511
      %v513 = vrot.slane %v293, %v512
      %v514 = vlaneseq
      %v515 = vshrl.u32 %v514, 7
      %v516 = vsub.s32 6, %v515
      %v517 = vrot.slane %v293, %v516
      %v518 = vlaneseq
      %v519 = vshrl.u32 %v518, 7
      %v520 = vsub.s32 7, %v519
      %v521 = vrot.slane %v293, %v520
      %v522 = vlaneseq
      %v523 = vshrl.u32 %v522, 7
      %v524 = vsub.s32 0, %v523
      %v525 = vrot.slane %v297, %v524
      %v526 = vlaneseq
      %v527 = vshrl.u32 %v526, 7
      %v528 = vsub.s32 1, %v527
      %v529 = vrot.slane %v297, %v528
      %v530 = vlaneseq
      %v531 = vshrl.u32 %v530, 7
      %v532 = vsub.s32 2, %v531
      %v533 = vrot.slane %v297, %v532
      %v534 = vlaneseq
      %v535 = vshrl.u32 %v534, 7
      %v536 = vsub.s32 3, %v535
      %v537 = vrot.slane %v297, %v536
      %v538 = vlaneseq
      %v539 = vshrl.u32 %v538, 7
      %v540 = vsub.s32 4, %v539
      %v541 = vrot.slane %v297, %v540
      %v542 = vlaneseq
      %v543 = vshrl.u32 %v542, 7
      %v544 = vsub.s32 5, %v543
      %v545 = vrot.slane %v297, %v544
      %v546 = vlaneseq
      %v547 = vshrl.u32 %v546, 7
      %v548 = vsub.s32 6, %v547
      %v549 = vrot.slane %v297, %v548
      %v550 = vlaneseq
      %v551 = vshrl.u32 %v550, 7
      %v552 = vsub.s32 7, %v551
      %v553 = vrot.slane %v297, %v552
      %570 = vset.pattern.permute.xlu0 0
      %571 = vperm.xlu0 %570, %v374
      %v572 = vpop.permute.xlu0 %571
      %v574 = vmax.f32 %v493, %v572
      %v575 = vmax.f32 %v497, %v572
      %v576 = vmax.f32 %v501, %v572
      %v577 = vmax.f32 %v505, %v572
      %v578 = vmax.f32 %v509, %v572
      %v579 = vmax.f32 %v513, %v572
      %v580 = vmax.f32 %v517, %v572
      %v581 = vmax.f32 %v521, %v572
      %v582 = vmax.f32 %v525, %v572
      %v583 = vmax.f32 %v529, %v572
      %v584 = vmax.f32 %v533, %v572
      %v585 = vmax.f32 %v537, %v572
      %v586 = vmax.f32 %v541, %v572
      %v587 = vmax.f32 %v545, %v572
      %v588 = vmax.f32 %v549, %v572
      %v589 = vmax.f32 %v553, %v572
      %v590 = vsub.f32 %v472, %v574
      %v591 = vsub.f32 %v473, %v575
      %v592 = vsub.f32 %v474, %v576
      %v593 = vsub.f32 %v475, %v577
      %v594 = vsub.f32 %v476, %v578
      %v595 = vsub.f32 %v477, %v579
      %v596 = vsub.f32 %v478, %v580
      %v597 = vsub.f32 %v479, %v581
      %v598 = vsub.f32 %v480, %v582
      %v599 = vsub.f32 %v481, %v583
      %v600 = vsub.f32 %v482, %v584
      %v601 = vsub.f32 %v483, %v585
      %v602 = vsub.f32 %v484, %v586
      %v603 = vsub.f32 %v485, %v587
      %v604 = vsub.f32 %v486, %v588
      %v605 = vsub.f32 %v487, %v589
      %v606 = vadd.f32 %v590, 1.0
      %v607 = vadd.f32 %v591, 1.0
      %v608 = vadd.f32 %v592, 1.0
      %v609 = vadd.f32 %v593, 1.0
      %v610 = vadd.f32 %v594, 1.0
      %v611 = vadd.f32 %v595, 1.0
      %v612 = vadd.f32 %v596, 1.0
      %v613 = vadd.f32 %v597, 1.0
      %v614 = vadd.f32 %v598, 1.0
      %v615 = vadd.f32 %v599, 1.0
      %v616 = vadd.f32 %v600, 1.0
      %v617 = vadd.f32 %v601, 1.0
      %v618 = vadd.f32 %v602, 1.0
      %v619 = vadd.f32 %v603, 1.0
      %v620 = vadd.f32 %v604, 1.0
      %v621 = vadd.f32 %v605, 1.0
      %v622 = vmax.f32 %v606, 0.0
      %v623 = vmax.f32 %v607, 0.0
      %v624 = vmax.f32 %v608, 0.0
      %v625 = vmax.f32 %v609, 0.0
      %v626 = vmax.f32 %v610, 0.0
      %v627 = vmax.f32 %v611, 0.0
      %v628 = vmax.f32 %v612, 0.0
      %v629 = vmax.f32 %v613, 0.0
      %v630 = vmax.f32 %v614, 0.0
      %v631 = vmax.f32 %v615, 0.0
      %v632 = vmax.f32 %v616, 0.0
      %v633 = vmax.f32 %v617, 0.0
      %v634 = vmax.f32 %v618, 0.0
      %v635 = vmax.f32 %v619, 0.0
      %v636 = vmax.f32 %v620, 0.0
      %v637 = vmax.f32 %v621, 0.0
      %v640 = vlaneseq
      %v641 = vshrl.u32 %v640, 7
      %v642 = vsub.s32 0, %v641
      %v643 = vrot.slane %v317, %v642
      %v644 = vlaneseq
      %v645 = vshrl.u32 %v644, 7
      %v646 = vsub.s32 1, %v645
      %v647 = vrot.slane %v317, %v646
      %v648 = vlaneseq
      %v649 = vshrl.u32 %v648, 7
      %v650 = vsub.s32 2, %v649
      %v651 = vrot.slane %v317, %v650
      %v652 = vlaneseq
      %v653 = vshrl.u32 %v652, 7
      %v654 = vsub.s32 3, %v653
      %v655 = vrot.slane %v317, %v654
      %v656 = vlaneseq
      %v657 = vshrl.u32 %v656, 7
      %v658 = vsub.s32 4, %v657
      %v659 = vrot.slane %v317, %v658
      %v660 = vlaneseq
      %v661 = vshrl.u32 %v660, 7
      %v662 = vsub.s32 5, %v661
      %v663 = vrot.slane %v317, %v662
      %v664 = vlaneseq
      %v665 = vshrl.u32 %v664, 7
      %v666 = vsub.s32 6, %v665
      %v667 = vrot.slane %v317, %v666
      %v668 = vlaneseq
      %v669 = vshrl.u32 %v668, 7
      %v670 = vsub.s32 7, %v669
      %v671 = vrot.slane %v317, %v670
      %v672 = vlaneseq
      %v673 = vshrl.u32 %v672, 7
      %v674 = vsub.s32 0, %v673
      %v675 = vrot.slane %v321, %v674
      %v676 = vlaneseq
      %v677 = vshrl.u32 %v676, 7
      %v678 = vsub.s32 1, %v677
      %v679 = vrot.slane %v321, %v678
      %v680 = vlaneseq
      %v681 = vshrl.u32 %v680, 7
      %v682 = vsub.s32 2, %v681
      %v683 = vrot.slane %v321, %v682
      %v684 = vlaneseq
      %v685 = vshrl.u32 %v684, 7
      %v686 = vsub.s32 3, %v685
      %v687 = vrot.slane %v321, %v686
      %v688 = vlaneseq
      %v689 = vshrl.u32 %v688, 7
      %v690 = vsub.s32 4, %v689
      %v691 = vrot.slane %v321, %v690
      %v692 = vlaneseq
      %v693 = vshrl.u32 %v692, 7
      %v694 = vsub.s32 5, %v693
      %v695 = vrot.slane %v321, %v694
      %v696 = vlaneseq
      %v697 = vshrl.u32 %v696, 7
      %v698 = vsub.s32 6, %v697
      %v699 = vrot.slane %v321, %v698
      %v700 = vlaneseq
      %v701 = vshrl.u32 %v700, 7
      %v702 = vsub.s32 7, %v701
      %v703 = vrot.slane %v321, %v702
      %720 = vset.pattern.permute.xlu0 3
      %721 = vperm.xlu0 %720, %v374
      %v722 = vpop.permute.xlu0 %721
      %v724 = vmin.f32 %v643, %v722
      %v725 = vmin.f32 %v647, %v722
      %v726 = vmin.f32 %v651, %v722
      %v727 = vmin.f32 %v655, %v722
      %v728 = vmin.f32 %v659, %v722
      %v729 = vmin.f32 %v663, %v722
      %v730 = vmin.f32 %v667, %v722
      %v731 = vmin.f32 %v671, %v722
      %v732 = vmin.f32 %v675, %v722
      %v733 = vmin.f32 %v679, %v722
      %v734 = vmin.f32 %v683, %v722
      %v735 = vmin.f32 %v687, %v722
      %v736 = vmin.f32 %v691, %v722
      %v737 = vmin.f32 %v695, %v722
      %v738 = vmin.f32 %v699, %v722
      %v739 = vmin.f32 %v703, %v722
      %v742 = vlaneseq
      %v743 = vshrl.u32 %v742, 7
      %v744 = vsub.s32 0, %v743
      %v745 = vrot.slane %v301, %v744
      %v746 = vlaneseq
      %v747 = vshrl.u32 %v746, 7
      %v748 = vsub.s32 1, %v747
      %v749 = vrot.slane %v301, %v748
      %v750 = vlaneseq
      %v751 = vshrl.u32 %v750, 7
      %v752 = vsub.s32 2, %v751
      %v753 = vrot.slane %v301, %v752
      %v754 = vlaneseq
      %v755 = vshrl.u32 %v754, 7
      %v756 = vsub.s32 3, %v755
      %v757 = vrot.slane %v301, %v756
      %v758 = vlaneseq
      %v759 = vshrl.u32 %v758, 7
      %v760 = vsub.s32 4, %v759
      %v761 = vrot.slane %v301, %v760
      %v762 = vlaneseq
      %v763 = vshrl.u32 %v762, 7
      %v764 = vsub.s32 5, %v763
      %v765 = vrot.slane %v301, %v764
      %v766 = vlaneseq
      %v767 = vshrl.u32 %v766, 7
      %v768 = vsub.s32 6, %v767
      %v769 = vrot.slane %v301, %v768
      %v770 = vlaneseq
      %v771 = vshrl.u32 %v770, 7
      %v772 = vsub.s32 7, %v771
      %v773 = vrot.slane %v301, %v772
      %v774 = vlaneseq
      %v775 = vshrl.u32 %v774, 7
      %v776 = vsub.s32 0, %v775
      %v777 = vrot.slane %v305, %v776
      %v778 = vlaneseq
      %v779 = vshrl.u32 %v778, 7
      %v780 = vsub.s32 1, %v779
      %v781 = vrot.slane %v305, %v780
      %v782 = vlaneseq
      %v783 = vshrl.u32 %v782, 7
      %v784 = vsub.s32 2, %v783
      %v785 = vrot.slane %v305, %v784
      %v786 = vlaneseq
      %v787 = vshrl.u32 %v786, 7
      %v788 = vsub.s32 3, %v787
      %v789 = vrot.slane %v305, %v788
      %v790 = vlaneseq
      %v791 = vshrl.u32 %v790, 7
      %v792 = vsub.s32 4, %v791
      %v793 = vrot.slane %v305, %v792
      %v794 = vlaneseq
      %v795 = vshrl.u32 %v794, 7
      %v796 = vsub.s32 5, %v795
      %v797 = vrot.slane %v305, %v796
      %v798 = vlaneseq
      %v799 = vshrl.u32 %v798, 7
      %v800 = vsub.s32 6, %v799
      %v801 = vrot.slane %v305, %v800
      %v802 = vlaneseq
      %v803 = vshrl.u32 %v802, 7
      %v804 = vsub.s32 7, %v803
      %v805 = vrot.slane %v305, %v804
      %822 = vset.pattern.permute.xlu0 1
      %823 = vperm.xlu0 %822, %v374
      %v824 = vpop.permute.xlu0 %823
      %v826 = vmax.f32 %v745, %v824
      %v827 = vmax.f32 %v749, %v824
      %v828 = vmax.f32 %v753, %v824
      %v829 = vmax.f32 %v757, %v824
      %v830 = vmax.f32 %v761, %v824
      %v831 = vmax.f32 %v765, %v824
      %v832 = vmax.f32 %v769, %v824
      %v833 = vmax.f32 %v773, %v824
      %v834 = vmax.f32 %v777, %v824
      %v835 = vmax.f32 %v781, %v824
      %v836 = vmax.f32 %v785, %v824
      %v837 = vmax.f32 %v789, %v824
      %v838 = vmax.f32 %v793, %v824
      %v839 = vmax.f32 %v797, %v824
      %v840 = vmax.f32 %v801, %v824
      %v841 = vmax.f32 %v805, %v824
      %v842 = vsub.f32 %v724, %v826
      %v843 = vsub.f32 %v725, %v827
      %v844 = vsub.f32 %v726, %v828
      %v845 = vsub.f32 %v727, %v829
      %v846 = vsub.f32 %v728, %v830
      %v847 = vsub.f32 %v729, %v831
      %v848 = vsub.f32 %v730, %v832
      %v849 = vsub.f32 %v731, %v833
      %v850 = vsub.f32 %v732, %v834
      %v851 = vsub.f32 %v733, %v835
      %v852 = vsub.f32 %v734, %v836
      %v853 = vsub.f32 %v735, %v837
      %v854 = vsub.f32 %v736, %v838
      %v855 = vsub.f32 %v737, %v839
      %v856 = vsub.f32 %v738, %v840
      %v857 = vsub.f32 %v739, %v841
      %v858 = vadd.f32 %v842, 1.0
      %v859 = vadd.f32 %v843, 1.0
      %v860 = vadd.f32 %v844, 1.0
      %v861 = vadd.f32 %v845, 1.0
      %v862 = vadd.f32 %v846, 1.0
      %v863 = vadd.f32 %v847, 1.0
      %v864 = vadd.f32 %v848, 1.0
      %v865 = vadd.f32 %v849, 1.0
      %v866 = vadd.f32 %v850, 1.0
      %v867 = vadd.f32 %v851, 1.0
      %v868 = vadd.f32 %v852, 1.0
      %v869 = vadd.f32 %v853, 1.0
      %v870 = vadd.f32 %v854, 1.0
      %v871 = vadd.f32 %v855, 1.0
      %v872 = vadd.f32 %v856, 1.0
      %v873 = vadd.f32 %v857, 1.0
      %v874 = vmax.f32 %v858, 0.0
      %v875 = vmax.f32 %v859, 0.0
      %v876 = vmax.f32 %v860, 0.0
      %v877 = vmax.f32 %v861, 0.0
      %v878 = vmax.f32 %v862, 0.0
      %v879 = vmax.f32 %v863, 0.0
      %v880 = vmax.f32 %v864, 0.0
      %v881 = vmax.f32 %v865, 0.0
      %v882 = vmax.f32 %v866, 0.0
      %v883 = vmax.f32 %v867, 0.0
      %v884 = vmax.f32 %v868, 0.0
      %v885 = vmax.f32 %v869, 0.0
      %v886 = vmax.f32 %v870, 0.0
      %v887 = vmax.f32 %v871, 0.0
      %v888 = vmax.f32 %v872, 0.0
      %v889 = vmax.f32 %v873, 0.0
      %v890 = vmul.f32 %v622, %v874
      %v891 = vmul.f32 %v623, %v875
      %v892 = vmul.f32 %v624, %v876
      %v893 = vmul.f32 %v625, %v877
      %v894 = vmul.f32 %v626, %v878
      %v895 = vmul.f32 %v627, %v879
      %v896 = vmul.f32 %v628, %v880
      %v897 = vmul.f32 %v629, %v881
      %v898 = vmul.f32 %v630, %v882
      %v899 = vmul.f32 %v631, %v883
      %v900 = vmul.f32 %v632, %v884
      %v901 = vmul.f32 %v633, %v885
      %v902 = vmul.f32 %v634, %v886
      %v903 = vmul.f32 %v635, %v887
      %v904 = vmul.f32 %v636, %v888
      %v905 = vmul.f32 %v637, %v889
      %v908 = vlaneseq
      %v909 = vshrl.u32 %v908, 7
      %v910 = vsub.s32 0, %v909
      %v911 = vrot.slane %v354, %v910
      %v912 = vlaneseq
      %v913 = vshrl.u32 %v912, 7
      %v914 = vsub.s32 1, %v913
      %v915 = vrot.slane %v354, %v914
      %v916 = vlaneseq
      %v917 = vshrl.u32 %v916, 7
      %v918 = vsub.s32 2, %v917
      %v919 = vrot.slane %v354, %v918
      %v920 = vlaneseq
      %v921 = vshrl.u32 %v920, 7
      %v922 = vsub.s32 3, %v921
      %v923 = vrot.slane %v354, %v922
      %v924 = vlaneseq
      %v925 = vshrl.u32 %v924, 7
      %v926 = vsub.s32 4, %v925
      %v927 = vrot.slane %v354, %v926
      %v928 = vlaneseq
      %v929 = vshrl.u32 %v928, 7
      %v930 = vsub.s32 5, %v929
      %v931 = vrot.slane %v354, %v930
      %v932 = vlaneseq
      %v933 = vshrl.u32 %v932, 7
      %v934 = vsub.s32 6, %v933
      %v935 = vrot.slane %v354, %v934
      %v936 = vlaneseq
      %v937 = vshrl.u32 %v936, 7
      %v938 = vsub.s32 7, %v937
      %v939 = vrot.slane %v354, %v938
      %v940 = vlaneseq
      %v941 = vshrl.u32 %v940, 7
      %v942 = vsub.s32 0, %v941
      %v943 = vrot.slane %v355, %v942
      %v944 = vlaneseq
      %v945 = vshrl.u32 %v944, 7
      %v946 = vsub.s32 1, %v945
      %v947 = vrot.slane %v355, %v946
      %v948 = vlaneseq
      %v949 = vshrl.u32 %v948, 7
      %v950 = vsub.s32 2, %v949
      %v951 = vrot.slane %v355, %v950
      %v952 = vlaneseq
      %v953 = vshrl.u32 %v952, 7
      %v954 = vsub.s32 3, %v953
      %v955 = vrot.slane %v355, %v954
      %v956 = vlaneseq
      %v957 = vshrl.u32 %v956, 7
      %v958 = vsub.s32 4, %v957
      %v959 = vrot.slane %v355, %v958
      %v960 = vlaneseq
      %v961 = vshrl.u32 %v960, 7
      %v962 = vsub.s32 5, %v961
      %v963 = vrot.slane %v355, %v962
      %v964 = vlaneseq
      %v965 = vshrl.u32 %v964, 7
      %v966 = vsub.s32 6, %v965
      %v967 = vrot.slane %v355, %v966
      %v968 = vlaneseq
      %v969 = vshrl.u32 %v968, 7
      %v970 = vsub.s32 7, %v969
      %v971 = vrot.slane %v355, %v970
      %989 = vset.pattern.permute.xlu0 2
      %990 = vperm.xlu0 %989, %v385
      %v991 = vpop.permute.xlu0 %990
      %v993 = vadd.f32 %v911, %v991
      %v994 = vadd.f32 %v915, %v991
      %v995 = vadd.f32 %v919, %v991
      %v996 = vadd.f32 %v923, %v991
      %v997 = vadd.f32 %v927, %v991
      %v998 = vadd.f32 %v931, %v991
      %v999 = vadd.f32 %v935, %v991
      %v1000 = vadd.f32 %v939, %v991
      %v1001 = vadd.f32 %v943, %v991
      %v1002 = vadd.f32 %v947, %v991
      %v1003 = vadd.f32 %v951, %v991
      %v1004 = vadd.f32 %v955, %v991
      %v1005 = vadd.f32 %v959, %v991
      %v1006 = vadd.f32 %v963, %v991
      %v1007 = vadd.f32 %v967, %v991
      %v1008 = vadd.f32 %v971, %v991
      %v1009 = vsub.f32 %v993, %v890
      %v1010 = vsub.f32 %v994, %v891
      %v1011 = vsub.f32 %v995, %v892
      %v1012 = vsub.f32 %v996, %v893
      %v1013 = vsub.f32 %v997, %v894
      %v1014 = vsub.f32 %v998, %v895
      %v1015 = vsub.f32 %v999, %v896
      %v1016 = vsub.f32 %v1000, %v897
      %v1017 = vsub.f32 %v1001, %v898
      %v1018 = vsub.f32 %v1002, %v899
      %v1019 = vsub.f32 %v1003, %v900
      %v1020 = vsub.f32 %v1004, %v901
      %v1021 = vsub.f32 %v1005, %v902
      %v1022 = vsub.f32 %v1006, %v903
      %v1023 = vsub.f32 %v1007, %v904
      %v1024 = vsub.f32 %v1008, %v905
      %v1025 = vrcp.pop %v1009
      %v1026 = vmul.f32 %v890, %v1025
      %v1027 = vrcp.pop %v1010
      %v1028 = vmul.f32 %v891, %v1027
      %v1029 = vrcp.pop %v1011
      %v1030 = vmul.f32 %v892, %v1029
      %v1031 = vrcp.pop %v1012
      %v1032 = vmul.f32 %v893, %v1031
      %v1033 = vrcp.pop %v1013
      %v1034 = vmul.f32 %v894, %v1033
      %v1035 = vrcp.pop %v1014
      %v1036 = vmul.f32 %v895, %v1035
      %v1037 = vrcp.pop %v1015
      %v1038 = vmul.f32 %v896, %v1037
      %v1039 = vrcp.pop %v1016
      %v1040 = vmul.f32 %v897, %v1039
      %v1041 = vrcp.pop %v1017
      %v1042 = vmul.f32 %v898, %v1041
      %v1043 = vrcp.pop %v1018
      %v1044 = vmul.f32 %v899, %v1043
      %v1045 = vrcp.pop %v1019
      %v1046 = vmul.f32 %v900, %v1045
      %v1047 = vrcp.pop %v1020
      %v1048 = vmul.f32 %v901, %v1047
      %v1049 = vrcp.pop %v1021
      %v1050 = vmul.f32 %v902, %v1049
      %v1051 = vrcp.pop %v1022
      %v1052 = vmul.f32 %v903, %v1051
      %v1053 = vrcp.pop %v1023
      %v1054 = vmul.f32 %v904, %v1053
      %v1055 = vrcp.pop %v1024
      %v1056 = vmul.f32 %v905, %v1055
      %v1057 = vlaneseq
      %v1058 = vshrl.u32 %v1057, 7
      %v1059 = vstv %s290
      %vm1060 = vcmp.lt.s32.totalorder %v1058, %v1059
      %v1061 = vsel %vm1060, 1, 0
      %vm1062 = vcmp.eq.s32.totalorder %v1061, 1
      %v1063 = vsel %vm1062, %v1026, -1.0
      %v1064 = vsel %vm1062, %v1028, -1.0
      %v1065 = vsel %vm1062, %v1030, -1.0
      %v1066 = vsel %vm1062, %v1032, -1.0
      %v1067 = vsel %vm1062, %v1034, -1.0
      %v1068 = vsel %vm1062, %v1036, -1.0
      %v1069 = vsel %vm1062, %v1038, -1.0
      %v1070 = vsel %vm1062, %v1040, -1.0
      %v1071 = vsel %vm1062, %v1042, -1.0
      %v1072 = vsel %vm1062, %v1044, -1.0
      %v1073 = vsel %vm1062, %v1046, -1.0
      %v1074 = vsel %vm1062, %v1048, -1.0
      %v1075 = vsel %vm1062, %v1050, -1.0
      %v1076 = vsel %vm1062, %v1052, -1.0
      %v1077 = vsel %vm1062, %v1054, -1.0
      %v1078 = vsel %vm1062, %v1056, -1.0
      %v1079 = vrot.slane %v1063, 4
      %v1080 = vmax.f32 %v1063, %v1079
      %v1081 = vrot.slane %v1080, 2
      %v1082 = vmax.f32 %v1080, %v1081
      %v1083 = vrot.slane %v1082, 1
      %v1084 = vmax.f32 %v1082, %v1083
      %v1085 = vrot.slane %v1064, 4
      %v1086 = vmax.f32 %v1064, %v1085
      %v1087 = vrot.slane %v1086, 2
      %v1088 = vmax.f32 %v1086, %v1087
      %v1089 = vrot.slane %v1088, 1
      %v1090 = vmax.f32 %v1088, %v1089
      %v1091 = vrot.slane %v1065, 4
      %v1092 = vmax.f32 %v1065, %v1091
      %v1093 = vrot.slane %v1092, 2
      %v1094 = vmax.f32 %v1092, %v1093
      %v1095 = vrot.slane %v1094, 1
      %v1096 = vmax.f32 %v1094, %v1095
      %v1097 = vrot.slane %v1066, 4
      %v1098 = vmax.f32 %v1066, %v1097
      %v1099 = vrot.slane %v1098, 2
      %v1100 = vmax.f32 %v1098, %v1099
      %v1101 = vrot.slane %v1100, 1
      %v1102 = vmax.f32 %v1100, %v1101
      %v1103 = vrot.slane %v1067, 4
      %v1104 = vmax.f32 %v1067, %v1103
      %v1105 = vrot.slane %v1104, 2
      %v1106 = vmax.f32 %v1104, %v1105
      %v1107 = vrot.slane %v1106, 1
      %v1108 = vmax.f32 %v1106, %v1107
      %v1109 = vrot.slane %v1068, 4
      %v1110 = vmax.f32 %v1068, %v1109
      %v1111 = vrot.slane %v1110, 2
      %v1112 = vmax.f32 %v1110, %v1111
      %v1113 = vrot.slane %v1112, 1
      %v1114 = vmax.f32 %v1112, %v1113
      %v1115 = vrot.slane %v1069, 4
      %v1116 = vmax.f32 %v1069, %v1115
      %v1117 = vrot.slane %v1116, 2
      %v1118 = vmax.f32 %v1116, %v1117
      %v1119 = vrot.slane %v1118, 1
      %v1120 = vmax.f32 %v1118, %v1119
      %v1121 = vrot.slane %v1070, 4
      %v1122 = vmax.f32 %v1070, %v1121
      %v1123 = vrot.slane %v1122, 2
      %v1124 = vmax.f32 %v1122, %v1123
      %v1125 = vrot.slane %v1124, 1
      %v1126 = vmax.f32 %v1124, %v1125
      %v1127 = vrot.slane %v1071, 4
      %v1128 = vmax.f32 %v1071, %v1127
      %v1129 = vrot.slane %v1128, 2
      %v1130 = vmax.f32 %v1128, %v1129
      %v1131 = vrot.slane %v1130, 1
      %v1132 = vmax.f32 %v1130, %v1131
      %v1133 = vrot.slane %v1072, 4
      %v1134 = vmax.f32 %v1072, %v1133
      %v1135 = vrot.slane %v1134, 2
      %v1136 = vmax.f32 %v1134, %v1135
      %v1137 = vrot.slane %v1136, 1
      %v1138 = vmax.f32 %v1136, %v1137
      %v1139 = vrot.slane %v1073, 4
      %v1140 = vmax.f32 %v1073, %v1139
      %v1141 = vrot.slane %v1140, 2
      %v1142 = vmax.f32 %v1140, %v1141
      %v1143 = vrot.slane %v1142, 1
      %v1144 = vmax.f32 %v1142, %v1143
      %v1145 = vrot.slane %v1074, 4
      %v1146 = vmax.f32 %v1074, %v1145
      %v1147 = vrot.slane %v1146, 2
      %v1148 = vmax.f32 %v1146, %v1147
      %v1149 = vrot.slane %v1148, 1
      %v1150 = vmax.f32 %v1148, %v1149
      %v1151 = vrot.slane %v1075, 4
      %v1152 = vmax.f32 %v1075, %v1151
      %v1153 = vrot.slane %v1152, 2
      %v1154 = vmax.f32 %v1152, %v1153
      %v1155 = vrot.slane %v1154, 1
      %v1156 = vmax.f32 %v1154, %v1155
      %v1157 = vrot.slane %v1076, 4
      %v1158 = vmax.f32 %v1076, %v1157
      %v1159 = vrot.slane %v1158, 2
      %v1160 = vmax.f32 %v1158, %v1159
      %v1161 = vrot.slane %v1160, 1
      %v1162 = vmax.f32 %v1160, %v1161
      %v1163 = vrot.slane %v1077, 4
      %v1164 = vmax.f32 %v1077, %v1163
      %v1165 = vrot.slane %v1164, 2
      %v1166 = vmax.f32 %v1164, %v1165
      %v1167 = vrot.slane %v1166, 1
      %v1168 = vmax.f32 %v1166, %v1167
      %v1169 = vrot.slane %v1078, 4
      %v1170 = vmax.f32 %v1078, %v1169
      %v1171 = vrot.slane %v1170, 2
      %v1172 = vmax.f32 %v1170, %v1171
      %v1173 = vrot.slane %v1172, 1
      %v1174 = vmax.f32 %v1172, %v1173
      %vm1175 = vcmp.eq.f32.partialorder %v1063, %v1084
      %vm1176 = vcmp.eq.f32.partialorder %v1064, %v1090
      %vm1177 = vcmp.eq.f32.partialorder %v1065, %v1096
      %vm1178 = vcmp.eq.f32.partialorder %v1066, %v1102
      %vm1179 = vcmp.eq.f32.partialorder %v1067, %v1108
      %vm1180 = vcmp.eq.f32.partialorder %v1068, %v1114
      %vm1181 = vcmp.eq.f32.partialorder %v1069, %v1120
      %vm1182 = vcmp.eq.f32.partialorder %v1070, %v1126
      %vm1183 = vcmp.eq.f32.partialorder %v1071, %v1132
      %vm1184 = vcmp.eq.f32.partialorder %v1072, %v1138
      %vm1185 = vcmp.eq.f32.partialorder %v1073, %v1144
      %vm1186 = vcmp.eq.f32.partialorder %v1074, %v1150
      %vm1187 = vcmp.eq.f32.partialorder %v1075, %v1156
      %vm1188 = vcmp.eq.f32.partialorder %v1076, %v1162
      %vm1189 = vcmp.eq.f32.partialorder %v1077, %v1168
      %vm1190 = vcmp.eq.f32.partialorder %v1078, %v1174
      %v1191 = vsel %vm1175, %v1058, 8
      %v1192 = vsel %vm1176, %v1058, 8
      %v1193 = vsel %vm1177, %v1058, 8
      %v1194 = vsel %vm1178, %v1058, 8
      %v1195 = vsel %vm1179, %v1058, 8
      %v1196 = vsel %vm1180, %v1058, 8
      %v1197 = vsel %vm1181, %v1058, 8
      %v1198 = vsel %vm1182, %v1058, 8
      %v1199 = vsel %vm1183, %v1058, 8
      %v1200 = vsel %vm1184, %v1058, 8
      %v1201 = vsel %vm1185, %v1058, 8
      %v1202 = vsel %vm1186, %v1058, 8
      %v1203 = vsel %vm1187, %v1058, 8
      %v1204 = vsel %vm1188, %v1058, 8
      %v1205 = vsel %vm1189, %v1058, 8
      %v1206 = vsel %vm1190, %v1058, 8
      %v1207 = vrot.slane %v1191, 4
      %vm1208 = vcmp.lt.s32.totalorder %v1191, %v1207
      %v1209 = vsel %vm1208, %v1191, %v1207
      %v1210 = vrot.slane %v1209, 2
      %vm1211 = vcmp.lt.s32.totalorder %v1209, %v1210
      %v1212 = vsel %vm1211, %v1209, %v1210
      %v1213 = vrot.slane %v1212, 1
      %vm1214 = vcmp.lt.s32.totalorder %v1212, %v1213
      %v1215 = vsel %vm1214, %v1212, %v1213
      %v1216 = vrot.slane %v1192, 4
      %vm1217 = vcmp.lt.s32.totalorder %v1192, %v1216
      %v1218 = vsel %vm1217, %v1192, %v1216
      %v1219 = vrot.slane %v1218, 2
      %vm1220 = vcmp.lt.s32.totalorder %v1218, %v1219
      %v1221 = vsel %vm1220, %v1218, %v1219
      %v1222 = vrot.slane %v1221, 1
      %vm1223 = vcmp.lt.s32.totalorder %v1221, %v1222
      %v1224 = vsel %vm1223, %v1221, %v1222
      %v1225 = vrot.slane %v1193, 4
      %vm1226 = vcmp.lt.s32.totalorder %v1193, %v1225
      %v1227 = vsel %vm1226, %v1193, %v1225
      %v1228 = vrot.slane %v1227, 2
      %vm1229 = vcmp.lt.s32.totalorder %v1227, %v1228
      %v1230 = vsel %vm1229, %v1227, %v1228
      %v1231 = vrot.slane %v1230, 1
      %vm1232 = vcmp.lt.s32.totalorder %v1230, %v1231
      %v1233 = vsel %vm1232, %v1230, %v1231
      %v1234 = vrot.slane %v1194, 4
      %vm1235 = vcmp.lt.s32.totalorder %v1194, %v1234
      %v1236 = vsel %vm1235, %v1194, %v1234
      %v1237 = vrot.slane %v1236, 2
      %vm1238 = vcmp.lt.s32.totalorder %v1236, %v1237
      %v1239 = vsel %vm1238, %v1236, %v1237
      %v1240 = vrot.slane %v1239, 1
      %vm1241 = vcmp.lt.s32.totalorder %v1239, %v1240
      %v1242 = vsel %vm1241, %v1239, %v1240
      %v1243 = vrot.slane %v1195, 4
      %vm1244 = vcmp.lt.s32.totalorder %v1195, %v1243
      %v1245 = vsel %vm1244, %v1195, %v1243
      %v1246 = vrot.slane %v1245, 2
      %vm1247 = vcmp.lt.s32.totalorder %v1245, %v1246
      %v1248 = vsel %vm1247, %v1245, %v1246
      %v1249 = vrot.slane %v1248, 1
      %vm1250 = vcmp.lt.s32.totalorder %v1248, %v1249
      %v1251 = vsel %vm1250, %v1248, %v1249
      %v1252 = vrot.slane %v1196, 4
      %vm1253 = vcmp.lt.s32.totalorder %v1196, %v1252
      %v1254 = vsel %vm1253, %v1196, %v1252
      %v1255 = vrot.slane %v1254, 2
      %vm1256 = vcmp.lt.s32.totalorder %v1254, %v1255
      %v1257 = vsel %vm1256, %v1254, %v1255
      %v1258 = vrot.slane %v1257, 1
      %vm1259 = vcmp.lt.s32.totalorder %v1257, %v1258
      %v1260 = vsel %vm1259, %v1257, %v1258
      %v1261 = vrot.slane %v1197, 4
      %vm1262 = vcmp.lt.s32.totalorder %v1197, %v1261
      %v1263 = vsel %vm1262, %v1197, %v1261
      %v1264 = vrot.slane %v1263, 2
      %vm1265 = vcmp.lt.s32.totalorder %v1263, %v1264
      %v1266 = vsel %vm1265, %v1263, %v1264
      %v1267 = vrot.slane %v1266, 1
      %vm1268 = vcmp.lt.s32.totalorder %v1266, %v1267
      %v1269 = vsel %vm1268, %v1266, %v1267
      %v1270 = vrot.slane %v1198, 4
      %vm1271 = vcmp.lt.s32.totalorder %v1198, %v1270
      %v1272 = vsel %vm1271, %v1198, %v1270
      %v1273 = vrot.slane %v1272, 2
      %vm1274 = vcmp.lt.s32.totalorder %v1272, %v1273
      %v1275 = vsel %vm1274, %v1272, %v1273
      %v1276 = vrot.slane %v1275, 1
      %vm1277 = vcmp.lt.s32.totalorder %v1275, %v1276
      %v1278 = vsel %vm1277, %v1275, %v1276
      %v1279 = vrot.slane %v1199, 4
      %vm1280 = vcmp.lt.s32.totalorder %v1199, %v1279
      %v1281 = vsel %vm1280, %v1199, %v1279
      %v1282 = vrot.slane %v1281, 2
      %vm1283 = vcmp.lt.s32.totalorder %v1281, %v1282
      %v1284 = vsel %vm1283, %v1281, %v1282
      %v1285 = vrot.slane %v1284, 1
      %vm1286 = vcmp.lt.s32.totalorder %v1284, %v1285
      %v1287 = vsel %vm1286, %v1284, %v1285
      %v1288 = vrot.slane %v1200, 4
      %vm1289 = vcmp.lt.s32.totalorder %v1200, %v1288
      %v1290 = vsel %vm1289, %v1200, %v1288
      %v1291 = vrot.slane %v1290, 2
      %vm1292 = vcmp.lt.s32.totalorder %v1290, %v1291
      %v1293 = vsel %vm1292, %v1290, %v1291
      %v1294 = vrot.slane %v1293, 1
      %vm1295 = vcmp.lt.s32.totalorder %v1293, %v1294
      %v1296 = vsel %vm1295, %v1293, %v1294
      %v1297 = vrot.slane %v1201, 4
      %vm1298 = vcmp.lt.s32.totalorder %v1201, %v1297
      %v1299 = vsel %vm1298, %v1201, %v1297
      %v1300 = vrot.slane %v1299, 2
      %vm1301 = vcmp.lt.s32.totalorder %v1299, %v1300
      %v1302 = vsel %vm1301, %v1299, %v1300
      %v1303 = vrot.slane %v1302, 1
      %vm1304 = vcmp.lt.s32.totalorder %v1302, %v1303
      %v1305 = vsel %vm1304, %v1302, %v1303
      %v1306 = vrot.slane %v1202, 4
      %vm1307 = vcmp.lt.s32.totalorder %v1202, %v1306
      %v1308 = vsel %vm1307, %v1202, %v1306
      %v1309 = vrot.slane %v1308, 2
      %vm1310 = vcmp.lt.s32.totalorder %v1308, %v1309
      %v1311 = vsel %vm1310, %v1308, %v1309
      %v1312 = vrot.slane %v1311, 1
      %vm1313 = vcmp.lt.s32.totalorder %v1311, %v1312
      %v1314 = vsel %vm1313, %v1311, %v1312
      %v1315 = vrot.slane %v1203, 4
      %vm1316 = vcmp.lt.s32.totalorder %v1203, %v1315
      %v1317 = vsel %vm1316, %v1203, %v1315
      %v1318 = vrot.slane %v1317, 2
      %vm1319 = vcmp.lt.s32.totalorder %v1317, %v1318
      %v1320 = vsel %vm1319, %v1317, %v1318
      %v1321 = vrot.slane %v1320, 1
      %vm1322 = vcmp.lt.s32.totalorder %v1320, %v1321
      %v1323 = vsel %vm1322, %v1320, %v1321
      %v1324 = vrot.slane %v1204, 4
      %vm1325 = vcmp.lt.s32.totalorder %v1204, %v1324
      %v1326 = vsel %vm1325, %v1204, %v1324
      %v1327 = vrot.slane %v1326, 2
      %vm1328 = vcmp.lt.s32.totalorder %v1326, %v1327
      %v1329 = vsel %vm1328, %v1326, %v1327
      %v1330 = vrot.slane %v1329, 1
      %vm1331 = vcmp.lt.s32.totalorder %v1329, %v1330
      %v1332 = vsel %vm1331, %v1329, %v1330
      %v1333 = vrot.slane %v1205, 4
      %vm1334 = vcmp.lt.s32.totalorder %v1205, %v1333
      %v1335 = vsel %vm1334, %v1205, %v1333
      %v1336 = vrot.slane %v1335, 2
      %vm1337 = vcmp.lt.s32.totalorder %v1335, %v1336
      %v1338 = vsel %vm1337, %v1335, %v1336
      %v1339 = vrot.slane %v1338, 1
      %vm1340 = vcmp.lt.s32.totalorder %v1338, %v1339
      %v1341 = vsel %vm1340, %v1338, %v1339
      %v1342 = vrot.slane %v1206, 4
      %vm1343 = vcmp.lt.s32.totalorder %v1206, %v1342
      %v1344 = vsel %vm1343, %v1206, %v1342
      %v1345 = vrot.slane %v1344, 2
      %vm1346 = vcmp.lt.s32.totalorder %v1344, %v1345
      %v1347 = vsel %vm1346, %v1344, %v1345
      %v1348 = vrot.slane %v1347, 1
      %vm1349 = vcmp.lt.s32.totalorder %v1347, %v1348
      %v1350 = vsel %vm1349, %v1347, %v1348
      %s1351 = smul.u32 %s31, 2048
      %v1352 = vlaneseq
      %v1353 = vand.u32 %v1352, 127
      %v1354 = vadd.s32 %v1353, 128
      %v1355 = vadd.s32 %v1353, 256
      %v1356 = vadd.s32 %v1353, 384
      %v1357 = vadd.s32 %v1353, 512
      %v1358 = vadd.s32 %v1353, 640
      %v1359 = vadd.s32 %v1353, 768
      %v1360 = vadd.s32 %v1353, 896
      %v1361 = vadd.s32 %v1353, 1024
      %v1362 = vadd.s32 %v1353, 1152
      %v1363 = vadd.s32 %v1353, 1280
      %v1364 = vadd.s32 %v1353, 1408
      %v1365 = vadd.s32 %v1353, 1536
      %v1366 = vadd.s32 %v1353, 1664
      %v1367 = vadd.s32 %v1353, 1792
      %v1368 = vadd.s32 %v1353, 1920
      %v1369 = vstv %s1351
      %v1370 = vadd.s32 %v1369, %v1353
      %v1371 = vadd.s32 %v1369, %v1354
      %v1372 = vadd.s32 %v1369, %v1355
      %v1373 = vadd.s32 %v1369, %v1356
      %v1374 = vadd.s32 %v1369, %v1357
      %v1375 = vadd.s32 %v1369, %v1358
      %v1376 = vadd.s32 %v1369, %v1359
      %v1377 = vadd.s32 %v1369, %v1360
      %v1378 = vadd.s32 %v1369, %v1361
      %v1379 = vadd.s32 %v1369, %v1362
      %v1380 = vadd.s32 %v1369, %v1363
      %v1381 = vadd.s32 %v1369, %v1364
      %v1382 = vadd.s32 %v1369, %v1365
      %v1383 = vadd.s32 %v1369, %v1366
      %v1384 = vadd.s32 %v1369, %v1367
      %v1385 = vadd.s32 %v1369, %v1368
      %v1386 = vld [vmem:[%s275] sm:$0xff]
      %1387 = vset.pattern.permute.xlu0 0
      %1388 = vperm.xlu0 %1387, %v1386
      %v1389 = vpop.permute.xlu0 %1388
      %vm1390 = vcmp.eq.s32.totalorder %v1370, %v1389
      %vm1391 = vcmp.eq.s32.totalorder %v1371, %v1389
      %vm1392 = vcmp.eq.s32.totalorder %v1372, %v1389
      %vm1393 = vcmp.eq.s32.totalorder %v1373, %v1389
      %vm1394 = vcmp.eq.s32.totalorder %v1374, %v1389
      %vm1395 = vcmp.eq.s32.totalorder %v1375, %v1389
      %vm1396 = vcmp.eq.s32.totalorder %v1376, %v1389
      %vm1397 = vcmp.eq.s32.totalorder %v1377, %v1389
      %vm1398 = vcmp.eq.s32.totalorder %v1378, %v1389
      %vm1399 = vcmp.eq.s32.totalorder %v1379, %v1389
      %vm1400 = vcmp.eq.s32.totalorder %v1380, %v1389
      %vm1401 = vcmp.eq.s32.totalorder %v1381, %v1389
      %vm1402 = vcmp.eq.s32.totalorder %v1382, %v1389
      %vm1403 = vcmp.eq.s32.totalorder %v1383, %v1389
      %vm1404 = vcmp.eq.s32.totalorder %v1384, %v1389
      %vm1405 = vcmp.eq.s32.totalorder %v1385, %v1389
      %vm1406 = vmand %vm1390, %vm1062
      %vm1407 = vmand %vm1391, %vm1062
      %vm1408 = vmand %vm1392, %vm1062
      %vm1409 = vmand %vm1393, %vm1062
      %vm1410 = vmand %vm1394, %vm1062
      %vm1411 = vmand %vm1395, %vm1062
      %vm1412 = vmand %vm1396, %vm1062
      %vm1413 = vmand %vm1397, %vm1062
      %vm1414 = vmand %vm1398, %vm1062
      %vm1415 = vmand %vm1399, %vm1062
      %vm1416 = vmand %vm1400, %vm1062
      %vm1417 = vmand %vm1401, %vm1062
      %vm1418 = vmand %vm1402, %vm1062
      %vm1419 = vmand %vm1403, %vm1062
      %vm1420 = vmand %vm1404, %vm1062
      %vm1421 = vmand %vm1405, %vm1062
      %v1422 = vsel %vm1406, %v1058, 4294967295
      %v1423 = vsel %vm1407, %v1058, 4294967295
      %v1424 = vsel %vm1408, %v1058, 4294967295
      %v1425 = vsel %vm1409, %v1058, 4294967295
      %v1426 = vsel %vm1410, %v1058, 4294967295
      %v1427 = vsel %vm1411, %v1058, 4294967295
      %v1428 = vsel %vm1412, %v1058, 4294967295
      %v1429 = vsel %vm1413, %v1058, 4294967295
      %v1430 = vsel %vm1414, %v1058, 4294967295
      %v1431 = vsel %vm1415, %v1058, 4294967295
      %v1432 = vsel %vm1416, %v1058, 4294967295
      %v1433 = vsel %vm1417, %v1058, 4294967295
      %v1434 = vsel %vm1418, %v1058, 4294967295
      %v1435 = vsel %vm1419, %v1058, 4294967295
      %v1436 = vsel %vm1420, %v1058, 4294967295
      %v1437 = vsel %vm1421, %v1058, 4294967295
      %v1438 = vrot.slane %v1422, 4
      %vm1439 = vcmp.gt.s32.totalorder %v1422, %v1438
      %v1440 = vsel %vm1439, %v1422, %v1438
      %v1441 = vrot.slane %v1440, 2
      %vm1442 = vcmp.gt.s32.totalorder %v1440, %v1441
      %v1443 = vsel %vm1442, %v1440, %v1441
      %v1444 = vrot.slane %v1443, 1
      %vm1445 = vcmp.gt.s32.totalorder %v1443, %v1444
      %v1446 = vsel %vm1445, %v1443, %v1444
      %v1447 = vrot.slane %v1423, 4
      %vm1448 = vcmp.gt.s32.totalorder %v1423, %v1447
      %v1449 = vsel %vm1448, %v1423, %v1447
      %v1450 = vrot.slane %v1449, 2
      %vm1451 = vcmp.gt.s32.totalorder %v1449, %v1450
      %v1452 = vsel %vm1451, %v1449, %v1450
      %v1453 = vrot.slane %v1452, 1
      %vm1454 = vcmp.gt.s32.totalorder %v1452, %v1453
      %v1455 = vsel %vm1454, %v1452, %v1453
      %v1456 = vrot.slane %v1424, 4
      %vm1457 = vcmp.gt.s32.totalorder %v1424, %v1456
      %v1458 = vsel %vm1457, %v1424, %v1456
      %v1459 = vrot.slane %v1458, 2
      %vm1460 = vcmp.gt.s32.totalorder %v1458, %v1459
      %v1461 = vsel %vm1460, %v1458, %v1459
      %v1462 = vrot.slane %v1461, 1
      %vm1463 = vcmp.gt.s32.totalorder %v1461, %v1462
      %v1464 = vsel %vm1463, %v1461, %v1462
      %v1465 = vrot.slane %v1425, 4
      %vm1466 = vcmp.gt.s32.totalorder %v1425, %v1465
      %v1467 = vsel %vm1466, %v1425, %v1465
      %v1468 = vrot.slane %v1467, 2
      %vm1469 = vcmp.gt.s32.totalorder %v1467, %v1468
      %v1470 = vsel %vm1469, %v1467, %v1468
      %v1471 = vrot.slane %v1470, 1
      %vm1472 = vcmp.gt.s32.totalorder %v1470, %v1471
      %v1473 = vsel %vm1472, %v1470, %v1471
      %v1474 = vrot.slane %v1426, 4
      %vm1475 = vcmp.gt.s32.totalorder %v1426, %v1474
      %v1476 = vsel %vm1475, %v1426, %v1474
      %v1477 = vrot.slane %v1476, 2
      %vm1478 = vcmp.gt.s32.totalorder %v1476, %v1477
      %v1479 = vsel %vm1478, %v1476, %v1477
      %v1480 = vrot.slane %v1479, 1
      %vm1481 = vcmp.gt.s32.totalorder %v1479, %v1480
      %v1482 = vsel %vm1481, %v1479, %v1480
      %v1483 = vrot.slane %v1427, 4
      %vm1484 = vcmp.gt.s32.totalorder %v1427, %v1483
      %v1485 = vsel %vm1484, %v1427, %v1483
      %v1486 = vrot.slane %v1485, 2
      %vm1487 = vcmp.gt.s32.totalorder %v1485, %v1486
      %v1488 = vsel %vm1487, %v1485, %v1486
      %v1489 = vrot.slane %v1488, 1
      %vm1490 = vcmp.gt.s32.totalorder %v1488, %v1489
      %v1491 = vsel %vm1490, %v1488, %v1489
      %v1492 = vrot.slane %v1428, 4
      %vm1493 = vcmp.gt.s32.totalorder %v1428, %v1492
      %v1494 = vsel %vm1493, %v1428, %v1492
      %v1495 = vrot.slane %v1494, 2
      %vm1496 = vcmp.gt.s32.totalorder %v1494, %v1495
      %v1497 = vsel %vm1496, %v1494, %v1495
      %v1498 = vrot.slane %v1497, 1
      %vm1499 = vcmp.gt.s32.totalorder %v1497, %v1498
      %v1500 = vsel %vm1499, %v1497, %v1498
      %v1501 = vrot.slane %v1429, 4
      %vm1502 = vcmp.gt.s32.totalorder %v1429, %v1501
      %v1503 = vsel %vm1502, %v1429, %v1501
      %v1504 = vrot.slane %v1503, 2
      %vm1505 = vcmp.gt.s32.totalorder %v1503, %v1504
      %v1506 = vsel %vm1505, %v1503, %v1504
      %v1507 = vrot.slane %v1506, 1
      %vm1508 = vcmp.gt.s32.totalorder %v1506, %v1507
      %v1509 = vsel %vm1508, %v1506, %v1507
      %v1510 = vrot.slane %v1430, 4
      %vm1511 = vcmp.gt.s32.totalorder %v1430, %v1510
      %v1512 = vsel %vm1511, %v1430, %v1510
      %v1513 = vrot.slane %v1512, 2
      %vm1514 = vcmp.gt.s32.totalorder %v1512, %v1513
      %v1515 = vsel %vm1514, %v1512, %v1513
      %v1516 = vrot.slane %v1515, 1
      %vm1517 = vcmp.gt.s32.totalorder %v1515, %v1516
      %v1518 = vsel %vm1517, %v1515, %v1516
      %v1519 = vrot.slane %v1431, 4
      %vm1520 = vcmp.gt.s32.totalorder %v1431, %v1519
      %v1521 = vsel %vm1520, %v1431, %v1519
      %v1522 = vrot.slane %v1521, 2
      %vm1523 = vcmp.gt.s32.totalorder %v1521, %v1522
      %v1524 = vsel %vm1523, %v1521, %v1522
      %v1525 = vrot.slane %v1524, 1
      %vm1526 = vcmp.gt.s32.totalorder %v1524, %v1525
      %v1527 = vsel %vm1526, %v1524, %v1525
      %v1528 = vrot.slane %v1432, 4
      %vm1529 = vcmp.gt.s32.totalorder %v1432, %v1528
      %v1530 = vsel %vm1529, %v1432, %v1528
      %v1531 = vrot.slane %v1530, 2
      %vm1532 = vcmp.gt.s32.totalorder %v1530, %v1531
      %v1533 = vsel %vm1532, %v1530, %v1531
      %v1534 = vrot.slane %v1533, 1
      %vm1535 = vcmp.gt.s32.totalorder %v1533, %v1534
      %v1536 = vsel %vm1535, %v1533, %v1534
      %v1537 = vrot.slane %v1433, 4
      %vm1538 = vcmp.gt.s32.totalorder %v1433, %v1537
      %v1539 = vsel %vm1538, %v1433, %v1537
      %v1540 = vrot.slane %v1539, 2
      %vm1541 = vcmp.gt.s32.totalorder %v1539, %v1540
      %v1542 = vsel %vm1541, %v1539, %v1540
      %v1543 = vrot.slane %v1542, 1
      %vm1544 = vcmp.gt.s32.totalorder %v1542, %v1543
      %v1545 = vsel %vm1544, %v1542, %v1543
      %v1546 = vrot.slane %v1434, 4
      %vm1547 = vcmp.gt.s32.totalorder %v1434, %v1546
      %v1548 = vsel %vm1547, %v1434, %v1546
      %v1549 = vrot.slane %v1548, 2
      %vm1550 = vcmp.gt.s32.totalorder %v1548, %v1549
      %v1551 = vsel %vm1550, %v1548, %v1549
      %v1552 = vrot.slane %v1551, 1
      %vm1553 = vcmp.gt.s32.totalorder %v1551, %v1552
      %v1554 = vsel %vm1553, %v1551, %v1552
      %v1555 = vrot.slane %v1435, 4
      %vm1556 = vcmp.gt.s32.totalorder %v1435, %v1555
      %v1557 = vsel %vm1556, %v1435, %v1555
      %v1558 = vrot.slane %v1557, 2
      %vm1559 = vcmp.gt.s32.totalorder %v1557, %v1558
      %v1560 = vsel %vm1559, %v1557, %v1558
      %v1561 = vrot.slane %v1560, 1
      %vm1562 = vcmp.gt.s32.totalorder %v1560, %v1561
      %v1563 = vsel %vm1562, %v1560, %v1561
      %v1564 = vrot.slane %v1436, 4
      %vm1565 = vcmp.gt.s32.totalorder %v1436, %v1564
      %v1566 = vsel %vm1565, %v1436, %v1564
      %v1567 = vrot.slane %v1566, 2
      %vm1568 = vcmp.gt.s32.totalorder %v1566, %v1567
      %v1569 = vsel %vm1568, %v1566, %v1567
      %v1570 = vrot.slane %v1569, 1
      %vm1571 = vcmp.gt.s32.totalorder %v1569, %v1570
      %v1572 = vsel %vm1571, %v1569, %v1570
      %v1573 = vrot.slane %v1437, 4
      %vm1574 = vcmp.gt.s32.totalorder %v1437, %v1573
      %v1575 = vsel %vm1574, %v1437, %v1573
      %v1576 = vrot.slane %v1575, 2
      %vm1577 = vcmp.gt.s32.totalorder %v1575, %v1576
      %v1578 = vsel %vm1577, %v1575, %v1576
      %v1579 = vrot.slane %v1578, 1
      %vm1580 = vcmp.gt.s32.totalorder %v1578, %v1579
      %v1581 = vsel %vm1580, %v1578, %v1579
      %vm1582 = vcmp.ge.s32.totalorder %v1446, 0
      %vm1583 = vcmp.ge.s32.totalorder %v1455, 0
      %vm1584 = vcmp.ge.s32.totalorder %v1464, 0
      %vm1585 = vcmp.ge.s32.totalorder %v1473, 0
      %vm1586 = vcmp.ge.s32.totalorder %v1482, 0
      %vm1587 = vcmp.ge.s32.totalorder %v1491, 0
      %vm1588 = vcmp.ge.s32.totalorder %v1500, 0
      %vm1589 = vcmp.ge.s32.totalorder %v1509, 0
      %vm1590 = vcmp.ge.s32.totalorder %v1518, 0
      %vm1591 = vcmp.ge.s32.totalorder %v1527, 0
      %vm1592 = vcmp.ge.s32.totalorder %v1536, 0
      %vm1593 = vcmp.ge.s32.totalorder %v1545, 0
      %vm1594 = vcmp.ge.s32.totalorder %v1554, 0
      %vm1595 = vcmp.ge.s32.totalorder %v1563, 0
      %vm1596 = vcmp.ge.s32.totalorder %v1572, 0
      %vm1597 = vcmp.ge.s32.totalorder %v1581, 0
      %v1598 = vsel %vm1582, %v1446, %v1215
      %v1599 = vsel %vm1583, %v1455, %v1224
      %v1600 = vsel %vm1584, %v1464, %v1233
      %v1601 = vsel %vm1585, %v1473, %v1242
      %v1602 = vsel %vm1586, %v1482, %v1251
      %v1603 = vsel %vm1587, %v1491, %v1260
      %v1604 = vsel %vm1588, %v1500, %v1269
      %v1605 = vsel %vm1589, %v1509, %v1278
      %v1606 = vsel %vm1590, %v1518, %v1287
      %v1607 = vsel %vm1591, %v1527, %v1296
      %v1608 = vsel %vm1592, %v1536, %v1305
      %v1609 = vsel %vm1593, %v1545, %v1314
      %v1610 = vsel %vm1594, %v1554, %v1323
      %v1611 = vsel %vm1595, %v1563, %v1332
      %v1612 = vsel %vm1596, %v1572, %v1341
      %v1613 = vsel %vm1597, %v1581, %v1350
      %v1614 = vsel %vm1582, 2.0, %v1084
      %v1615 = vsel %vm1583, 2.0, %v1090
      %v1616 = vsel %vm1584, 2.0, %v1096
      %v1617 = vsel %vm1585, 2.0, %v1102
      %v1618 = vsel %vm1586, 2.0, %v1108
      %v1619 = vsel %vm1587, 2.0, %v1114
      %v1620 = vsel %vm1588, 2.0, %v1120
      %v1621 = vsel %vm1589, 2.0, %v1126
      %v1622 = vsel %vm1590, 2.0, %v1132
      %v1623 = vsel %vm1591, 2.0, %v1138
      %v1624 = vsel %vm1592, 2.0, %v1144
      %v1625 = vsel %vm1593, 2.0, %v1150
      %v1626 = vsel %vm1594, 2.0, %v1156
      %v1627 = vsel %vm1595, 2.0, %v1162
      %v1628 = vsel %vm1596, 2.0, %v1168
      %v1629 = vsel %vm1597, 2.0, %v1174
      %vm1630 = vcmp.eq.s32.totalorder %v1058, %v1598
      %vm1631 = vcmp.eq.s32.totalorder %v1058, %v1599
      %vm1632 = vcmp.eq.s32.totalorder %v1058, %v1600
      %vm1633 = vcmp.eq.s32.totalorder %v1058, %v1601
      %vm1634 = vcmp.eq.s32.totalorder %v1058, %v1602
      %vm1635 = vcmp.eq.s32.totalorder %v1058, %v1603
      %vm1636 = vcmp.eq.s32.totalorder %v1058, %v1604
      %vm1637 = vcmp.eq.s32.totalorder %v1058, %v1605
      %vm1638 = vcmp.eq.s32.totalorder %v1058, %v1606
      %vm1639 = vcmp.eq.s32.totalorder %v1058, %v1607
      %vm1640 = vcmp.eq.s32.totalorder %v1058, %v1608
      %vm1641 = vcmp.eq.s32.totalorder %v1058, %v1609
      %vm1642 = vcmp.eq.s32.totalorder %v1058, %v1610
      %vm1643 = vcmp.eq.s32.totalorder %v1058, %v1611
      %vm1644 = vcmp.eq.s32.totalorder %v1058, %v1612
      %vm1645 = vcmp.eq.s32.totalorder %v1058, %v1613
      %v1646 = vsel %vm1630, 1, 0
      %v1647 = vsel %vm1631, 1, 0
      %v1648 = vsel %vm1632, 1, 0
      %v1649 = vsel %vm1633, 1, 0
      %v1650 = vsel %vm1634, 1, 0
      %v1651 = vsel %vm1635, 1, 0
      %v1652 = vsel %vm1636, 1, 0
      %v1653 = vsel %vm1637, 1, 0
      %v1654 = vsel %vm1638, 1, 0
      %v1655 = vsel %vm1639, 1, 0
      %v1656 = vsel %vm1640, 1, 0
      %v1657 = vsel %vm1641, 1, 0
      %v1658 = vsel %vm1642, 1, 0
      %v1659 = vsel %vm1643, 1, 0
      %v1660 = vsel %vm1644, 1, 0
      %v1661 = vsel %vm1645, 1, 0
      %v1662 = vcvt.s32.f32 %v1646
      %v1663 = vcvt.s32.f32 %v1647
      %v1664 = vcvt.s32.f32 %v1648
      %v1665 = vcvt.s32.f32 %v1649
      %v1666 = vcvt.s32.f32 %v1650
      %v1667 = vcvt.s32.f32 %v1651
      %v1668 = vcvt.s32.f32 %v1652
      %v1669 = vcvt.s32.f32 %v1653
      %v1670 = vcvt.s32.f32 %v1654
      %v1671 = vcvt.s32.f32 %v1655
      %v1672 = vcvt.s32.f32 %v1656
      %v1673 = vcvt.s32.f32 %v1657
      %v1674 = vcvt.s32.f32 %v1658
      %v1675 = vcvt.s32.f32 %v1659
      %v1676 = vcvt.s32.f32 %v1660
      %v1677 = vcvt.s32.f32 %v1661
      %v1678 = vld [vmem:[%s271] sm:$0xff]
      %vm1679 = vcmask 64512
      %v1681 = vsel %vm1679, %v1678, 0
      %1683 = vmatprep.subr.mxu0 %v1663
      %1684 = vmatpush1.msra.mxu0 %v1662
      %1685 = vmatprep.subr.mxu0 0.0
      %1686 = vmatpush1.msra.mxu0 0.0
      %1687 = vmatprep.subr.mxu0 0.0
      %1688 = vmatpush1.msra.mxu0 0.0
      %1689 = vmatprep.subr.mxu0 0.0
      %1690 = vmatpush1.msra.mxu0 0.0
      %1691 = vmatprep.subr.mxu0 0.0
      %1692 = vmatpush1.msra.mxu0 0.0
      %1693 = vmatprep.subr.mxu0 0.0
      %1694 = vmatpush1.msra.mxu0 0.0
      %1695 = vmatprep.subr.mxu0 0.0
      %1696 = vmatpush1.msra.mxu0 0.0
      %1697 = vmatprep.subr.mxu0 0.0
      %1698 = vmatpush1.msra.mxu0 0.0
      %1699 = vmatprep.subr.mxu0 0.0
      %1700 = vmatpush1.msra.mxu0 0.0
      %1701 = vmatprep.subr.mxu0 0.0
      %1702 = vmatpush1.msra.mxu0 0.0
      %1703 = vmatprep.subr.mxu0 0.0
      %1704 = vmatpush1.msra.mxu0 0.0
      %1705 = vmatprep.subr.mxu0 0.0
      %1706 = vmatpush1.msra.mxu0 0.0
      %1707 = vmatprep.subr.mxu0 0.0
      %1708 = vmatpush1.msra.mxu0 0.0
      %1709 = vmatprep.subr.mxu0 0.0
      %1710 = vmatpush1.msra.mxu0 0.0
      %1711 = vmatprep.subr.mxu0 0.0
      %1712 = vmatpush1.msra.mxu0 0.0
      %1713 = vmatprep.subr.mxu0 0.0
      %1714 = vmatpush1.msra.mxu0 0.0
      %1715 = vmatprep.subr.mxu0 0.0
      %1716 = vmatpush1.msra.mxu0 0.0
      %1717 = vmatprep.subr.mxu0 0.0
      %1718 = vmatpush1.msra.mxu0 0.0
      %1719 = vmatprep.subr.mxu0 0.0
      %1720 = vmatpush1.msra.mxu0 0.0
      %1721 = vmatprep.subr.mxu0 0.0
      %1722 = vmatpush1.msra.mxu0 0.0
      %1723 = vmatprep.subr.mxu0 0.0
      %1724 = vmatpush1.msra.mxu0 0.0
      %1725 = vmatprep.subr.mxu0 0.0
      %1726 = vmatpush1.msra.mxu0 0.0
      %1727 = vmatprep.subr.mxu0 0.0
      %1728 = vmatpush1.msra.mxu0 0.0
      %1729 = vmatprep.subr.mxu0 0.0
      %1730 = vmatpush1.msra.mxu0 0.0
      %1731 = vmatprep.subr.mxu0 0.0
      %1732 = vmatpush1.msra.mxu0 0.0
      %1733 = vmatprep.subr.mxu0 0.0
      %1734 = vmatpush1.msra.mxu0 0.0
      %1735 = vmatprep.subr.mxu0 0.0
      %1736 = vmatpush1.msra.mxu0 0.0
      %1737 = vmatprep.subr.mxu0 0.0
      %1738 = vmatpush1.msra.mxu0 0.0
      %1739 = vmatprep.subr.mxu0 0.0
      %1740 = vmatpush1.msra.mxu0 0.0
      %1741 = vmatprep.subr.mxu0 0.0
      %1742 = vmatpush1.msra.mxu0 0.0
      %1743 = vmatprep.subr.mxu0 0.0
      %1744 = vmatpush1.msra.mxu0 0.0
      %1745 = vmatprep.subr.mxu0 0.0
      %1746 = vmatpush1.msra.mxu0 0.0
      %1747 = vmatprep.mubr.f32.mxu0 0.0
      %1748 = vmatmul.mubr.f32.gmra.mrb[0].mxu0 %v1681
      %v1749 = vpop.f32.mrb[0].mxu0
      %v1750 = vadd.f32 0.0, %v1749
      %v1751 = vpop.f32.mrb[0].mxu0
      %v1752 = vadd.f32 0.0, %v1751
      %1753 = vdwg.mxu0
      %1754 = vmatprep.subr.mxu0 %v1665
      %1755 = vmatpush1.msra.mxu0 %v1664
      %1756 = vmatprep.subr.mxu0 0.0
      %1757 = vmatpush1.msra.mxu0 0.0
      %1758 = vmatprep.subr.mxu0 0.0
      %1759 = vmatpush1.msra.mxu0 0.0
      %1760 = vmatprep.subr.mxu0 0.0
      %1761 = vmatpush1.msra.mxu0 0.0
      %1762 = vmatprep.subr.mxu0 0.0
      %1763 = vmatpush1.msra.mxu0 0.0
      %1764 = vmatprep.subr.mxu0 0.0
      %1765 = vmatpush1.msra.mxu0 0.0
      %1766 = vmatprep.subr.mxu0 0.0
      %1767 = vmatpush1.msra.mxu0 0.0
      %1768 = vmatprep.subr.mxu0 0.0
      %1769 = vmatpush1.msra.mxu0 0.0
      %1770 = vmatprep.subr.mxu0 0.0
      %1771 = vmatpush1.msra.mxu0 0.0
      %1772 = vmatprep.subr.mxu0 0.0
      %1773 = vmatpush1.msra.mxu0 0.0
      %1774 = vmatprep.subr.mxu0 0.0
      %1775 = vmatpush1.msra.mxu0 0.0
      %1776 = vmatprep.subr.mxu0 0.0
      %1777 = vmatpush1.msra.mxu0 0.0
      %1778 = vmatprep.subr.mxu0 0.0
      %1779 = vmatpush1.msra.mxu0 0.0
      %1780 = vmatprep.subr.mxu0 0.0
      %1781 = vmatpush1.msra.mxu0 0.0
      %1782 = vmatprep.subr.mxu0 0.0
      %1783 = vmatpush1.msra.mxu0 0.0
      %1784 = vmatprep.subr.mxu0 0.0
      %1785 = vmatpush1.msra.mxu0 0.0
      %1786 = vmatprep.subr.mxu0 0.0
      %1787 = vmatpush1.msra.mxu0 0.0
      %1788 = vmatprep.subr.mxu0 0.0
      %1789 = vmatpush1.msra.mxu0 0.0
      %1790 = vmatprep.subr.mxu0 0.0
      %1791 = vmatpush1.msra.mxu0 0.0
      %1792 = vmatprep.subr.mxu0 0.0
      %1793 = vmatpush1.msra.mxu0 0.0
      %1794 = vmatprep.subr.mxu0 0.0
      %1795 = vmatpush1.msra.mxu0 0.0
      %1796 = vmatprep.subr.mxu0 0.0
      %1797 = vmatpush1.msra.mxu0 0.0
      %1798 = vmatprep.subr.mxu0 0.0
      %1799 = vmatpush1.msra.mxu0 0.0
      %1800 = vmatprep.subr.mxu0 0.0
      %1801 = vmatpush1.msra.mxu0 0.0
      %1802 = vmatprep.subr.mxu0 0.0
      %1803 = vmatpush1.msra.mxu0 0.0
      %1804 = vmatprep.subr.mxu0 0.0
      %1805 = vmatpush1.msra.mxu0 0.0
      %1806 = vmatprep.subr.mxu0 0.0
      %1807 = vmatpush1.msra.mxu0 0.0
      %1808 = vmatprep.subr.mxu0 0.0
      %1809 = vmatpush1.msra.mxu0 0.0
      %1810 = vmatprep.subr.mxu0 0.0
      %1811 = vmatpush1.msra.mxu0 0.0
      %1812 = vmatprep.subr.mxu0 0.0
      %1813 = vmatpush1.msra.mxu0 0.0
      %1814 = vmatprep.subr.mxu0 0.0
      %1815 = vmatpush1.msra.mxu0 0.0
      %1816 = vmatprep.subr.mxu0 0.0
      %1817 = vmatpush1.msra.mxu0 0.0
      %1818 = vmatprep.mubr.f32.mxu0 0.0
      %1819 = vmatmul.mubr.f32.gmra.mrb[0].mxu0 %v1681
      %v1820 = vpop.f32.mrb[0].mxu0
      %v1821 = vadd.f32 0.0, %v1820
      %v1822 = vpop.f32.mrb[0].mxu0
      %v1823 = vadd.f32 0.0, %v1822
      %1824 = vdwg.mxu0
      %1825 = vmatprep.subr.mxu0 %v1667
      %1826 = vmatpush1.msra.mxu0 %v1666
      %1827 = vmatprep.subr.mxu0 0.0
      %1828 = vmatpush1.msra.mxu0 0.0
      %1829 = vmatprep.subr.mxu0 0.0
      %1830 = vmatpush1.msra.mxu0 0.0
      %1831 = vmatprep.subr.mxu0 0.0
      %1832 = vmatpush1.msra.mxu0 0.0
      %1833 = vmatprep.subr.mxu0 0.0
      %1834 = vmatpush1.msra.mxu0 0.0
      %1835 = vmatprep.subr.mxu0 0.0
      %1836 = vmatpush1.msra.mxu0 0.0
      %1837 = vmatprep.subr.mxu0 0.0
      %1838 = vmatpush1.msra.mxu0 0.0
      %1839 = vmatprep.subr.mxu0 0.0
      %1840 = vmatpush1.msra.mxu0 0.0
      %1841 = vmatprep.subr.mxu0 0.0
      %1842 = vmatpush1.msra.mxu0 0.0
      %1843 = vmatprep.subr.mxu0 0.0
      %1844 = vmatpush1.msra.mxu0 0.0
      %1845 = vmatprep.subr.mxu0 0.0
      %1846 = vmatpush1.msra.mxu0 0.0
      %1847 = vmatprep.subr.mxu0 0.0
      %1848 = vmatpush1.msra.mxu0 0.0
      %1849 = vmatprep.subr.mxu0 0.0
      %1850 = vmatpush1.msra.mxu0 0.0
      %1851 = vmatprep.subr.mxu0 0.0
      %1852 = vmatpush1.msra.mxu0 0.0
      %1853 = vmatprep.subr.mxu0 0.0
      %1854 = vmatpush1.msra.mxu0 0.0
      %1855 = vmatprep.subr.mxu0 0.0
      %1856 = vmatpush1.msra.mxu0 0.0
      %1857 = vmatprep.subr.mxu0 0.0
      %1858 = vmatpush1.msra.mxu0 0.0
      %1859 = vmatprep.subr.mxu0 0.0
      %1860 = vmatpush1.msra.mxu0 0.0
      %1861 = vmatprep.subr.mxu0 0.0
      %1862 = vmatpush1.msra.mxu0 0.0
      %1863 = vmatprep.subr.mxu0 0.0
      %1864 = vmatpush1.msra.mxu0 0.0
      %1865 = vmatprep.subr.mxu0 0.0
      %1866 = vmatpush1.msra.mxu0 0.0
      %1867 = vmatprep.subr.mxu0 0.0
      %1868 = vmatpush1.msra.mxu0 0.0
      %1869 = vmatprep.subr.mxu0 0.0
      %1870 = vmatpush1.msra.mxu0 0.0
      %1871 = vmatprep.subr.mxu0 0.0
      %1872 = vmatpush1.msra.mxu0 0.0
      %1873 = vmatprep.subr.mxu0 0.0
      %1874 = vmatpush1.msra.mxu0 0.0
      %1875 = vmatprep.subr.mxu0 0.0
      %1876 = vmatpush1.msra.mxu0 0.0
      %1877 = vmatprep.subr.mxu0 0.0
      %1878 = vmatpush1.msra.mxu0 0.0
      %1879 = vmatprep.subr.mxu0 0.0
      %1880 = vmatpush1.msra.mxu0 0.0
      %1881 = vmatprep.subr.mxu0 0.0
      %1882 = vmatpush1.msra.mxu0 0.0
      %1883 = vmatprep.subr.mxu0 0.0
      %1884 = vmatpush1.msra.mxu0 0.0
      %1885 = vmatprep.subr.mxu0 0.0
      %1886 = vmatpush1.msra.mxu0 0.0
      %1887 = vmatprep.subr.mxu0 0.0
      %1888 = vmatpush1.msra.mxu0 0.0
      %1889 = vmatprep.mubr.f32.mxu0 0.0
      %1890 = vmatmul.mubr.f32.gmra.mrb[0].mxu0 %v1681
      %v1891 = vpop.f32.mrb[0].mxu0
      %v1892 = vadd.f32 0.0, %v1891
      %v1893 = vpop.f32.mrb[0].mxu0
      %v1894 = vadd.f32 0.0, %v1893
      %1895 = vdwg.mxu0
      %1896 = vmatprep.subr.mxu0 %v1669
      %1897 = vmatpush1.msra.mxu0 %v1668
      %1898 = vmatprep.subr.mxu0 0.0
      %1899 = vmatpush1.msra.mxu0 0.0
      %1900 = vmatprep.subr.mxu0 0.0
      %1901 = vmatpush1.msra.mxu0 0.0
      %1902 = vmatprep.subr.mxu0 0.0
      %1903 = vmatpush1.msra.mxu0 0.0
      %1904 = vmatprep.subr.mxu0 0.0
      %1905 = vmatpush1.msra.mxu0 0.0
      %1906 = vmatprep.subr.mxu0 0.0
      %1907 = vmatpush1.msra.mxu0 0.0
      %1908 = vmatprep.subr.mxu0 0.0
      %1909 = vmatpush1.msra.mxu0 0.0
      %1910 = vmatprep.subr.mxu0 0.0
      %1911 = vmatpush1.msra.mxu0 0.0
      %1912 = vmatprep.subr.mxu0 0.0
      %1913 = vmatpush1.msra.mxu0 0.0
      %1914 = vmatprep.subr.mxu0 0.0
      %1915 = vmatpush1.msra.mxu0 0.0
      %1916 = vmatprep.subr.mxu0 0.0
      %1917 = vmatpush1.msra.mxu0 0.0
      %1918 = vmatprep.subr.mxu0 0.0
      %1919 = vmatpush1.msra.mxu0 0.0
      %1920 = vmatprep.subr.mxu0 0.0
      %1921 = vmatpush1.msra.mxu0 0.0
      %1922 = vmatprep.subr.mxu0 0.0
      %1923 = vmatpush1.msra.mxu0 0.0
      %1924 = vmatprep.subr.mxu0 0.0
      %1925 = vmatpush1.msra.mxu0 0.0
      %1926 = vmatprep.subr.mxu0 0.0
      %1927 = vmatpush1.msra.mxu0 0.0
      %1928 = vmatprep.subr.mxu0 0.0
      %1929 = vmatpush1.msra.mxu0 0.0
      %1930 = vmatprep.subr.mxu0 0.0
      %1931 = vmatpush1.msra.mxu0 0.0
      %1932 = vmatprep.subr.mxu0 0.0
      %1933 = vmatpush1.msra.mxu0 0.0
      %1934 = vmatprep.subr.mxu0 0.0
      %1935 = vmatpush1.msra.mxu0 0.0
      %1936 = vmatprep.subr.mxu0 0.0
      %1937 = vmatpush1.msra.mxu0 0.0
      %1938 = vmatprep.subr.mxu0 0.0
      %1939 = vmatpush1.msra.mxu0 0.0
      %1940 = vmatprep.subr.mxu0 0.0
      %1941 = vmatpush1.msra.mxu0 0.0
      %1942 = vmatprep.subr.mxu0 0.0
      %1943 = vmatpush1.msra.mxu0 0.0
      %1944 = vmatprep.subr.mxu0 0.0
      %1945 = vmatpush1.msra.mxu0 0.0
      %1946 = vmatprep.subr.mxu0 0.0
      %1947 = vmatpush1.msra.mxu0 0.0
      %1948 = vmatprep.subr.mxu0 0.0
      %1949 = vmatpush1.msra.mxu0 0.0
      %1950 = vmatprep.subr.mxu0 0.0
      %1951 = vmatpush1.msra.mxu0 0.0
      %1952 = vmatprep.subr.mxu0 0.0
      %1953 = vmatpush1.msra.mxu0 0.0
      %1954 = vmatprep.subr.mxu0 0.0
      %1955 = vmatpush1.msra.mxu0 0.0
      %1956 = vmatprep.subr.mxu0 0.0
      %1957 = vmatpush1.msra.mxu0 0.0
      %1958 = vmatprep.subr.mxu0 0.0
      %1959 = vmatpush1.msra.mxu0 0.0
      %1960 = vmatprep.mubr.f32.mxu0 0.0
      %1961 = vmatmul.mubr.f32.gmra.mrb[0].mxu0 %v1681
      %v1962 = vpop.f32.mrb[0].mxu0
      %v1963 = vadd.f32 0.0, %v1962
      %v1964 = vpop.f32.mrb[0].mxu0
      %v1965 = vadd.f32 0.0, %v1964
      %1966 = vdwg.mxu0
      %1967 = vmatprep.subr.mxu0 %v1671
      %1968 = vmatpush1.msra.mxu0 %v1670
      %1969 = vmatprep.subr.mxu0 0.0
      %1970 = vmatpush1.msra.mxu0 0.0
      %1971 = vmatprep.subr.mxu0 0.0
      %1972 = vmatpush1.msra.mxu0 0.0
      %1973 = vmatprep.subr.mxu0 0.0
      %1974 = vmatpush1.msra.mxu0 0.0
      %1975 = vmatprep.subr.mxu0 0.0
      %1976 = vmatpush1.msra.mxu0 0.0
      %1977 = vmatprep.subr.mxu0 0.0
      %1978 = vmatpush1.msra.mxu0 0.0
      %1979 = vmatprep.subr.mxu0 0.0
      %1980 = vmatpush1.msra.mxu0 0.0
      %1981 = vmatprep.subr.mxu0 0.0
      %1982 = vmatpush1.msra.mxu0 0.0
      %1983 = vmatprep.subr.mxu0 0.0
      %1984 = vmatpush1.msra.mxu0 0.0
      %1985 = vmatprep.subr.mxu0 0.0
      %1986 = vmatpush1.msra.mxu0 0.0
      %1987 = vmatprep.subr.mxu0 0.0
      %1988 = vmatpush1.msra.mxu0 0.0
      %1989 = vmatprep.subr.mxu0 0.0
      %1990 = vmatpush1.msra.mxu0 0.0
      %1991 = vmatprep.subr.mxu0 0.0
      %1992 = vmatpush1.msra.mxu0 0.0
      %1993 = vmatprep.subr.mxu0 0.0
      %1994 = vmatpush1.msra.mxu0 0.0
      %1995 = vmatprep.subr.mxu0 0.0
      %1996 = vmatpush1.msra.mxu0 0.0
      %1997 = vmatprep.subr.mxu0 0.0
      %1998 = vmatpush1.msra.mxu0 0.0
      %1999 = vmatprep.subr.mxu0 0.0
      %2000 = vmatpush1.msra.mxu0 0.0
      %2001 = vmatprep.subr.mxu0 0.0
      %2002 = vmatpush1.msra.mxu0 0.0
      %2003 = vmatprep.subr.mxu0 0.0
      %2004 = vmatpush1.msra.mxu0 0.0
      %2005 = vmatprep.subr.mxu0 0.0
      %2006 = vmatpush1.msra.mxu0 0.0
      %2007 = vmatprep.subr.mxu0 0.0
      %2008 = vmatpush1.msra.mxu0 0.0
      %2009 = vmatprep.subr.mxu0 0.0
      %2010 = vmatpush1.msra.mxu0 0.0
      %2011 = vmatprep.subr.mxu0 0.0
      %2012 = vmatpush1.msra.mxu0 0.0
      %2013 = vmatprep.subr.mxu0 0.0
      %2014 = vmatpush1.msra.mxu0 0.0
      %2015 = vmatprep.subr.mxu0 0.0
      %2016 = vmatpush1.msra.mxu0 0.0
      %2017 = vmatprep.subr.mxu0 0.0
      %2018 = vmatpush1.msra.mxu0 0.0
      %2019 = vmatprep.subr.mxu0 0.0
      %2020 = vmatpush1.msra.mxu0 0.0
      %2021 = vmatprep.subr.mxu0 0.0
      %2022 = vmatpush1.msra.mxu0 0.0
      %2023 = vmatprep.subr.mxu0 0.0
      %2024 = vmatpush1.msra.mxu0 0.0
      %2025 = vmatprep.subr.mxu0 0.0
      %2026 = vmatpush1.msra.mxu0 0.0
      %2027 = vmatprep.subr.mxu0 0.0
      %2028 = vmatpush1.msra.mxu0 0.0
      %2029 = vmatprep.subr.mxu0 0.0
      %2030 = vmatpush1.msra.mxu0 0.0
      %2031 = vmatprep.mubr.f32.mxu0 0.0
      %2032 = vmatmul.mubr.f32.gmra.mrb[0].mxu0 %v1681
      %v2033 = vpop.f32.mrb[0].mxu0
      %v2034 = vadd.f32 0.0, %v2033
      %v2035 = vpop.f32.mrb[0].mxu0
      %v2036 = vadd.f32 0.0, %v2035
      %2037 = vdwg.mxu0
      %2038 = vmatprep.subr.mxu0 %v1673
      %2039 = vmatpush1.msra.mxu0 %v1672
      %2040 = vmatprep.subr.mxu0 0.0
      %2041 = vmatpush1.msra.mxu0 0.0
      %2042 = vmatprep.subr.mxu0 0.0
      %2043 = vmatpush1.msra.mxu0 0.0
      %2044 = vmatprep.subr.mxu0 0.0
      %2045 = vmatpush1.msra.mxu0 0.0
      %2046 = vmatprep.subr.mxu0 0.0
      %2047 = vmatpush1.msra.mxu0 0.0
      %2048 = vmatprep.subr.mxu0 0.0
      %2049 = vmatpush1.msra.mxu0 0.0
      %2050 = vmatprep.subr.mxu0 0.0
      %2051 = vmatpush1.msra.mxu0 0.0
      %2052 = vmatprep.subr.mxu0 0.0
      %2053 = vmatpush1.msra.mxu0 0.0
      %2054 = vmatprep.subr.mxu0 0.0
      %2055 = vmatpush1.msra.mxu0 0.0
      %2056 = vmatprep.subr.mxu0 0.0
      %2057 = vmatpush1.msra.mxu0 0.0
      %2058 = vmatprep.subr.mxu0 0.0
      %2059 = vmatpush1.msra.mxu0 0.0
      %2060 = vmatprep.subr.mxu0 0.0
      %2061 = vmatpush1.msra.mxu0 0.0
      %2062 = vmatprep.subr.mxu0 0.0
      %2063 = vmatpush1.msra.mxu0 0.0
      %2064 = vmatprep.subr.mxu0 0.0
      %2065 = vmatpush1.msra.mxu0 0.0
      %2066 = vmatprep.subr.mxu0 0.0
      %2067 = vmatpush1.msra.mxu0 0.0
      %2068 = vmatprep.subr.mxu0 0.0
      %2069 = vmatpush1.msra.mxu0 0.0
      %2070 = vmatprep.subr.mxu0 0.0
      %2071 = vmatpush1.msra.mxu0 0.0
      %2072 = vmatprep.subr.mxu0 0.0
      %2073 = vmatpush1.msra.mxu0 0.0
      %2074 = vmatprep.subr.mxu0 0.0
      %2075 = vmatpush1.msra.mxu0 0.0
      %2076 = vmatprep.subr.mxu0 0.0
      %2077 = vmatpush1.msra.mxu0 0.0
      %2078 = vmatprep.subr.mxu0 0.0
      %2079 = vmatpush1.msra.mxu0 0.0
      %2080 = vmatprep.subr.mxu0 0.0
      %2081 = vmatpush1.msra.mxu0 0.0
      %2082 = vmatprep.subr.mxu0 0.0
      %2083 = vmatpush1.msra.mxu0 0.0
      %2084 = vmatprep.subr.mxu0 0.0
      %2085 = vmatpush1.msra.mxu0 0.0
      %2086 = vmatprep.subr.mxu0 0.0
      %2087 = vmatpush1.msra.mxu0 0.0
      %2088 = vmatprep.subr.mxu0 0.0
      %2089 = vmatpush1.msra.mxu0 0.0
      %2090 = vmatprep.subr.mxu0 0.0
      %2091 = vmatpush1.msra.mxu0 0.0
      %2092 = vmatprep.subr.mxu0 0.0
      %2093 = vmatpush1.msra.mxu0 0.0
      %2094 = vmatprep.subr.mxu0 0.0
      %2095 = vmatpush1.msra.mxu0 0.0
      %2096 = vmatprep.subr.mxu0 0.0
      %2097 = vmatpush1.msra.mxu0 0.0
      %2098 = vmatprep.subr.mxu0 0.0
      %2099 = vmatpush1.msra.mxu0 0.0
      %2100 = vmatprep.subr.mxu0 0.0
      %2101 = vmatpush1.msra.mxu0 0.0
      %2102 = vmatprep.mubr.f32.mxu0 0.0
      %2103 = vmatmul.mubr.f32.gmra.mrb[0].mxu0 %v1681
      %v2104 = vpop.f32.mrb[0].mxu0
      %v2105 = vadd.f32 0.0, %v2104
      %v2106 = vpop.f32.mrb[0].mxu0
      %v2107 = vadd.f32 0.0, %v2106
      %2108 = vdwg.mxu0
      %2109 = vmatprep.subr.mxu0 %v1675
      %2110 = vmatpush1.msra.mxu0 %v1674
      %2111 = vmatprep.subr.mxu0 0.0
      %2112 = vmatpush1.msra.mxu0 0.0
      %2113 = vmatprep.subr.mxu0 0.0
      %2114 = vmatpush1.msra.mxu0 0.0
      %2115 = vmatprep.subr.mxu0 0.0
      %2116 = vmatpush1.msra.mxu0 0.0
      %2117 = vmatprep.subr.mxu0 0.0
      %2118 = vmatpush1.msra.mxu0 0.0
      %2119 = vmatprep.subr.mxu0 0.0
      %2120 = vmatpush1.msra.mxu0 0.0
      %2121 = vmatprep.subr.mxu0 0.0
      %2122 = vmatpush1.msra.mxu0 0.0
      %2123 = vmatprep.subr.mxu0 0.0
      %2124 = vmatpush1.msra.mxu0 0.0
      %2125 = vmatprep.subr.mxu0 0.0
      %2126 = vmatpush1.msra.mxu0 0.0
      %2127 = vmatprep.subr.mxu0 0.0
      %2128 = vmatpush1.msra.mxu0 0.0
      %2129 = vmatprep.subr.mxu0 0.0
      %2130 = vmatpush1.msra.mxu0 0.0
      %2131 = vmatprep.subr.mxu0 0.0
      %2132 = vmatpush1.msra.mxu0 0.0
      %2133 = vmatprep.subr.mxu0 0.0
      %2134 = vmatpush1.msra.mxu0 0.0
      %2135 = vmatprep.subr.mxu0 0.0
      %2136 = vmatpush1.msra.mxu0 0.0
      %2137 = vmatprep.subr.mxu0 0.0
      %2138 = vmatpush1.msra.mxu0 0.0
      %2139 = vmatprep.subr.mxu0 0.0
      %2140 = vmatpush1.msra.mxu0 0.0
      %2141 = vmatprep.subr.mxu0 0.0
      %2142 = vmatpush1.msra.mxu0 0.0
      %2143 = vmatprep.subr.mxu0 0.0
      %2144 = vmatpush1.msra.mxu0 0.0
      %2145 = vmatprep.subr.mxu0 0.0
      %2146 = vmatpush1.msra.mxu0 0.0
      %2147 = vmatprep.subr.mxu0 0.0
      %2148 = vmatpush1.msra.mxu0 0.0
      %2149 = vmatprep.subr.mxu0 0.0
      %2150 = vmatpush1.msra.mxu0 0.0
      %2151 = vmatprep.subr.mxu0 0.0
      %2152 = vmatpush1.msra.mxu0 0.0
      %2153 = vmatprep.subr.mxu0 0.0
      %2154 = vmatpush1.msra.mxu0 0.0
      %2155 = vmatprep.subr.mxu0 0.0
      %2156 = vmatpush1.msra.mxu0 0.0
      %2157 = vmatprep.subr.mxu0 0.0
      %2158 = vmatpush1.msra.mxu0 0.0
      %2159 = vmatprep.subr.mxu0 0.0
      %2160 = vmatpush1.msra.mxu0 0.0
      %2161 = vmatprep.subr.mxu0 0.0
      %2162 = vmatpush1.msra.mxu0 0.0
      %2163 = vmatprep.subr.mxu0 0.0
      %2164 = vmatpush1.msra.mxu0 0.0
      %2165 = vmatprep.subr.mxu0 0.0
      %2166 = vmatpush1.msra.mxu0 0.0
      %2167 = vmatprep.subr.mxu0 0.0
      %2168 = vmatpush1.msra.mxu0 0.0
      %2169 = vmatprep.subr.mxu0 0.0
      %2170 = vmatpush1.msra.mxu0 0.0
      %2171 = vmatprep.subr.mxu0 0.0
      %2172 = vmatpush1.msra.mxu0 0.0
      %2173 = vmatprep.mubr.f32.mxu0 0.0
      %2174 = vmatmul.mubr.f32.gmra.mrb[0].mxu0 %v1681
      %v2175 = vpop.f32.mrb[0].mxu0
      %v2176 = vadd.f32 0.0, %v2175
      %v2177 = vpop.f32.mrb[0].mxu0
      %v2178 = vadd.f32 0.0, %v2177
      %2179 = vdwg.mxu0
      %2180 = vmatprep.subr.mxu0 %v1677
      %2181 = vmatpush1.msra.mxu0 %v1676
      %2182 = vmatprep.subr.mxu0 0.0
      %2183 = vmatpush1.msra.mxu0 0.0
      %2184 = vmatprep.subr.mxu0 0.0
      %2185 = vmatpush1.msra.mxu0 0.0
      %2186 = vmatprep.subr.mxu0 0.0
      %2187 = vmatpush1.msra.mxu0 0.0
      %2188 = vmatprep.subr.mxu0 0.0
      %2189 = vmatpush1.msra.mxu0 0.0
      %2190 = vmatprep.subr.mxu0 0.0
      %2191 = vmatpush1.msra.mxu0 0.0
      %2192 = vmatprep.subr.mxu0 0.0
      %2193 = vmatpush1.msra.mxu0 0.0
      %2194 = vmatprep.subr.mxu0 0.0
      %2195 = vmatpush1.msra.mxu0 0.0
      %2196 = vmatprep.subr.mxu0 0.0
      %2197 = vmatpush1.msra.mxu0 0.0
      %2198 = vmatprep.subr.mxu0 0.0
      %2199 = vmatpush1.msra.mxu0 0.0
      %2200 = vmatprep.subr.mxu0 0.0
      %2201 = vmatpush1.msra.mxu0 0.0
      %2202 = vmatprep.subr.mxu0 0.0
      %2203 = vmatpush1.msra.mxu0 0.0
      %2204 = vmatprep.subr.mxu0 0.0
      %2205 = vmatpush1.msra.mxu0 0.0
      %2206 = vmatprep.subr.mxu0 0.0
      %2207 = vmatpush1.msra.mxu0 0.0
      %2208 = vmatprep.subr.mxu0 0.0
      %2209 = vmatpush1.msra.mxu0 0.0
      %2210 = vmatprep.subr.mxu0 0.0
      %2211 = vmatpush1.msra.mxu0 0.0
      %2212 = vmatprep.subr.mxu0 0.0
      %2213 = vmatpush1.msra.mxu0 0.0
      %2214 = vmatprep.subr.mxu0 0.0
      %2215 = vmatpush1.msra.mxu0 0.0
      %2216 = vmatprep.subr.mxu0 0.0
      %2217 = vmatpush1.msra.mxu0 0.0
      %2218 = vmatprep.subr.mxu0 0.0
      %2219 = vmatpush1.msra.mxu0 0.0
      %2220 = vmatprep.subr.mxu0 0.0
      %2221 = vmatpush1.msra.mxu0 0.0
      %2222 = vmatprep.subr.mxu0 0.0
      %2223 = vmatpush1.msra.mxu0 0.0
      %2224 = vmatprep.subr.mxu0 0.0
      %2225 = vmatpush1.msra.mxu0 0.0
      %2226 = vmatprep.subr.mxu0 0.0
      %2227 = vmatpush1.msra.mxu0 0.0
      %2228 = vmatprep.subr.mxu0 0.0
      %2229 = vmatpush1.msra.mxu0 0.0
      %2230 = vmatprep.subr.mxu0 0.0
      %2231 = vmatpush1.msra.mxu0 0.0
      %2232 = vmatprep.subr.mxu0 0.0
      %2233 = vmatpush1.msra.mxu0 0.0
      %2234 = vmatprep.subr.mxu0 0.0
      %2235 = vmatpush1.msra.mxu0 0.0
      %2236 = vmatprep.subr.mxu0 0.0
      %2237 = vmatpush1.msra.mxu0 0.0
      %2238 = vmatprep.subr.mxu0 0.0
      %2239 = vmatpush1.msra.mxu0 0.0
      %2240 = vmatprep.subr.mxu0 0.0
      %2241 = vmatpush1.msra.mxu0 0.0
      %2242 = vmatprep.subr.mxu0 0.0
      %2243 = vmatpush1.msra.mxu0 0.0
      %2244 = vmatprep.mubr.f32.mxu0 0.0
      %2245 = vmatmul.mubr.f32.gmra.mrb[0].mxu0 %v1681
      %v2246 = vpop.f32.mrb[0].mxu0
      %v2247 = vadd.f32 0.0, %v2246
      %v2248 = vpop.f32.mrb[0].mxu0
      %v2249 = vadd.f32 0.0, %v2248
      %2250 = vdwg.mxu0
      %vm2251 = vcmp.lt.f32.partialorder %v1614, 0.5
      %vm2252 = vcmp.lt.f32.partialorder %v1615, 0.5
      %vm2253 = vcmp.lt.f32.partialorder %v1616, 0.5
      %vm2254 = vcmp.lt.f32.partialorder %v1617, 0.5
      %vm2255 = vcmp.lt.f32.partialorder %v1618, 0.5
      %vm2256 = vcmp.lt.f32.partialorder %v1619, 0.5
      %vm2257 = vcmp.lt.f32.partialorder %v1620, 0.5
      %vm2258 = vcmp.lt.f32.partialorder %v1621, 0.5
      %vm2259 = vcmp.lt.f32.partialorder %v1622, 0.5
      %vm2260 = vcmp.lt.f32.partialorder %v1623, 0.5
      %vm2261 = vcmp.lt.f32.partialorder %v1624, 0.5
      %vm2262 = vcmp.lt.f32.partialorder %v1625, 0.5
      %vm2263 = vcmp.lt.f32.partialorder %v1626, 0.5
      %vm2264 = vcmp.lt.f32.partialorder %v1627, 0.5
      %vm2265 = vcmp.lt.f32.partialorder %v1628, 0.5
      %vm2266 = vcmp.lt.f32.partialorder %v1629, 0.5
      %v2267 = vsel %vm2251, 0.0, %v1750
      %v2268 = vsel %vm2252, 0.0, %v1752
      %v2269 = vsel %vm2253, 0.0, %v1821
      %v2270 = vsel %vm2254, 0.0, %v1823
      %v2271 = vsel %vm2255, 0.0, %v1892
      %v2272 = vsel %vm2256, 0.0, %v1894
      %v2273 = vsel %vm2257, 0.0, %v1963
      %v2274 = vsel %vm2258, 0.0, %v1965
      %v2275 = vsel %vm2259, 0.0, %v2034
      %v2276 = vsel %vm2260, 0.0, %v2036
      %v2277 = vsel %vm2261, 0.0, %v2105
      %v2278 = vsel %vm2262, 0.0, %v2107
      %v2279 = vsel %vm2263, 0.0, %v2176
      %v2280 = vsel %vm2264, 0.0, %v2178
      %v2281 = vsel %vm2265, 0.0, %v2247
      %v2282 = vsel %vm2266, 0.0, %v2249
      %vm2283 = vcmp.gt.f32.partialorder %v1614, 0.4
      %vm2284 = vcmp.gt.f32.partialorder %v1615, 0.4
      %vm2285 = vcmp.gt.f32.partialorder %v1616, 0.4
      %vm2286 = vcmp.gt.f32.partialorder %v1617, 0.4
      %vm2287 = vcmp.gt.f32.partialorder %v1618, 0.4
      %vm2288 = vcmp.gt.f32.partialorder %v1619, 0.4
      %vm2289 = vcmp.gt.f32.partialorder %v1620, 0.4
      %vm2290 = vcmp.gt.f32.partialorder %v1621, 0.4
      %vm2291 = vcmp.gt.f32.partialorder %v1622, 0.4
      %vm2292 = vcmp.gt.f32.partialorder %v1623, 0.4
      %vm2293 = vcmp.gt.f32.partialorder %v1624, 0.4
      %vm2294 = vcmp.gt.f32.partialorder %v1625, 0.4
      %vm2295 = vcmp.gt.f32.partialorder %v1626, 0.4
      %vm2296 = vcmp.gt.f32.partialorder %v1627, 0.4
      %vm2297 = vcmp.gt.f32.partialorder %v1628, 0.4
      %vm2298 = vcmp.gt.f32.partialorder %v1629, 0.4
      %vm2299 = vmand %vm2251, %vm2283
      %vm2300 = vmand %vm2252, %vm2284
      %vm2301 = vmand %vm2253, %vm2285
      %vm2302 = vmand %vm2254, %vm2286
      %vm2303 = vmand %vm2255, %vm2287
      %vm2304 = vmand %vm2256, %vm2288
      %vm2305 = vmand %vm2257, %vm2289
      %vm2306 = vmand %vm2258, %vm2290
      %vm2307 = vmand %vm2259, %vm2291
      %vm2308 = vmand %vm2260, %vm2292
      %vm2309 = vmand %vm2261, %vm2293
      %vm2310 = vmand %vm2262, %vm2294
      %vm2311 = vmand %vm2263, %vm2295
      %vm2312 = vmand %vm2264, %vm2296
      %vm2313 = vmand %vm2265, %vm2297
      %vm2314 = vmand %vm2266, %vm2298
      %v2315 = vsel %vm2299, -1.0, %v2267
      %v2316 = vsel %vm2300, -1.0, %v2268
      %v2317 = vsel %vm2301, -1.0, %v2269
      %v2318 = vsel %vm2302, -1.0, %v2270
      %v2319 = vsel %vm2303, -1.0, %v2271
      %v2320 = vsel %vm2304, -1.0, %v2272
      %v2321 = vsel %vm2305, -1.0, %v2273
      %v2322 = vsel %vm2306, -1.0, %v2274
      %v2323 = vsel %vm2307, -1.0, %v2275
      %v2324 = vsel %vm2308, -1.0, %v2276
      %v2325 = vsel %vm2309, -1.0, %v2277
      %v2326 = vsel %vm2310, -1.0, %v2278
      %v2327 = vsel %vm2311, -1.0, %v2279
      %v2328 = vsel %vm2312, -1.0, %v2280
      %v2329 = vsel %vm2313, -1.0, %v2281
      %v2330 = vsel %vm2314, -1.0, %v2282
      %v2347 = vcombine.high %v2315, %v2316
      %v2348 = vcombine.high %v2317, %v2318
      %v2349 = vcombine.high %v2319, %v2320
      %v2350 = vcombine.high %v2321, %v2322
      %v2352 = vunpack.c.l.s4 1966171168
      %v2353 = vunpack.c.0.s8 %v2352
      %v2354 = vlaneseq
      %v2355 = vshrl.u32 %v2354, 7
      %v2356 = vsub.s32 %v2353, %v2355
      %v2357 = vrot.slane %v2347, %v2356
      %v2359 = vunpack.c.l.s4 1966171168
      %v2360 = vunpack.c.0.s8 %v2359
      %v2361 = vlaneseq
      %v2362 = vshrl.u32 %v2361, 7
      %v2363 = vsub.s32 %v2360, %v2362
      %v2364 = vrot.slane %v2348, %v2363
      %v2366 = vunpack.c.l.s4 1966171168
      %v2367 = vunpack.c.0.s8 %v2366
      %v2368 = vlaneseq
      %v2369 = vshrl.u32 %v2368, 7
      %v2370 = vsub.s32 %v2367, %v2369
      %v2371 = vrot.slane %v2349, %v2370
      %v2373 = vunpack.c.l.s4 1966171168
      %v2374 = vunpack.c.0.s8 %v2373
      %v2375 = vlaneseq
      %v2376 = vshrl.u32 %v2375, 7
      %v2377 = vsub.s32 %v2374, %v2376
      %v2378 = vrot.slane %v2350, %v2377
      %v2379 = vcombine.low %v2357, %v2364
      %v2380 = vcombine.low %v2371, %v2378
      %v2382 = vunpack.c.l.s4 1966171168
      %v2383 = vunpack.c.0.s8 %v2382
      %v2384 = vlaneseq
      %v2385 = vshrl.u32 %v2384, 7
      %v2386 = vsub.s32 %v2383, %v2385
      %v2387 = vrot.slane %v2379, %v2386
      %v2389 = vunpack.c.l.s4 1966171168
      %v2390 = vunpack.c.0.s8 %v2389
      %v2391 = vlaneseq
      %v2392 = vshrl.u32 %v2391, 7
      %v2393 = vsub.s32 %v2390, %v2392
      %v2394 = vrot.slane %v2380, %v2393
      %v2395 = vcombine.low %v2387, %v2394
      %v2396 = vcombine.high %v2323, %v2324
      %v2397 = vcombine.high %v2325, %v2326
      %v2398 = vcombine.high %v2327, %v2328
      %v2399 = vcombine.high %v2329, %v2330
      %v2401 = vunpack.c.l.s4 1966171168
      %v2402 = vunpack.c.0.s8 %v2401
      %v2403 = vlaneseq
      %v2404 = vshrl.u32 %v2403, 7
      %v2405 = vsub.s32 %v2402, %v2404
      %v2406 = vrot.slane %v2396, %v2405
      %v2408 = vunpack.c.l.s4 1966171168
      %v2409 = vunpack.c.0.s8 %v2408
      %v2410 = vlaneseq
      %v2411 = vshrl.u32 %v2410, 7
      %v2412 = vsub.s32 %v2409, %v2411
      %v2413 = vrot.slane %v2397, %v2412
      %v2415 = vunpack.c.l.s4 1966171168
      %v2416 = vunpack.c.0.s8 %v2415
      %v2417 = vlaneseq
      %v2418 = vshrl.u32 %v2417, 7
      %v2419 = vsub.s32 %v2416, %v2418
      %v2420 = vrot.slane %v2398, %v2419
      %v2422 = vunpack.c.l.s4 1966171168
      %v2423 = vunpack.c.0.s8 %v2422
      %v2424 = vlaneseq
      %v2425 = vshrl.u32 %v2424, 7
      %v2426 = vsub.s32 %v2423, %v2425
      %v2427 = vrot.slane %v2399, %v2426
      %v2428 = vcombine.low %v2406, %v2413
      %v2429 = vcombine.low %v2420, %v2427
      %v2431 = vunpack.c.l.s4 1966171168
      %v2432 = vunpack.c.0.s8 %v2431
      %v2433 = vlaneseq
      %v2434 = vshrl.u32 %v2433, 7
      %v2435 = vsub.s32 %v2432, %v2434
      %v2436 = vrot.slane %v2428, %v2435
      %v2438 = vunpack.c.l.s4 1966171168
      %v2439 = vunpack.c.0.s8 %v2438
      %v2440 = vlaneseq
      %v2441 = vshrl.u32 %v2440, 7
      %v2442 = vsub.s32 %v2439, %v2441
      %v2443 = vrot.slane %v2429, %v2442
      %v2444 = vcombine.low %v2436, %v2443
      %v2447 = vsel %vm372, %v2395, 0.0
      %v2448 = vsel %vm373, %v2444, 0.0
      %v2465 = vrot.slane %v1750, 6
      %v2466 = vrot.slane %v1752, 6
      %v2467 = vrot.slane %v1821, 6
      %v2468 = vrot.slane %v1823, 6
      %v2469 = vrot.slane %v1892, 6
      %v2470 = vrot.slane %v1894, 6
      %v2471 = vrot.slane %v1963, 6
      %v2472 = vrot.slane %v1965, 6
      %v2473 = vrot.slane %v2034, 6
      %v2474 = vrot.slane %v2036, 6
      %v2475 = vrot.slane %v2105, 6
      %v2476 = vrot.slane %v2107, 6
      %v2477 = vrot.slane %v2176, 6
      %v2478 = vrot.slane %v2178, 6
      %v2479 = vrot.slane %v2247, 6
      %v2480 = vrot.slane %v2249, 6
      %v2497 = vsub.f32 %v1750, %v2465
      %v2498 = vsub.f32 %v1752, %v2466
      %v2499 = vsub.f32 %v1821, %v2467
      %v2500 = vsub.f32 %v1823, %v2468
      %v2501 = vsub.f32 %v1892, %v2469
      %v2502 = vsub.f32 %v1894, %v2470
      %v2503 = vsub.f32 %v1963, %v2471
      %v2504 = vsub.f32 %v1965, %v2472
      %v2505 = vsub.f32 %v2034, %v2473
      %v2506 = vsub.f32 %v2036, %v2474
      %v2507 = vsub.f32 %v2105, %v2475
      %v2508 = vsub.f32 %v2107, %v2476
      %v2509 = vsub.f32 %v2176, %v2477
      %v2510 = vsub.f32 %v2178, %v2478
      %v2511 = vsub.f32 %v2247, %v2479
      %v2512 = vsub.f32 %v2249, %v2480
      %v2513 = vadd.f32 %v2497, 1.0
      %v2514 = vadd.f32 %v2498, 1.0
      %v2515 = vadd.f32 %v2499, 1.0
      %v2516 = vadd.f32 %v2500, 1.0
      %v2517 = vadd.f32 %v2501, 1.0
      %v2518 = vadd.f32 %v2502, 1.0
      %v2519 = vadd.f32 %v2503, 1.0
      %v2520 = vadd.f32 %v2504, 1.0
      %v2521 = vadd.f32 %v2505, 1.0
      %v2522 = vadd.f32 %v2506, 1.0
      %v2523 = vadd.f32 %v2507, 1.0
      %v2524 = vadd.f32 %v2508, 1.0
      %v2525 = vadd.f32 %v2509, 1.0
      %v2526 = vadd.f32 %v2510, 1.0
      %v2527 = vadd.f32 %v2511, 1.0
      %v2528 = vadd.f32 %v2512, 1.0
      %v2529 = vmul.f32 %v2513, 0.5
      %v2530 = vmul.f32 %v2514, 0.5
      %v2531 = vmul.f32 %v2515, 0.5
      %v2532 = vmul.f32 %v2516, 0.5
      %v2533 = vmul.f32 %v2517, 0.5
      %v2534 = vmul.f32 %v2518, 0.5
      %v2535 = vmul.f32 %v2519, 0.5
      %v2536 = vmul.f32 %v2520, 0.5
      %v2537 = vmul.f32 %v2521, 0.5
      %v2538 = vmul.f32 %v2522, 0.5
      %v2539 = vmul.f32 %v2523, 0.5
      %v2540 = vmul.f32 %v2524, 0.5
      %v2541 = vmul.f32 %v2525, 0.5
      %v2542 = vmul.f32 %v2526, 0.5
      %v2543 = vmul.f32 %v2527, 0.5
      %v2544 = vmul.f32 %v2528, 0.5
      %v2561 = vrot.slane %v2529, 2
      %v2562 = vrot.slane %v2530, 2
      %v2563 = vrot.slane %v2531, 2
      %v2564 = vrot.slane %v2532, 2
      %v2565 = vrot.slane %v2533, 2
      %v2566 = vrot.slane %v2534, 2
      %v2567 = vrot.slane %v2535, 2
      %v2568 = vrot.slane %v2536, 2
      %v2569 = vrot.slane %v2537, 2
      %v2570 = vrot.slane %v2538, 2
      %v2571 = vrot.slane %v2539, 2
      %v2572 = vrot.slane %v2540, 2
      %v2573 = vrot.slane %v2541, 2
      %v2574 = vrot.slane %v2542, 2
      %v2575 = vrot.slane %v2543, 2
      %v2576 = vrot.slane %v2544, 2
      %v2593 = vadd.f32 %v1750, %v2561
      %v2594 = vadd.f32 %v1752, %v2562
      %v2595 = vadd.f32 %v1821, %v2563
      %v2596 = vadd.f32 %v1823, %v2564
      %v2597 = vadd.f32 %v1892, %v2565
      %v2598 = vadd.f32 %v1894, %v2566
      %v2599 = vadd.f32 %v1963, %v2567
      %v2600 = vadd.f32 %v1965, %v2568
      %v2601 = vadd.f32 %v2034, %v2569
      %v2602 = vadd.f32 %v2036, %v2570
      %v2603 = vadd.f32 %v2105, %v2571
      %v2604 = vadd.f32 %v2107, %v2572
      %v2605 = vadd.f32 %v2176, %v2573
      %v2606 = vadd.f32 %v2178, %v2574
      %v2607 = vadd.f32 %v2247, %v2575
      %v2608 = vadd.f32 %v2249, %v2576
      %v2611 = vlaneseq
      %v2612 = vshrl.u32 %v2611, 7
      %v2613 = vsub.s32 0, %v2612
      %v2614 = vrot.slane %v341, %v2613
      %v2615 = vlaneseq
      %v2616 = vshrl.u32 %v2615, 7
      %v2617 = vsub.s32 1, %v2616
      %v2618 = vrot.slane %v341, %v2617
      %v2619 = vlaneseq
      %v2620 = vshrl.u32 %v2619, 7
      %v2621 = vsub.s32 2, %v2620
      %v2622 = vrot.slane %v341, %v2621
      %v2623 = vlaneseq
      %v2624 = vshrl.u32 %v2623, 7
      %v2625 = vsub.s32 3, %v2624
      %v2626 = vrot.slane %v341, %v2625
      %v2627 = vlaneseq
      %v2628 = vshrl.u32 %v2627, 7
      %v2629 = vsub.s32 4, %v2628
      %v2630 = vrot.slane %v341, %v2629
      %v2631 = vlaneseq
      %v2632 = vshrl.u32 %v2631, 7
      %v2633 = vsub.s32 5, %v2632
      %v2634 = vrot.slane %v341, %v2633
      %v2635 = vlaneseq
      %v2636 = vshrl.u32 %v2635, 7
      %v2637 = vsub.s32 6, %v2636
      %v2638 = vrot.slane %v341, %v2637
      %v2639 = vlaneseq
      %v2640 = vshrl.u32 %v2639, 7
      %v2641 = vsub.s32 7, %v2640
      %v2642 = vrot.slane %v341, %v2641
      %v2643 = vlaneseq
      %v2644 = vshrl.u32 %v2643, 7
      %v2645 = vsub.s32 0, %v2644
      %v2646 = vrot.slane %v345, %v2645
      %v2647 = vlaneseq
      %v2648 = vshrl.u32 %v2647, 7
      %v2649 = vsub.s32 1, %v2648
      %v2650 = vrot.slane %v345, %v2649
      %v2651 = vlaneseq
      %v2652 = vshrl.u32 %v2651, 7
      %v2653 = vsub.s32 2, %v2652
      %v2654 = vrot.slane %v345, %v2653
      %v2655 = vlaneseq
      %v2656 = vshrl.u32 %v2655, 7
      %v2657 = vsub.s32 3, %v2656
      %v2658 = vrot.slane %v345, %v2657
      %v2659 = vlaneseq
      %v2660 = vshrl.u32 %v2659, 7
      %v2661 = vsub.s32 4, %v2660
      %v2662 = vrot.slane %v345, %v2661
      %v2663 = vlaneseq
      %v2664 = vshrl.u32 %v2663, 7
      %v2665 = vsub.s32 5, %v2664
      %v2666 = vrot.slane %v345, %v2665
      %v2667 = vlaneseq
      %v2668 = vshrl.u32 %v2667, 7
      %v2669 = vsub.s32 6, %v2668
      %v2670 = vrot.slane %v345, %v2669
      %v2671 = vlaneseq
      %v2672 = vshrl.u32 %v2671, 7
      %v2673 = vsub.s32 7, %v2672
      %v2674 = vrot.slane %v345, %v2673
      %v2691 = vsub.f32 %v2593, %v2614
      %v2692 = vsub.f32 %v2594, %v2618
      %v2693 = vsub.f32 %v2595, %v2622
      %v2694 = vsub.f32 %v2596, %v2626
      %v2695 = vsub.f32 %v2597, %v2630
      %v2696 = vsub.f32 %v2598, %v2634
      %v2697 = vsub.f32 %v2599, %v2638
      %v2698 = vsub.f32 %v2600, %v2642
      %v2699 = vsub.f32 %v2601, %v2646
      %v2700 = vsub.f32 %v2602, %v2650
      %v2701 = vsub.f32 %v2603, %v2654
      %v2702 = vsub.f32 %v2604, %v2658
      %v2703 = vsub.f32 %v2605, %v2662
      %v2704 = vsub.f32 %v2606, %v2666
      %v2705 = vsub.f32 %v2607, %v2670
      %v2706 = vsub.f32 %v2608, %v2674
      %v2709 = vlaneseq
      %v2710 = vshrl.u32 %v2709, 7
      %v2711 = vsub.s32 0, %v2710
      %v2712 = vrot.slane %v325, %v2711
      %v2713 = vlaneseq
      %v2714 = vshrl.u32 %v2713, 7
      %v2715 = vsub.s32 1, %v2714
      %v2716 = vrot.slane %v325, %v2715
      %v2717 = vlaneseq
      %v2718 = vshrl.u32 %v2717, 7
      %v2719 = vsub.s32 2, %v2718
      %v2720 = vrot.slane %v325, %v2719
      %v2721 = vlaneseq
      %v2722 = vshrl.u32 %v2721, 7
      %v2723 = vsub.s32 3, %v2722
      %v2724 = vrot.slane %v325, %v2723
      %v2725 = vlaneseq
      %v2726 = vshrl.u32 %v2725, 7
      %v2727 = vsub.s32 4, %v2726
      %v2728 = vrot.slane %v325, %v2727
      %v2729 = vlaneseq
      %v2730 = vshrl.u32 %v2729, 7
      %v2731 = vsub.s32 5, %v2730
      %v2732 = vrot.slane %v325, %v2731
      %v2733 = vlaneseq
      %v2734 = vshrl.u32 %v2733, 7
      %v2735 = vsub.s32 6, %v2734
      %v2736 = vrot.slane %v325, %v2735
      %v2737 = vlaneseq
      %v2738 = vshrl.u32 %v2737, 7
      %v2739 = vsub.s32 7, %v2738
      %v2740 = vrot.slane %v325, %v2739
      %v2741 = vlaneseq
      %v2742 = vshrl.u32 %v2741, 7
      %v2743 = vsub.s32 0, %v2742
      %v2744 = vrot.slane %v329, %v2743
      %v2745 = vlaneseq
      %v2746 = vshrl.u32 %v2745, 7
      %v2747 = vsub.s32 1, %v2746
      %v2748 = vrot.slane %v329, %v2747
      %v2749 = vlaneseq
      %v2750 = vshrl.u32 %v2749, 7
      %v2751 = vsub.s32 2, %v2750
      %v2752 = vrot.slane %v329, %v2751
      %v2753 = vlaneseq
      %v2754 = vshrl.u32 %v2753, 7
      %v2755 = vsub.s32 3, %v2754
      %v2756 = vrot.slane %v329, %v2755
      %v2757 = vlaneseq
      %v2758 = vshrl.u32 %v2757, 7
      %v2759 = vsub.s32 4, %v2758
      %v2760 = vrot.slane %v329, %v2759
      %v2761 = vlaneseq
      %v2762 = vshrl.u32 %v2761, 7
      %v2763 = vsub.s32 5, %v2762
      %v2764 = vrot.slane %v329, %v2763
      %v2765 = vlaneseq
      %v2766 = vshrl.u32 %v2765, 7
      %v2767 = vsub.s32 6, %v2766
      %v2768 = vrot.slane %v329, %v2767
      %v2769 = vlaneseq
      %v2770 = vshrl.u32 %v2769, 7
      %v2771 = vsub.s32 7, %v2770
      %v2772 = vrot.slane %v329, %v2771
      %v2789 = vrcp.pop %v2712
      %v2790 = vmul.f32 %v2691, %v2789
      %v2791 = vrcp.pop %v2716
      %v2792 = vmul.f32 %v2692, %v2791
      %v2793 = vrcp.pop %v2720
      %v2794 = vmul.f32 %v2693, %v2793
      %v2795 = vrcp.pop %v2724
      %v2796 = vmul.f32 %v2694, %v2795
      %v2797 = vrcp.pop %v2728
      %v2798 = vmul.f32 %v2695, %v2797
      %v2799 = vrcp.pop %v2732
      %v2800 = vmul.f32 %v2696, %v2799
      %v2801 = vrcp.pop %v2736
      %v2802 = vmul.f32 %v2697, %v2801
      %v2803 = vrcp.pop %v2740
      %v2804 = vmul.f32 %v2698, %v2803
      %v2805 = vrcp.pop %v2744
      %v2806 = vmul.f32 %v2699, %v2805
      %v2807 = vrcp.pop %v2748
      %v2808 = vmul.f32 %v2700, %v2807
      %v2809 = vrcp.pop %v2752
      %v2810 = vmul.f32 %v2701, %v2809
      %v2811 = vrcp.pop %v2756
      %v2812 = vmul.f32 %v2702, %v2811
      %v2813 = vrcp.pop %v2760
      %v2814 = vmul.f32 %v2703, %v2813
      %v2815 = vrcp.pop %v2764
      %v2816 = vmul.f32 %v2704, %v2815
      %v2817 = vrcp.pop %v2768
      %v2818 = vmul.f32 %v2705, %v2817
      %v2819 = vrcp.pop %v2772
      %v2820 = vmul.f32 %v2706, %v2819
      %v2821 = vrcp.pop 0.1
      %v2822 = vmul.f32 %v2790, %v2821
      %v2823 = vmul.f32 %v2792, %v2821
      %v2824 = vmul.f32 %v2794, %v2821
      %v2825 = vmul.f32 %v2796, %v2821
      %v2826 = vmul.f32 %v2798, %v2821
      %v2827 = vmul.f32 %v2800, %v2821
      %v2828 = vmul.f32 %v2802, %v2821
      %v2829 = vmul.f32 %v2804, %v2821
      %v2830 = vmul.f32 %v2806, %v2821
      %v2831 = vmul.f32 %v2808, %v2821
      %v2832 = vmul.f32 %v2810, %v2821
      %v2833 = vmul.f32 %v2812, %v2821
      %v2834 = vmul.f32 %v2814, %v2821
      %v2835 = vmul.f32 %v2816, %v2821
      %v2836 = vmul.f32 %v2818, %v2821
      %v2837 = vmul.f32 %v2820, %v2821
      %v2840 = vlaneseq
      %v2841 = vshrl.u32 %v2840, 7
      %v2842 = vsub.s32 0, %v2841
      %v2843 = vrot.slane %v349, %v2842
      %v2844 = vlaneseq
      %v2845 = vshrl.u32 %v2844, 7
      %v2846 = vsub.s32 1, %v2845
      %v2847 = vrot.slane %v349, %v2846
      %v2848 = vlaneseq
      %v2849 = vshrl.u32 %v2848, 7
      %v2850 = vsub.s32 2, %v2849
      %v2851 = vrot.slane %v349, %v2850
      %v2852 = vlaneseq
      %v2853 = vshrl.u32 %v2852, 7
      %v2854 = vsub.s32 3, %v2853
      %v2855 = vrot.slane %v349, %v2854
      %v2856 = vlaneseq
      %v2857 = vshrl.u32 %v2856, 7
      %v2858 = vsub.s32 4, %v2857
      %v2859 = vrot.slane %v349, %v2858
      %v2860 = vlaneseq
      %v2861 = vshrl.u32 %v2860, 7
      %v2862 = vsub.s32 5, %v2861
      %v2863 = vrot.slane %v349, %v2862
      %v2864 = vlaneseq
      %v2865 = vshrl.u32 %v2864, 7
      %v2866 = vsub.s32 6, %v2865
      %v2867 = vrot.slane %v349, %v2866
      %v2868 = vlaneseq
      %v2869 = vshrl.u32 %v2868, 7
      %v2870 = vsub.s32 7, %v2869
      %v2871 = vrot.slane %v349, %v2870
      %v2872 = vlaneseq
      %v2873 = vshrl.u32 %v2872, 7
      %v2874 = vsub.s32 0, %v2873
      %v2875 = vrot.slane %v353, %v2874
      %v2876 = vlaneseq
      %v2877 = vshrl.u32 %v2876, 7
      %v2878 = vsub.s32 1, %v2877
      %v2879 = vrot.slane %v353, %v2878
      %v2880 = vlaneseq
      %v2881 = vshrl.u32 %v2880, 7
      %v2882 = vsub.s32 2, %v2881
      %v2883 = vrot.slane %v353, %v2882
      %v2884 = vlaneseq
      %v2885 = vshrl.u32 %v2884, 7
      %v2886 = vsub.s32 3, %v2885
      %v2887 = vrot.slane %v353, %v2886
      %v2888 = vlaneseq
      %v2889 = vshrl.u32 %v2888, 7
      %v2890 = vsub.s32 4, %v2889
      %v2891 = vrot.slane %v353, %v2890
      %v2892 = vlaneseq
      %v2893 = vshrl.u32 %v2892, 7
      %v2894 = vsub.s32 5, %v2893
      %v2895 = vrot.slane %v353, %v2894
      %v2896 = vlaneseq
      %v2897 = vshrl.u32 %v2896, 7
      %v2898 = vsub.s32 6, %v2897
      %v2899 = vrot.slane %v353, %v2898
      %v2900 = vlaneseq
      %v2901 = vshrl.u32 %v2900, 7
      %v2902 = vsub.s32 7, %v2901
      %v2903 = vrot.slane %v353, %v2902
      %v2920 = vsub.f32 %v2593, %v2843
      %v2921 = vsub.f32 %v2594, %v2847
      %v2922 = vsub.f32 %v2595, %v2851
      %v2923 = vsub.f32 %v2596, %v2855
      %v2924 = vsub.f32 %v2597, %v2859
      %v2925 = vsub.f32 %v2598, %v2863
      %v2926 = vsub.f32 %v2599, %v2867
      %v2927 = vsub.f32 %v2600, %v2871
      %v2928 = vsub.f32 %v2601, %v2875
      %v2929 = vsub.f32 %v2602, %v2879
      %v2930 = vsub.f32 %v2603, %v2883
      %v2931 = vsub.f32 %v2604, %v2887
      %v2932 = vsub.f32 %v2605, %v2891
      %v2933 = vsub.f32 %v2606, %v2895
      %v2934 = vsub.f32 %v2607, %v2899
      %v2935 = vsub.f32 %v2608, %v2903
      %v2938 = vlaneseq
      %v2939 = vshrl.u32 %v2938, 7
      %v2940 = vsub.s32 0, %v2939
      %v2941 = vrot.slane %v333, %v2940
      %v2942 = vlaneseq
      %v2943 = vshrl.u32 %v2942, 7
      %v2944 = vsub.s32 1, %v2943
      %v2945 = vrot.slane %v333, %v2944
      %v2946 = vlaneseq
      %v2947 = vshrl.u32 %v2946, 7
      %v2948 = vsub.s32 2, %v2947
      %v2949 = vrot.slane %v333, %v2948
      %v2950 = vlaneseq
      %v2951 = vshrl.u32 %v2950, 7
      %v2952 = vsub.s32 3, %v2951
      %v2953 = vrot.slane %v333, %v2952
      %v2954 = vlaneseq
      %v2955 = vshrl.u32 %v2954, 7
      %v2956 = vsub.s32 4, %v2955
      %v2957 = vrot.slane %v333, %v2956
      %v2958 = vlaneseq
      %v2959 = vshrl.u32 %v2958, 7
      %v2960 = vsub.s32 5, %v2959
      %v2961 = vrot.slane %v333, %v2960
      %v2962 = vlaneseq
      %v2963 = vshrl.u32 %v2962, 7
      %v2964 = vsub.s32 6, %v2963
      %v2965 = vrot.slane %v333, %v2964
      %v2966 = vlaneseq
      %v2967 = vshrl.u32 %v2966, 7
      %v2968 = vsub.s32 7, %v2967
      %v2969 = vrot.slane %v333, %v2968
      %v2970 = vlaneseq
      %v2971 = vshrl.u32 %v2970, 7
      %v2972 = vsub.s32 0, %v2971
      %v2973 = vrot.slane %v337, %v2972
      %v2974 = vlaneseq
      %v2975 = vshrl.u32 %v2974, 7
      %v2976 = vsub.s32 1, %v2975
      %v2977 = vrot.slane %v337, %v2976
      %v2978 = vlaneseq
      %v2979 = vshrl.u32 %v2978, 7
      %v2980 = vsub.s32 2, %v2979
      %v2981 = vrot.slane %v337, %v2980
      %v2982 = vlaneseq
      %v2983 = vshrl.u32 %v2982, 7
      %v2984 = vsub.s32 3, %v2983
      %v2985 = vrot.slane %v337, %v2984
      %v2986 = vlaneseq
      %v2987 = vshrl.u32 %v2986, 7
      %v2988 = vsub.s32 4, %v2987
      %v2989 = vrot.slane %v337, %v2988
      %v2990 = vlaneseq
      %v2991 = vshrl.u32 %v2990, 7
      %v2992 = vsub.s32 5, %v2991
      %v2993 = vrot.slane %v337, %v2992
      %v2994 = vlaneseq
      %v2995 = vshrl.u32 %v2994, 7
      %v2996 = vsub.s32 6, %v2995
      %v2997 = vrot.slane %v337, %v2996
      %v2998 = vlaneseq
      %v2999 = vshrl.u32 %v2998, 7
      %v3000 = vsub.s32 7, %v2999
      %v3001 = vrot.slane %v337, %v3000
      %v3018 = vrcp.pop %v2941
      %v3019 = vmul.f32 %v2920, %v3018
      %v3020 = vrcp.pop %v2945
      %v3021 = vmul.f32 %v2921, %v3020
      %v3022 = vrcp.pop %v2949
      %v3023 = vmul.f32 %v2922, %v3022
      %v3024 = vrcp.pop %v2953
      %v3025 = vmul.f32 %v2923, %v3024
      %v3026 = vrcp.pop %v2957
      %v3027 = vmul.f32 %v2924, %v3026
      %v3028 = vrcp.pop %v2961
      %v3029 = vmul.f32 %v2925, %v3028
      %v3030 = vrcp.pop %v2965
      %v3031 = vmul.f32 %v2926, %v3030
      %v3032 = vrcp.pop %v2969
      %v3033 = vmul.f32 %v2927, %v3032
      %v3034 = vrcp.pop %v2973
      %v3035 = vmul.f32 %v2928, %v3034
      %v3036 = vrcp.pop %v2977
      %v3037 = vmul.f32 %v2929, %v3036
      %v3038 = vrcp.pop %v2981
      %v3039 = vmul.f32 %v2930, %v3038
      %v3040 = vrcp.pop %v2985
      %v3041 = vmul.f32 %v2931, %v3040
      %v3042 = vrcp.pop %v2989
      %v3043 = vmul.f32 %v2932, %v3042
      %v3044 = vrcp.pop %v2993
      %v3045 = vmul.f32 %v2933, %v3044
      %v3046 = vrcp.pop %v2997
      %v3047 = vmul.f32 %v2934, %v3046
      %v3048 = vrcp.pop %v3001
      %v3049 = vmul.f32 %v2935, %v3048
      %v3050 = vmul.f32 %v3019, %v2821
      %v3051 = vmul.f32 %v3021, %v2821
      %v3052 = vmul.f32 %v3023, %v2821
      %v3053 = vmul.f32 %v3025, %v2821
      %v3054 = vmul.f32 %v3027, %v2821
      %v3055 = vmul.f32 %v3029, %v2821
      %v3056 = vmul.f32 %v3031, %v2821
      %v3057 = vmul.f32 %v3033, %v2821
      %v3058 = vmul.f32 %v3035, %v2821
      %v3059 = vmul.f32 %v3037, %v2821
      %v3060 = vmul.f32 %v3039, %v2821
      %v3061 = vmul.f32 %v3041, %v2821
      %v3062 = vmul.f32 %v3043, %v2821
      %v3063 = vmul.f32 %v3045, %v2821
      %v3064 = vmul.f32 %v3047, %v2821
      %v3065 = vmul.f32 %v3049, %v2821
      %v3066 = vmul.f32 %v2513, %v2789
      %v3067 = vmul.f32 %v2514, %v2791
      %v3068 = vmul.f32 %v2515, %v2793
      %v3069 = vmul.f32 %v2516, %v2795
      %v3070 = vmul.f32 %v2517, %v2797
      %v3071 = vmul.f32 %v2518, %v2799
      %v3072 = vmul.f32 %v2519, %v2801
      %v3073 = vmul.f32 %v2520, %v2803
      %v3074 = vmul.f32 %v2521, %v2805
      %v3075 = vmul.f32 %v2522, %v2807
      %v3076 = vmul.f32 %v2523, %v2809
      %v3077 = vmul.f32 %v2524, %v2811
      %v3078 = vmul.f32 %v2525, %v2813
      %v3079 = vmul.f32 %v2526, %v2815
      %v3080 = vmul.f32 %v2527, %v2817
      %v3081 = vmul.f32 %v2528, %v2819
      %v3082 = vlog2.pop %v3066
      %v3083 = vmul.f32 %v3082, 0.6931472
      %v3084 = vlog2.pop %v3067
      %v3085 = vmul.f32 %v3084, 0.6931472
      %v3086 = vlog2.pop %v3068
      %v3087 = vmul.f32 %v3086, 0.6931472
      %v3088 = vlog2.pop %v3069
      %v3089 = vmul.f32 %v3088, 0.6931472
      %v3090 = vlog2.pop %v3070
      %v3091 = vmul.f32 %v3090, 0.6931472
      %v3092 = vlog2.pop %v3071
      %v3093 = vmul.f32 %v3092, 0.6931472
      %v3094 = vlog2.pop %v3072
      %v3095 = vmul.f32 %v3094, 0.6931472
      %v3096 = vlog2.pop %v3073
      %v3097 = vmul.f32 %v3096, 0.6931472
      %v3098 = vlog2.pop %v3074
      %v3099 = vmul.f32 %v3098, 0.6931472
      %v3100 = vlog2.pop %v3075
      %v3101 = vmul.f32 %v3100, 0.6931472
      %v3102 = vlog2.pop %v3076
      %v3103 = vmul.f32 %v3102, 0.6931472
      %v3104 = vlog2.pop %v3077
      %v3105 = vmul.f32 %v3104, 0.6931472
      %v3106 = vlog2.pop %v3078
      %v3107 = vmul.f32 %v3106, 0.6931472
      %v3108 = vlog2.pop %v3079
      %v3109 = vmul.f32 %v3108, 0.6931472
      %v3110 = vlog2.pop %v3080
      %v3111 = vmul.f32 %v3110, 0.6931472
      %v3112 = vlog2.pop %v3081
      %v3113 = vmul.f32 %v3112, 0.6931472
      %v3114 = vrcp.pop 0.2
      %v3115 = vmul.f32 %v3083, %v3114
      %v3116 = vmul.f32 %v3085, %v3114
      %v3117 = vmul.f32 %v3087, %v3114
      %v3118 = vmul.f32 %v3089, %v3114
      %v3119 = vmul.f32 %v3091, %v3114
      %v3120 = vmul.f32 %v3093, %v3114
      %v3121 = vmul.f32 %v3095, %v3114
      %v3122 = vmul.f32 %v3097, %v3114
      %v3123 = vmul.f32 %v3099, %v3114
      %v3124 = vmul.f32 %v3101, %v3114
      %v3125 = vmul.f32 %v3103, %v3114
      %v3126 = vmul.f32 %v3105, %v3114
      %v3127 = vmul.f32 %v3107, %v3114
      %v3128 = vmul.f32 %v3109, %v3114
      %v3129 = vmul.f32 %v3111, %v3114
      %v3130 = vmul.f32 %v3113, %v3114
      %v3131 = vmul.f32 %v2513, %v3018
      %v3132 = vmul.f32 %v2514, %v3020
      %v3133 = vmul.f32 %v2515, %v3022
      %v3134 = vmul.f32 %v2516, %v3024
      %v3135 = vmul.f32 %v2517, %v3026
      %v3136 = vmul.f32 %v2518, %v3028
      %v3137 = vmul.f32 %v2519, %v3030
      %v3138 = vmul.f32 %v2520, %v3032
      %v3139 = vmul.f32 %v2521, %v3034
      %v3140 = vmul.f32 %v2522, %v3036
      %v3141 = vmul.f32 %v2523, %v3038
      %v3142 = vmul.f32 %v2524, %v3040
      %v3143 = vmul.f32 %v2525, %v3042
      %v3144 = vmul.f32 %v2526, %v3044
      %v3145 = vmul.f32 %v2527, %v3046
      %v3146 = vmul.f32 %v2528, %v3048
      %v3147 = vlog2.pop %v3131
      %v3148 = vmul.f32 %v3147, 0.6931472
      %v3149 = vlog2.pop %v3132
      %v3150 = vmul.f32 %v3149, 0.6931472
      %v3151 = vlog2.pop %v3133
      %v3152 = vmul.f32 %v3151, 0.6931472
      %v3153 = vlog2.pop %v3134
      %v3154 = vmul.f32 %v3153, 0.6931472
      %v3155 = vlog2.pop %v3135
      %v3156 = vmul.f32 %v3155, 0.6931472
      %v3157 = vlog2.pop %v3136
      %v3158 = vmul.f32 %v3157, 0.6931472
      %v3159 = vlog2.pop %v3137
      %v3160 = vmul.f32 %v3159, 0.6931472
      %v3161 = vlog2.pop %v3138
      %v3162 = vmul.f32 %v3161, 0.6931472
      %v3163 = vlog2.pop %v3139
      %v3164 = vmul.f32 %v3163, 0.6931472
      %v3165 = vlog2.pop %v3140
      %v3166 = vmul.f32 %v3165, 0.6931472
      %v3167 = vlog2.pop %v3141
      %v3168 = vmul.f32 %v3167, 0.6931472
      %v3169 = vlog2.pop %v3142
      %v3170 = vmul.f32 %v3169, 0.6931472
      %v3171 = vlog2.pop %v3143
      %v3172 = vmul.f32 %v3171, 0.6931472
      %v3173 = vlog2.pop %v3144
      %v3174 = vmul.f32 %v3173, 0.6931472
      %v3175 = vlog2.pop %v3145
      %v3176 = vmul.f32 %v3175, 0.6931472
      %v3177 = vlog2.pop %v3146
      %v3178 = vmul.f32 %v3177, 0.6931472
      %v3179 = vmul.f32 %v3148, %v3114
      %v3180 = vmul.f32 %v3150, %v3114
      %v3181 = vmul.f32 %v3152, %v3114
      %v3182 = vmul.f32 %v3154, %v3114
      %v3183 = vmul.f32 %v3156, %v3114
      %v3184 = vmul.f32 %v3158, %v3114
      %v3185 = vmul.f32 %v3160, %v3114
      %v3186 = vmul.f32 %v3162, %v3114
      %v3187 = vmul.f32 %v3164, %v3114
      %v3188 = vmul.f32 %v3166, %v3114
      %v3189 = vmul.f32 %v3168, %v3114
      %v3190 = vmul.f32 %v3170, %v3114
      %v3191 = vmul.f32 %v3172, %v3114
      %v3192 = vmul.f32 %v3174, %v3114
      %v3193 = vmul.f32 %v3176, %v3114
      %v3194 = vmul.f32 %v3178, %v3114
      %v3211 = vcombine.low %v2822, %v2823
      %v3212 = vcombine.low %v2824, %v2825
      %v3213 = vcombine.low %v2826, %v2827
      %v3214 = vcombine.low %v2828, %v2829
      %v3216 = vunpack.c.l.s4 1966171168
      %v3217 = vunpack.c.0.s8 %v3216
      %v3218 = vlaneseq
      %v3219 = vshrl.u32 %v3218, 7
      %v3220 = vsub.s32 %v3217, %v3219
      %v3221 = vrot.slane %v3211, %v3220
      %v3223 = vunpack.c.l.s4 1966171168
      %v3224 = vunpack.c.0.s8 %v3223
      %v3225 = vlaneseq
      %v3226 = vshrl.u32 %v3225, 7
      %v3227 = vsub.s32 %v3224, %v3226
      %v3228 = vrot.slane %v3212, %v3227
      %v3230 = vunpack.c.l.s4 1966171168
      %v3231 = vunpack.c.0.s8 %v3230
      %v3232 = vlaneseq
      %v3233 = vshrl.u32 %v3232, 7
      %v3234 = vsub.s32 %v3231, %v3233
      %v3235 = vrot.slane %v3213, %v3234
      %v3237 = vunpack.c.l.s4 1966171168
      %v3238 = vunpack.c.0.s8 %v3237
      %v3239 = vlaneseq
      %v3240 = vshrl.u32 %v3239, 7
      %v3241 = vsub.s32 %v3238, %v3240
      %v3242 = vrot.slane %v3214, %v3241
      %v3243 = vcombine.low %v3221, %v3228
      %v3244 = vcombine.low %v3235, %v3242
      %v3246 = vunpack.c.l.s4 1966171168
      %v3247 = vunpack.c.0.s8 %v3246
      %v3248 = vlaneseq
      %v3249 = vshrl.u32 %v3248, 7
      %v3250 = vsub.s32 %v3247, %v3249
      %v3251 = vrot.slane %v3243, %v3250
      %v3253 = vunpack.c.l.s4 1966171168
      %v3254 = vunpack.c.0.s8 %v3253
      %v3255 = vlaneseq
      %v3256 = vshrl.u32 %v3255, 7
      %v3257 = vsub.s32 %v3254, %v3256
      %v3258 = vrot.slane %v3244, %v3257
      %v3259 = vcombine.low %v3251, %v3258
      %v3260 = vcombine.low %v2830, %v2831
      %v3261 = vcombine.low %v2832, %v2833
      %v3262 = vcombine.low %v2834, %v2835
      %v3263 = vcombine.low %v2836, %v2837
      %v3265 = vunpack.c.l.s4 1966171168
      %v3266 = vunpack.c.0.s8 %v3265
      %v3267 = vlaneseq
      %v3268 = vshrl.u32 %v3267, 7
      %v3269 = vsub.s32 %v3266, %v3268
      %v3270 = vrot.slane %v3260, %v3269
      %v3272 = vunpack.c.l.s4 1966171168
      %v3273 = vunpack.c.0.s8 %v3272
      %v3274 = vlaneseq
      %v3275 = vshrl.u32 %v3274, 7
      %v3276 = vsub.s32 %v3273, %v3275
      %v3277 = vrot.slane %v3261, %v3276
      %v3279 = vunpack.c.l.s4 1966171168
      %v3280 = vunpack.c.0.s8 %v3279
      %v3281 = vlaneseq
      %v3282 = vshrl.u32 %v3281, 7
      %v3283 = vsub.s32 %v3280, %v3282
      %v3284 = vrot.slane %v3262, %v3283
      %v3286 = vunpack.c.l.s4 1966171168
      %v3287 = vunpack.c.0.s8 %v3286
      %v3288 = vlaneseq
      %v3289 = vshrl.u32 %v3288, 7
      %v3290 = vsub.s32 %v3287, %v3289
      %v3291 = vrot.slane %v3263, %v3290
      %v3292 = vcombine.low %v3270, %v3277
      %v3293 = vcombine.low %v3284, %v3291
      %v3295 = vunpack.c.l.s4 1966171168
      %v3296 = vunpack.c.0.s8 %v3295
      %v3297 = vlaneseq
      %v3298 = vshrl.u32 %v3297, 7
      %v3299 = vsub.s32 %v3296, %v3298
      %v3300 = vrot.slane %v3292, %v3299
      %v3302 = vunpack.c.l.s4 1966171168
      %v3303 = vunpack.c.0.s8 %v3302
      %v3304 = vlaneseq
      %v3305 = vshrl.u32 %v3304, 7
      %v3306 = vsub.s32 %v3303, %v3305
      %v3307 = vrot.slane %v3293, %v3306
      %v3308 = vcombine.low %v3300, %v3307
      %v3311 = vsel %vm372, %v3259, -1.0
      %v3312 = vsel %vm373, %v3308, -1.0
      %3313 = vst [vmem:[%s284] ss:$8 sm:$0xf] %v3311
      %3314 = vst [vmem:[%s284] ss:$8 sm:$0xf0] %v3311
      %s3315 = scalar_lea.vmem %s284, 64
      %3316 = vst [vmem:[%s3315] ss:$8 sm:$0xf] %v3312
      %3317 = vst [vmem:[%s3315] ss:$8 sm:$0xf0] %v3312
      %v3334 = vcombine.low %v3050, %v3051
      %v3335 = vcombine.low %v3052, %v3053
      %v3336 = vcombine.low %v3054, %v3055
      %v3337 = vcombine.low %v3056, %v3057
      %v3339 = vunpack.c.l.s4 1966171168
      %v3340 = vunpack.c.0.s8 %v3339
      %v3341 = vlaneseq
      %v3342 = vshrl.u32 %v3341, 7
      %v3343 = vsub.s32 %v3340, %v3342
      %v3344 = vrot.slane %v3334, %v3343
      %v3346 = vunpack.c.l.s4 1966171168
      %v3347 = vunpack.c.0.s8 %v3346
      %v3348 = vlaneseq
      %v3349 = vshrl.u32 %v3348, 7
      %v3350 = vsub.s32 %v3347, %v3349
      %v3351 = vrot.slane %v3335, %v3350
      %v3353 = vunpack.c.l.s4 1966171168
      %v3354 = vunpack.c.0.s8 %v3353
      %v3355 = vlaneseq
      %v3356 = vshrl.u32 %v3355, 7
      %v3357 = vsub.s32 %v3354, %v3356
      %v3358 = vrot.slane %v3336, %v3357
      %v3360 = vunpack.c.l.s4 1966171168
      %v3361 = vunpack.c.0.s8 %v3360
      %v3362 = vlaneseq
      %v3363 = vshrl.u32 %v3362, 7
      %v3364 = vsub.s32 %v3361, %v3363
      %v3365 = vrot.slane %v3337, %v3364
      %v3366 = vcombine.high %v3344, %v3351
      %v3367 = vcombine.high %v3358, %v3365
      %v3369 = vunpack.c.l.s4 1966171168
      %v3370 = vunpack.c.0.s8 %v3369
      %v3371 = vlaneseq
      %v3372 = vshrl.u32 %v3371, 7
      %v3373 = vsub.s32 %v3370, %v3372
      %v3374 = vrot.slane %v3366, %v3373
      %v3376 = vunpack.c.l.s4 1966171168
      %v3377 = vunpack.c.0.s8 %v3376
      %v3378 = vlaneseq
      %v3379 = vshrl.u32 %v3378, 7
      %v3380 = vsub.s32 %v3377, %v3379
      %v3381 = vrot.slane %v3367, %v3380
      %v3382 = vcombine.low %v3374, %v3381
      %v3383 = vcombine.low %v3058, %v3059
      %v3384 = vcombine.low %v3060, %v3061
      %v3385 = vcombine.low %v3062, %v3063
      %v3386 = vcombine.low %v3064, %v3065
      %v3388 = vunpack.c.l.s4 1966171168
      %v3389 = vunpack.c.0.s8 %v3388
      %v3390 = vlaneseq
      %v3391 = vshrl.u32 %v3390, 7
      %v3392 = vsub.s32 %v3389, %v3391
      %v3393 = vrot.slane %v3383, %v3392
      %v3395 = vunpack.c.l.s4 1966171168
      %v3396 = vunpack.c.0.s8 %v3395
      %v3397 = vlaneseq
      %v3398 = vshrl.u32 %v3397, 7
      %v3399 = vsub.s32 %v3396, %v3398
      %v3400 = vrot.slane %v3384, %v3399
      %v3402 = vunpack.c.l.s4 1966171168
      %v3403 = vunpack.c.0.s8 %v3402
      %v3404 = vlaneseq
      %v3405 = vshrl.u32 %v3404, 7
      %v3406 = vsub.s32 %v3403, %v3405
      %v3407 = vrot.slane %v3385, %v3406
      %v3409 = vunpack.c.l.s4 1966171168
      %v3410 = vunpack.c.0.s8 %v3409
      %v3411 = vlaneseq
      %v3412 = vshrl.u32 %v3411, 7
      %v3413 = vsub.s32 %v3410, %v3412
      %v3414 = vrot.slane %v3386, %v3413
      %v3415 = vcombine.high %v3393, %v3400
      %v3416 = vcombine.high %v3407, %v3414
      %v3418 = vunpack.c.l.s4 1966171168
      %v3419 = vunpack.c.0.s8 %v3418
      %v3420 = vlaneseq
      %v3421 = vshrl.u32 %v3420, 7
      %v3422 = vsub.s32 %v3419, %v3421
      %v3423 = vrot.slane %v3415, %v3422
      %v3425 = vunpack.c.l.s4 1966171168
      %v3426 = vunpack.c.0.s8 %v3425
      %v3427 = vlaneseq
      %v3428 = vshrl.u32 %v3427, 7
      %v3429 = vsub.s32 %v3426, %v3428
      %v3430 = vrot.slane %v3416, %v3429
      %v3431 = vcombine.low %v3423, %v3430
      %v3434 = vsel %vm372, %v3382, -1.0
      %v3435 = vsel %vm373, %v3431, -1.0
      %s3436 = scalar_lea.vmem %s284, 1
      %3437 = vst [vmem:[%s3436] ss:$8 sm:$0xf] %v3434
      %3438 = vst [vmem:[%s3436] ss:$8 sm:$0xf0] %v3434
      %s3439 = scalar_lea.vmem %s284, 65
      %3440 = vst [vmem:[%s3439] ss:$8 sm:$0xf] %v3435
      %3441 = vst [vmem:[%s3439] ss:$8 sm:$0xf0] %v3435
      %v3458 = vcombine.low %v3115, %v3116
      %v3459 = vcombine.low %v3117, %v3118
      %v3460 = vcombine.low %v3119, %v3120
      %v3461 = vcombine.low %v3121, %v3122
      %v3463 = vunpack.c.l.s4 1966171168
      %v3464 = vunpack.c.0.s8 %v3463
      %v3465 = vlaneseq
      %v3466 = vshrl.u32 %v3465, 7
      %v3467 = vsub.s32 %v3464, %v3466
      %v3468 = vrot.slane %v3458, %v3467
      %v3470 = vunpack.c.l.s4 1966171168
      %v3471 = vunpack.c.0.s8 %v3470
      %v3472 = vlaneseq
      %v3473 = vshrl.u32 %v3472, 7
      %v3474 = vsub.s32 %v3471, %v3473
      %v3475 = vrot.slane %v3459, %v3474
      %v3477 = vunpack.c.l.s4 1966171168
      %v3478 = vunpack.c.0.s8 %v3477
      %v3479 = vlaneseq
      %v3480 = vshrl.u32 %v3479, 7
      %v3481 = vsub.s32 %v3478, %v3480
      %v3482 = vrot.slane %v3460, %v3481
      %v3484 = vunpack.c.l.s4 1966171168
      %v3485 = vunpack.c.0.s8 %v3484
      %v3486 = vlaneseq
      %v3487 = vshrl.u32 %v3486, 7
      %v3488 = vsub.s32 %v3485, %v3487
      %v3489 = vrot.slane %v3461, %v3488
      %v3490 = vcombine.low %v3468, %v3475
      %v3491 = vcombine.low %v3482, %v3489
      %v3493 = vunpack.c.l.s4 1966171168
      %v3494 = vunpack.c.0.s8 %v3493
      %v3495 = vlaneseq
      %v3496 = vshrl.u32 %v3495, 7
      %v3497 = vsub.s32 %v3494, %v3496
      %v3498 = vrot.slane %v3490, %v3497
      %v3500 = vunpack.c.l.s4 1966171168
      %v3501 = vunpack.c.0.s8 %v3500
      %v3502 = vlaneseq
      %v3503 = vshrl.u32 %v3502, 7
      %v3504 = vsub.s32 %v3501, %v3503
      %v3505 = vrot.slane %v3491, %v3504
      %v3506 = vcombine.high %v3498, %v3505
      %v3507 = vcombine.low %v3123, %v3124
      %v3508 = vcombine.low %v3125, %v3126
      %v3509 = vcombine.low %v3127, %v3128
      %v3510 = vcombine.low %v3129, %v3130
      %v3512 = vunpack.c.l.s4 1966171168
      %v3513 = vunpack.c.0.s8 %v3512
      %v3514 = vlaneseq
      %v3515 = vshrl.u32 %v3514, 7
      %v3516 = vsub.s32 %v3513, %v3515
      %v3517 = vrot.slane %v3507, %v3516
      %v3519 = vunpack.c.l.s4 1966171168
      %v3520 = vunpack.c.0.s8 %v3519
      %v3521 = vlaneseq
      %v3522 = vshrl.u32 %v3521, 7
      %v3523 = vsub.s32 %v3520, %v3522
      %v3524 = vrot.slane %v3508, %v3523
      %v3526 = vunpack.c.l.s4 1966171168
      %v3527 = vunpack.c.0.s8 %v3526
      %v3528 = vlaneseq
      %v3529 = vshrl.u32 %v3528, 7
      %v3530 = vsub.s32 %v3527, %v3529
      %v3531 = vrot.slane %v3509, %v3530
      %v3533 = vunpack.c.l.s4 1966171168
      %v3534 = vunpack.c.0.s8 %v3533
      %v3535 = vlaneseq
      %v3536 = vshrl.u32 %v3535, 7
      %v3537 = vsub.s32 %v3534, %v3536
      %v3538 = vrot.slane %v3510, %v3537
      %v3539 = vcombine.low %v3517, %v3524
      %v3540 = vcombine.low %v3531, %v3538
      %v3542 = vunpack.c.l.s4 1966171168
      %v3543 = vunpack.c.0.s8 %v3542
      %v3544 = vlaneseq
      %v3545 = vshrl.u32 %v3544, 7
      %v3546 = vsub.s32 %v3543, %v3545
      %v3547 = vrot.slane %v3539, %v3546
      %v3549 = vunpack.c.l.s4 1966171168
      %v3550 = vunpack.c.0.s8 %v3549
      %v3551 = vlaneseq
      %v3552 = vshrl.u32 %v3551, 7
      %v3553 = vsub.s32 %v3550, %v3552
      %v3554 = vrot.slane %v3540, %v3553
      %v3555 = vcombine.high %v3547, %v3554
      %v3558 = vsel %vm372, %v3506, -1.0
      %v3559 = vsel %vm373, %v3555, -1.0
      %s3560 = scalar_lea.vmem %s284, 2
      %3561 = vst [vmem:[%s3560] ss:$8 sm:$0xf] %v3558
      %3562 = vst [vmem:[%s3560] ss:$8 sm:$0xf0] %v3558
      %s3563 = scalar_lea.vmem %s284, 66
      %3564 = vst [vmem:[%s3563] ss:$8 sm:$0xf] %v3559
      %3565 = vst [vmem:[%s3563] ss:$8 sm:$0xf0] %v3559
      %v3582 = vcombine.low %v3179, %v3180
      %v3583 = vcombine.low %v3181, %v3182
      %v3584 = vcombine.low %v3183, %v3184
      %v3585 = vcombine.low %v3185, %v3186
      %v3587 = vunpack.c.l.s4 1966171168
      %v3588 = vunpack.c.0.s8 %v3587
      %v3589 = vlaneseq
      %v3590 = vshrl.u32 %v3589, 7
      %v3591 = vsub.s32 %v3588, %v3590
      %v3592 = vrot.slane %v3582, %v3591
      %v3594 = vunpack.c.l.s4 1966171168
      %v3595 = vunpack.c.0.s8 %v3594
      %v3596 = vlaneseq
      %v3597 = vshrl.u32 %v3596, 7
      %v3598 = vsub.s32 %v3595, %v3597
      %v3599 = vrot.slane %v3583, %v3598
      %v3601 = vunpack.c.l.s4 1966171168
      %v3602 = vunpack.c.0.s8 %v3601
      %v3603 = vlaneseq
      %v3604 = vshrl.u32 %v3603, 7
      %v3605 = vsub.s32 %v3602, %v3604
      %v3606 = vrot.slane %v3584, %v3605
      %v3608 = vunpack.c.l.s4 1966171168
      %v3609 = vunpack.c.0.s8 %v3608
      %v3610 = vlaneseq
      %v3611 = vshrl.u32 %v3610, 7
      %v3612 = vsub.s32 %v3609, %v3611
      %v3613 = vrot.slane %v3585, %v3612
      %v3614 = vcombine.high %v3592, %v3599
      %v3615 = vcombine.high %v3606, %v3613
      %v3617 = vunpack.c.l.s4 1966171168
      %v3618 = vunpack.c.0.s8 %v3617
      %v3619 = vlaneseq
      %v3620 = vshrl.u32 %v3619, 7
      %v3621 = vsub.s32 %v3618, %v3620
      %v3622 = vrot.slane %v3614, %v3621
      %v3624 = vunpack.c.l.s4 1966171168
      %v3625 = vunpack.c.0.s8 %v3624
      %v3626 = vlaneseq
      %v3627 = vshrl.u32 %v3626, 7
      %v3628 = vsub.s32 %v3625, %v3627
      %v3629 = vrot.slane %v3615, %v3628
      %v3630 = vcombine.high %v3622, %v3629
      %v3631 = vcombine.low %v3187, %v3188
      %v3632 = vcombine.low %v3189, %v3190
      %v3633 = vcombine.low %v3191, %v3192
      %v3634 = vcombine.low %v3193, %v3194
      %v3636 = vunpack.c.l.s4 1966171168
      %v3637 = vunpack.c.0.s8 %v3636
      %v3638 = vlaneseq
      %v3639 = vshrl.u32 %v3638, 7
      %v3640 = vsub.s32 %v3637, %v3639
      %v3641 = vrot.slane %v3631, %v3640
      %v3643 = vunpack.c.l.s4 1966171168
      %v3644 = vunpack.c.0.s8 %v3643
      %v3645 = vlaneseq
      %v3646 = vshrl.u32 %v3645, 7
      %v3647 = vsub.s32 %v3644, %v3646
      %v3648 = vrot.slane %v3632, %v3647
      %v3650 = vunpack.c.l.s4 1966171168
      %v3651 = vunpack.c.0.s8 %v3650
      %v3652 = vlaneseq
      %v3653 = vshrl.u32 %v3652, 7
      %v3654 = vsub.s32 %v3651, %v3653
      %v3655 = vrot.slane %v3633, %v3654
      %v3657 = vunpack.c.l.s4 1966171168
      %v3658 = vunpack.c.0.s8 %v3657
      %v3659 = vlaneseq
      %v3660 = vshrl.u32 %v3659, 7
      %v3661 = vsub.s32 %v3658, %v3660
      %v3662 = vrot.slane %v3634, %v3661
      %v3663 = vcombine.high %v3641, %v3648
      %v3664 = vcombine.high %v3655, %v3662
      %v3666 = vunpack.c.l.s4 1966171168
      %v3667 = vunpack.c.0.s8 %v3666
      %v3668 = vlaneseq
      %v3669 = vshrl.u32 %v3668, 7
      %v3670 = vsub.s32 %v3667, %v3669
      %v3671 = vrot.slane %v3663, %v3670
      %v3673 = vunpack.c.l.s4 1966171168
      %v3674 = vunpack.c.0.s8 %v3673
      %v3675 = vlaneseq
      %v3676 = vshrl.u32 %v3675, 7
      %v3677 = vsub.s32 %v3674, %v3676
      %v3678 = vrot.slane %v3664, %v3677
      %v3679 = vcombine.high %v3671, %v3678
      %v3682 = vsel %vm372, %v3630, -1.0
      %v3683 = vsel %vm373, %v3679, -1.0
      %s3684 = scalar_lea.vmem %s284, 3
      %3685 = vst [vmem:[%s3684] ss:$8 sm:$0xf] %v3682
      %3686 = vst [vmem:[%s3684] ss:$8 sm:$0xf0] %v3682
      %s3687 = scalar_lea.vmem %s284, 67
      %3688 = vst [vmem:[%s3687] ss:$8 sm:$0xf] %v3683
      %3689 = vst [vmem:[%s3687] ss:$8 sm:$0xf0] %v3683
      %s3690 = scalar_lea.vmem %s284, 4
      %3691 = vst [vmem:[%s3690] ss:$8 sm:$0xf] %v2447
      %3692 = vst [vmem:[%s3690] ss:$8 sm:$0xf0] %v2447
      %s3693 = scalar_lea.vmem %s284, 68
      %3694 = vst [vmem:[%s3693] ss:$8 sm:$0xf] %v2448
      %3695 = vst [vmem:[%s3693] ss:$8 sm:$0xf0] %v2448
      %s3696 = smul.u32 16, %s31
      %p3697 = scmp.lt.s32.totalorder %s32, 1
      %s3698 = scalar_select %p3697, %s32, 1
      %p3699 = scmp.lt.s32.totalorder %s3696, 63
      %s3700 = scalar_select %p3699, %s3696, 63
      %s3701 = smul.addr %s3698, 64
      %s3702 = sadd.s32 %s3700, %s3701
      %s3703 = smul.addr %s3702, 8
      %s3704 = scalar_lea.vmem %s6, %s3703
      // Predicated region
      $region37: #{build_target_layer.3} parent=35 // pred_check
        %p3705 = pneg %p163
      $region38: #{build_target_layer.3} parent=35 // pred_check_branch
        %3707 = sbr.rel (%p3705) target = $region40
      $region39: #{build_target_layer.3} parent=35 // pred_region
        %s3708 = smul.u32 16, %s31
      $region40: #{build_target_layer.3} parent=35 // pred_fallthru
        _
    $region36: #{build_target_layer.3} parent=5 // pred_fallthru
      _
    %p3709 = scmp.le.s32.totalorder 2, %s22
    // Predicated region
    $region41: #{build_target_layer.3} parent=5 // pred_check
      %p3710 = pneg %p3709
    $region42: #{build_target_layer.3} parent=5 // pred_check_branch
      %3712 = sbr.rel (%p3710) target = $region44
    $region43: #{build_target_layer.3} parent=5 // pred_region
      %s3713 = ssub.s32 %s22, 2
      // Predicated region
      $region45: #{build_target_layer.3} parent=43 // pred_check
        %p3714 = pneg %p169
      $region46: #{build_target_layer.3} parent=43 // pred_check_branch
        %3716 = sbr.rel (%p3714) target = $region48
      $region47: #{build_target_layer.3} parent=43 // pred_region
        %s3717 = smul.u32 16, %s33
        %p3718 = scmp.lt.s32.totalorder %s34, 1
        %s3719 = scalar_select %p3718, %s34, 1
        %p3720 = scmp.lt.s32.totalorder %s3717, 63
        %s3721 = scalar_select %p3720, %s3717, 63
        %s3722 = smul.addr %s3719, 64
        %s3723 = sadd.s32 %s3721, %s3722
        %s3724 = smul.addr %s3723, 8
        %s3725 = scalar_lea.vmem %s6, %s3724
      $region48: #{build_target_layer.3} parent=43 // pred_fallthru
        _
    $region44: #{build_target_layer.3} parent=5 // pred_fallthru
      _
  $region6: #{build_target_layer.3} parent=0 // loop_footer
    %s26 = sadd.s32 1, %s22
  $region7: #{build_target_layer.3} parent=0 // loop_footer_branch
    %21 = sbr.rel target = $region3
  $region8: #{build_target_layer.3} parent=0 // loop_exit
    _

</llo_original>
